<compile_context>
chip_gen: v7x
topology: tpu7x:2x2x1
jax: 0.10.0
libtpu: 0.0.40
codegen_flags: <defaults>
</compile_context>

<pallas_src>
import numpy as np
import jax
import jax.numpy as jnp
from jax.experimental import pallas as pl
from jax.experimental.pallas import tpu as pltpu

# ---------------- small synthetic config ----------------
HIDDEN = 32            # config.hidden_size
NUM_HEADS = 4          # config.num_attention_heads
NUM_KV_HEADS = 4       # config.num_key_value_heads
HEAD_DIM = HIDDEN // NUM_HEADS
Q_AGG_K = 2            # config.q_aggregation_kernel_size == stride
KV_AGG_K = 2           # config.kv_aggregation_kernel_size == stride
INTERMEDIATE = 64      # config.intermediate_size
LN_EPS = 1e-5
LEAKY_SLOPE = 0.01     # ACT2FN["leaky_relu"]
SCALING = HEAD_DIM ** -0.5


# ---------------- bilinear interpolation factor (align_corners=False, torch clamp) ----
def _bilinear_matrix(n_in, scale):
    n_out = n_in * scale
    i = np.arange(n_out)
    src = (i + 0.5) / scale - 0.5
    src = np.clip(src, 0.0, None)
    i0 = np.minimum(np.floor(src).astype(np.int64), n_in - 1)
    i1 = np.minimum(i0 + 1, n_in - 1)
    frac = src - i0
    m = np.zeros((n_out, n_in), dtype=np.float32)
    m[np.arange(n_out), i0] += (1.0 - frac)
    m[np.arange(n_out), i1] += frac
    return m


# ---------------- fused kernel factory ----------------
def _make_fused_kernel(H, W, h_agg, w_agg, P, uh_np):
    L = h_agg * w_agg
    NH, D, C = NUM_HEADS, HEAD_DIM, HIDDEN
    f32 = jnp.float32

    def kernel(patches_ref, hid_ref, cos_ref, sin_ref,
               convw_ref, agg_g_ref, agg_b_ref,
               wq_ref, wk_ref, wv_ref, wo_ref, uw_ref,
               w1h_ref, w1a_ref, w2_ref, mlp_g_ref, mlp_b_ref,
               out_ref):

        def layernorm(v, g, b):
            mu = jnp.mean(v, axis=-1, keepdims=True)
            var = jnp.mean(jnp.square(v - mu), axis=-1, keepdims=True)
            return (v - mu) * jax.lax.rsqrt(var + LN_EPS) * g + b

        # ---- aggregation: depthwise conv (kernel==stride) + maxpool + shared LN ----
        xp = patches_ref[0]                                   # (P, L, C)
        q_agg = xp[0] * convw_ref[0]                          # VPU fmadd chain over P
        kv_agg = xp[0]
        for p in range(1, P):
            q_agg = q_agg + xp[p] * convw_ref[p]
            kv_agg = jnp.maximum(kv_agg, xp[p])
        agg_g = agg_g_ref[...]
        agg_b = agg_b_ref[...]
        q_norm = layernorm(q_agg, agg_g, agg_b)               # (L, C)
        kv_norm = layernorm(kv_agg, agg_g, agg_b)             # (L, C)

        # ---- attention: head-major batched projections + RoPE + softmax ----
        cos = cos_ref[0]                                      # (NH, L, D)
        sin = sin_ref[0]
        xq = jnp.broadcast_to(q_norm[None], (NH, L, C))
        xkv = jnp.broadcast_to(kv_norm[None], (NH, L, C))
        q = jnp.einsum("hlc,hcd->hld", xq, wq_ref[...], preferred_element_type=f32)
        k = jnp.einsum("hlc,hcd->hld", xkv, wk_ref[...], preferred_element_type=f32)
        v = jnp.einsum("hlc,hcd->hld", xkv, wv_ref[...], preferred_element_type=f32)

        lane = jax.lax.broadcasted_iota(jnp.int32, (NH, L, D), 2)
        is_even = (lane & 1) == 0

        def rope(t):
            # rotate_half on interleaved pairs, no permutation matmul:
            #   rot[2i] = -t[2i+1], rot[2i+1] = t[2i]
            nxt = jnp.roll(t, -1, axis=-1)                    # t[..., d+1]
            prv = jnp.roll(t, 1, axis=-1)                     # t[..., d-1]
            rot = jnp.where(is_even, -nxt, prv)
            return t * cos + rot * sin

        q = rope(q)
        k = rope(k)

        scores = jnp.einsum("hld,hmd->hlm", q, k, preferred_element_type=f32) * SCALING
        scores = scores - jnp.max(scores, axis=-1, keepdims=True)
        p_exp = jnp.exp(scores)
        denom = jnp.sum(p_exp, axis=-1, keepdims=True)
        probs = p_exp * pl.reciprocal(denom, approx=True)      # EUP reciprocal
        o = jnp.einsum("hlm,hmd->hld", probs, v, preferred_element_type=f32)

        # o_proj: sum over heads of (L, D) @ (D, C) -- head-major packed weights
        attn = jnp.dot(o[0], wo_ref[0], preferred_element_type=f32)
        for h in range(1, NH):
            attn = attn + jnp.dot(o[h], wo_ref[h], preferred_element_type=f32)
        # attn: (L, C)

        # ---- separable bilinear upsample (scale = Q_AGG_K), O(HW*C) ----
        uw = uw_ref[...]                                      # (W, w_agg)
        s1 = [jnp.dot(uw, attn[ha * w_agg:(ha + 1) * w_agg, :],
                      preferred_element_type=f32)
              for ha in range(h_agg)]                         # h_agg x (W, C)
        rows = []
        for y in range(H):
            acc = None
            for ha in range(h_agg):
                wgt = float(uh_np[y, ha])                     # compile-time constant
                if wgt == 0.0:
                    continue
                term = s1[ha] * wgt
                acc = term if acc is None else acc + term
            rows.append(acc if acc is not None else jnp.zeros_like(s1[0]))
        up = jnp.concatenate(rows, axis=0)                    # (H*W, C), row = y*W + x

        # ---- MLP on cat([hidden, up]) (split fc1) + LayerNorm + residual ----
        hid = hid_ref[0]                                      # (HW, C)
        z = (jnp.dot(hid, w1h_ref[...], preferred_element_type=f32)
             + jnp.dot(up, w1a_ref[...], preferred_element_type=f32))
        a = jnp.where(z >= 0, z, LEAKY_SLOPE * z)
        y_mlp = jnp.dot(a, w2_ref[...], preferred_element_type=f32)
        out_ref[0] = hid + layernorm(y_mlp, mlp_g_ref[...], mlp_b_ref[...])

    return kernel


# ---------------- parameters (model form) ----------------
def make_params(key):
    C, P, I = HIDDEN, Q_AGG_K * Q_AGG_K, INTERMEDIATE
    ks = jax.random.split(key, 12)

    def rnd(k, shape, scale=0.2):
        return jax.random.normal(k, shape, dtype=jnp.float32) * scale

    return {
        # depthwise conv weight, flattened (kh*kw, C)  (torch: (C,1,kh,kw))
        "conv_w": rnd(ks[0], (P, C)),
        "agg_ln_gamma": 1.0 + rnd(ks[1], (1, C), 0.05),
        "agg_ln_beta": rnd(ks[2], (1, C), 0.05),
        # linear weights pre-transposed: y = x @ W^T  -> store W^T
        "wq_t": rnd(ks[3], (C, C)),
        "wk_t": rnd(ks[4], (C, C)),
        "wv_t": rnd(ks[5], (C, C)),
        "wo_t": rnd(ks[6], (C, C)),
        # fc1 weight (I, 2C) split into hidden part / attn part, pre-transposed
        "w1h_t": rnd(ks[7], (C, INTERMEDIATE)),
        "w1a_t": rnd(ks[8], (C, INTERMEDIATE)),
        "w2_t": rnd(ks[9], (INTERMEDIATE, C)),
        "mlp_ln_gamma": 1.0 + rnd(ks[10], (1, C), 0.05),
        "mlp_ln_beta": rnd(ks[11], (1, C), 0.05),
    }


# ---------------- wrapper ----------------
def efficientloftr_aggregated_attention(hidden_states, params, cos, sin):
    """hidden_states: (B, C, H, W) NCHW, fp32. Returns (B, C, H, W)."""
    B, C, H, W = hidden_states.shape
    assert C == HIDDEN
    assert Q_AGG_K == KV_AGG_K, "kv max-pool reuses the q patch grid"
    ksz = Q_AGG_K
    assert H % ksz == 0 and W % ksz == 0
    h_agg, w_agg = H // ksz, W // ksz
    L = h_agg * w_agg
    P = ksz * ksz
    HW = H * W
    NH, D, I = NUM_HEADS, HEAD_DIM, INTERMEDIATE
    x = hidden_states.astype(jnp.float32)

    # ---- one-time host/XLA layout packing ----
    # patches: (B, P, L, C), p = kh*ksz + kw, l = ha*w_agg + wa
    patches = x.reshape(B, C, h_agg, ksz, w_agg, ksz)
    patches = patches.transpose(0, 3, 5, 2, 4, 1).reshape(B, P, L, C)
    # pixels row-major (y*W + x), channels last
    hid_pix = x.transpose(0, 2, 3, 1).reshape(B, HW, C)
    # RoPE tables head-major: (B, NH, L, D)
    cos_hm = cos.reshape(B, L, NH, D).transpose(0, 2, 1, 3)
    sin_hm = sin.reshape(B, L, NH, D).transpose(0, 2, 1, 3)
    # head-major projection weights
    conv_w3 = params["conv_w"].reshape(P, 1, C)
    wq_hm = params["wq_t"].reshape(C, NH, D).transpose(1, 0, 2)   # (NH, C, D)
    wk_hm = params["wk_t"].reshape(C, NH, D).transpose(1, 0, 2)
    wv_hm = params["wv_t"].reshape(C, NH, D).transpose(1, 0, 2)
    wo_hm = params["wo_t"].reshape(NH, D, C)                      # (NH, D, C)
    # separable bilinear factors (shape-only constants)
    uh_np = _bilinear_matrix(h_agg, ksz)                          # (H, h_agg) -> baked
    uw = jnp.asarray(_bilinear_matrix(w_agg, ksz))                # (W, w_agg) -> input

    kernel = _make_fused_kernel(H, W, h_agg, w_agg, P, uh_np)

    def full_spec(shape):
        n = len(shape)
        return pl.BlockSpec(shape, lambda b: (0,) * n)

    def batch_spec(shape):
        n = len(shape)
        return pl.BlockSpec((1,) + shape, lambda b: (b,) + (0,) * n)

    out_pix = pl.pallas_call(
        kernel,
        out_shape=jax.ShapeDtypeStruct((B, HW, C), jnp.float32),
        grid=(B,),
        in_specs=[
            batch_spec((P, L, C)),        # patches
            batch_spec((HW, C)),          # hidden pixels
            batch_spec((NH, L, D)),       # cos (head-major)
            batch_spec((NH, L, D)),       # sin (head-major)
            full_spec((P, 1, C)),         # depthwise conv weight
            full_spec((1, C)),            # agg LN gamma
            full_spec((1, C)),            # agg LN beta
            full_spec((NH, C, D)),        # wq (head-major)
            full_spec((NH, C, D)),        # wk
            full_spec((NH, C, D)),        # wv
            full_spec((NH, D, C)),        # wo (head-major)
            full_spec((W, w_agg)),        # bilinear w-factor
            full_spec((C, I)),            # fc1 (hidden half)
            full_spec((C, I)),            # fc1 (attn half)
            full_spec((I, C)),            # fc2
            full_spec((1, C)),            # mlp LN gamma
            full_spec((1, C)),            # mlp LN beta
        ],
        out_specs=batch_spec((HW, C)),
        compiler_params=pltpu.CompilerParams(dimension_semantics=("parallel",)),
    )(patches, hid_pix, cos_hm, sin_hm,
      conv_w3, params["agg_ln_gamma"], params["agg_ln_beta"],
      wq_hm, wk_hm, wv_hm, wo_hm, uw,
      params["w1h_t"], params["w1a_t"], params["w2_t"],
      params["mlp_ln_gamma"], params["mlp_ln_beta"])

    return out_pix.reshape(B, H, W, C).transpose(0, 3, 1, 2)


# ---------------- pure-JAX reference (same math, for a sanity check) ----------------
def reference(hidden_states, params, cos, sin):
    B, C, H, W = hidden_states.shape
    ksz = Q_AGG_K
    h_agg, w_agg = H // ksz, W // ksz
    L = h_agg * w_agg
    x = hidden_states.astype(jnp.float32)
    patches = x.reshape(B, C, h_agg, ksz, w_agg, ksz)
    patches = patches.transpose(0, 2, 4, 3, 5, 1).reshape(B, L, ksz * ksz, C)

    def ln(v, g, b):
        mu = jnp.mean(v, -1, keepdims=True)
        var = jnp.mean((v - mu) ** 2, -1, keepdims=True)
        return (v - mu) / jnp.sqrt(var + LN_EPS) * g + b

    q = jnp.einsum("blpc,pc->blc", patches, params["conv_w"])
    kv = jnp.max(patches, axis=2)
    qn = ln(q, params["agg_ln_gamma"], params["agg_ln_beta"])
    kvn = ln(kv, params["agg_ln_gamma"], params["agg_ln_beta"])

    def rotate_half(t):
        t1 = t[..., 0::2]
        t2 = t[..., 1::2]
        return jnp.stack([-t2, t1], axis=-1).reshape(t.shape)

    qp = qn @ params["wq_t"]
    kp = kvn @ params["wk_t"]
    vp = kvn @ params["wv_t"]
    rope = lambda t: t * cos + rotate_half(t) * sin
    qp, kp = rope(qp), rope(kp)

    qh = qp.reshape(B, L, NUM_HEADS, HEAD_DIM).transpose(0, 2, 1, 3)
    kh = kp.reshape(B, L, NUM_HEADS, HEAD_DIM).transpose(0, 2, 1, 3)
    vh = vp.reshape(B, L, NUM_HEADS, HEAD_DIM).transpose(0, 2, 1, 3)
    s = jnp.einsum("bhld,bhmd->bhlm", qh, kh) * SCALING
    p = jax.nn.softmax(s, axis=-1)
    o = jnp.einsum("bhlm,bhmd->bhld", p, vh).transpose(0, 2, 1, 3).reshape(B, L, C)
    attn = o @ params["wo_t"]

    up_mat = jnp.asarray(np.kron(_bilinear_matrix(h_agg, ksz),
                                 _bilinear_matrix(w_agg, ksz)))
    up = jnp.einsum("sl,blc->bsc", up_mat, attn)
    hid_pix = x.transpose(0, 2, 3, 1).reshape(B, H * W, C)
    z = hid_pix @ params["w1h_t"] + up @ params["w1a_t"]
    a = jnp.where(z >= 0, z, LEAKY_SLOPE * z)
    y = a @ params["w2_t"]
    out = hid_pix + ln(y, params["mlp_ln_gamma"], params["mlp_ln_beta"])
    return out.reshape(B, H, W, C).transpose(0, 3, 1, 2)


if __name__ == "__main__":
    B, C, H, W = 2, HIDDEN, 8, 8
    L = (H // Q_AGG_K) * (W // Q_AGG_K)

    key = jax.random.PRNGKey(0)
    k_x, k_p, k_theta = jax.random.split(key, 3)

    hidden_states = jax.random.normal(k_x, (B, C, H, W), dtype=jnp.float32)
    params = make_params(k_p)
    theta = jax.random.uniform(k_theta, (B, L, C), dtype=jnp.float32) * 2.0 * np.pi
    cos, sin = jnp.cos(theta), jnp.sin(theta)

    out = efficientloftr_aggregated_attention(hidden_states, params, cos, sin)
    out = jax.block_until_ready(out)

    ref = reference(hidden_states, params, cos, sin)
    assert out.shape == (B, C, H, W)
    err = float(jnp.max(jnp.abs(out - ref)))
    assert jnp.allclose(out, ref, atol=2e-2, rtol=2e-2), err

    print("KERNEL_OK")
</pallas_src>

<mosaic_0001>
module attributes {stable_mosaic.version = 11 : i64} {
  func.func @kernel(%arg0: i32, %arg1: memref<1x4x16x32xf32, #tpu.memory_space<vmem>>, %arg2: memref<1x64x32xf32, #tpu.memory_space<vmem>>, %arg3: memref<1x4x16x8xf32, #tpu.memory_space<vmem>>, %arg4: memref<1x4x16x8xf32, #tpu.memory_space<vmem>>, %arg5: memref<4x1x32xf32, #tpu.memory_space<vmem>>, %arg6: memref<1x32xf32, #tpu.memory_space<vmem>>, %arg7: memref<1x32xf32, #tpu.memory_space<vmem>>, %arg8: memref<4x32x8xf32, #tpu.memory_space<vmem>>, %arg9: memref<4x32x8xf32, #tpu.memory_space<vmem>>, %arg10: memref<4x32x8xf32, #tpu.memory_space<vmem>>, %arg11: memref<4x8x32xf32, #tpu.memory_space<vmem>>, %arg12: memref<8x4xf32, #tpu.memory_space<vmem>>, %arg13: memref<32x64xf32, #tpu.memory_space<vmem>>, %arg14: memref<32x64xf32, #tpu.memory_space<vmem>>, %arg15: memref<64x32xf32, #tpu.memory_space<vmem>>, %arg16: memref<1x32xf32, #tpu.memory_space<vmem>>, %arg17: memref<1x32xf32, #tpu.memory_space<vmem>>, %arg18: memref<1x64x32xf32, #tpu.memory_space<vmem>>) attributes {dimension_semantics = [#tpu.dimension_semantics<parallel>], iteration_bounds = array<i64: 2>, scalar_prefetch = 0 : i64, scratch_operands = 0 : i64, tpu.core_type = #tpu.core_type<tc>, window_params = [{transform_indices = @transform_0, window_bounds = array<i64: 1, 4, 16, 32>}, {transform_indices = @transform_1, window_bounds = array<i64: 1, 64, 32>}, {transform_indices = @transform_2, window_bounds = array<i64: 1, 4, 16, 8>}, {transform_indices = @transform_3, window_bounds = array<i64: 1, 4, 16, 8>}, {pipeline_mode = #tpu.pipeline_mode<synchronous>, transform_indices = @transform_4, window_bounds = array<i64: 4, 1, 32>}, {pipeline_mode = #tpu.pipeline_mode<synchronous>, transform_indices = @transform_5, window_bounds = array<i64: 1, 32>}, {pipeline_mode = #tpu.pipeline_mode<synchronous>, transform_indices = @transform_6, window_bounds = array<i64: 1, 32>}, {pipeline_mode = #tpu.pipeline_mode<synchronous>, transform_indices = @transform_7, window_bounds = array<i64: 4, 32, 8>}, {pipeline_mode = #tpu.pipeline_mode<synchronous>, transform_indices = @transform_8, window_bounds = array<i64: 4, 32, 8>}, {pipeline_mode = #tpu.pipeline_mode<synchronous>, transform_indices = @transform_9, window_bounds = array<i64: 4, 32, 8>}, {pipeline_mode = #tpu.pipeline_mode<synchronous>, transform_indices = @transform_10, window_bounds = array<i64: 4, 8, 32>}, {pipeline_mode = #tpu.pipeline_mode<synchronous>, transform_indices = @transform_11, window_bounds = array<i64: 8, 4>}, {pipeline_mode = #tpu.pipeline_mode<synchronous>, transform_indices = @transform_12, window_bounds = array<i64: 32, 64>}, {pipeline_mode = #tpu.pipeline_mode<synchronous>, transform_indices = @transform_13, window_bounds = array<i64: 32, 64>}, {pipeline_mode = #tpu.pipeline_mode<synchronous>, transform_indices = @transform_14, window_bounds = array<i64: 64, 32>}, {pipeline_mode = #tpu.pipeline_mode<synchronous>, transform_indices = @transform_15, window_bounds = array<i64: 1, 32>}, {pipeline_mode = #tpu.pipeline_mode<synchronous>, transform_indices = @transform_16, window_bounds = array<i64: 1, 32>}, {transform_indices = @transform_17, window_bounds = array<i64: 1, 64, 32>}]} {
    %c0 = arith.constant 0 : index
    %c0_0 = arith.constant 0 : index
    %c0_1 = arith.constant 0 : index
    %c0_2 = arith.constant 0 : index
    %0 = vector.load %arg1[%c0, %c0_0, %c0_1, %c0_2] : memref<1x4x16x32xf32, #tpu.memory_space<vmem>>, vector<1x4x16x32xf32>
    %1 = vector.shape_cast %0 : vector<1x4x16x32xf32> to vector<4x16x32xf32>
    %2 = vector.extract_strided_slice %1 {offsets = [0, 0, 0], sizes = [1, 16, 32], strides = [1, 1, 1]} : vector<4x16x32xf32> to vector<1x16x32xf32>
    %3 = vector.shape_cast %2 : vector<1x16x32xf32> to vector<16x32xf32>
    %c0_3 = arith.constant 0 : index
    %c0_4 = arith.constant 0 : index
    %c0_5 = arith.constant 0 : index
    %4 = vector.load %arg5[%c0_3, %c0_4, %c0_5] : memref<4x1x32xf32, #tpu.memory_space<vmem>>, vector<1x1x32xf32>
    %5 = vector.shape_cast %4 : vector<1x1x32xf32> to vector<1x32xf32>
    %6 = vector.broadcast %5 : vector<1x32xf32> to vector<16x32xf32>
    %7 = arith.mulf %3, %6 : vector<16x32xf32>
    %8 = vector.extract_strided_slice %1 {offsets = [0, 0, 0], sizes = [1, 16, 32], strides = [1, 1, 1]} : vector<4x16x32xf32> to vector<1x16x32xf32>
    %9 = vector.shape_cast %8 : vector<1x16x32xf32> to vector<16x32xf32>
    %10 = vector.extract_strided_slice %1 {offsets = [1, 0, 0], sizes = [1, 16, 32], strides = [1, 1, 1]} : vector<4x16x32xf32> to vector<1x16x32xf32>
    %11 = vector.shape_cast %10 : vector<1x16x32xf32> to vector<16x32xf32>
    %c1 = arith.constant 1 : index
    %c0_6 = arith.constant 0 : index
    %c0_7 = arith.constant 0 : index
    %12 = vector.load %arg5[%c1, %c0_6, %c0_7] : memref<4x1x32xf32, #tpu.memory_space<vmem>>, vector<1x1x32xf32>
    %13 = vector.shape_cast %12 : vector<1x1x32xf32> to vector<1x32xf32>
    %14 = vector.broadcast %13 : vector<1x32xf32> to vector<16x32xf32>
    %15 = arith.mulf %11, %14 : vector<16x32xf32>
    %16 = arith.addf %7, %15 : vector<16x32xf32>
    %17 = vector.extract_strided_slice %1 {offsets = [1, 0, 0], sizes = [1, 16, 32], strides = [1, 1, 1]} : vector<4x16x32xf32> to vector<1x16x32xf32>
    %18 = vector.shape_cast %17 : vector<1x16x32xf32> to vector<16x32xf32>
    %19 = arith.maximumf %9, %18 : vector<16x32xf32>
    %20 = vector.extract_strided_slice %1 {offsets = [2, 0, 0], sizes = [1, 16, 32], strides = [1, 1, 1]} : vector<4x16x32xf32> to vector<1x16x32xf32>
    %21 = vector.shape_cast %20 : vector<1x16x32xf32> to vector<16x32xf32>
    %c2 = arith.constant 2 : index
    %c0_8 = arith.constant 0 : index
    %c0_9 = arith.constant 0 : index
    %22 = vector.load %arg5[%c2, %c0_8, %c0_9] : memref<4x1x32xf32, #tpu.memory_space<vmem>>, vector<1x1x32xf32>
    %23 = vector.shape_cast %22 : vector<1x1x32xf32> to vector<1x32xf32>
    %24 = vector.broadcast %23 : vector<1x32xf32> to vector<16x32xf32>
    %25 = arith.mulf %21, %24 : vector<16x32xf32>
    %26 = arith.addf %16, %25 : vector<16x32xf32>
    %27 = vector.extract_strided_slice %1 {offsets = [2, 0, 0], sizes = [1, 16, 32], strides = [1, 1, 1]} : vector<4x16x32xf32> to vector<1x16x32xf32>
    %28 = vector.shape_cast %27 : vector<1x16x32xf32> to vector<16x32xf32>
    %29 = arith.maximumf %19, %28 : vector<16x32xf32>
    %30 = vector.extract_strided_slice %1 {offsets = [3, 0, 0], sizes = [1, 16, 32], strides = [1, 1, 1]} : vector<4x16x32xf32> to vector<1x16x32xf32>
    %31 = vector.shape_cast %30 : vector<1x16x32xf32> to vector<16x32xf32>
    %c3 = arith.constant 3 : index
    %c0_10 = arith.constant 0 : index
    %c0_11 = arith.constant 0 : index
    %32 = vector.load %arg5[%c3, %c0_10, %c0_11] : memref<4x1x32xf32, #tpu.memory_space<vmem>>, vector<1x1x32xf32>
    %33 = vector.shape_cast %32 : vector<1x1x32xf32> to vector<1x32xf32>
    %34 = vector.broadcast %33 : vector<1x32xf32> to vector<16x32xf32>
    %35 = arith.mulf %31, %34 : vector<16x32xf32>
    %36 = arith.addf %26, %35 : vector<16x32xf32>
    %37 = vector.extract_strided_slice %1 {offsets = [3, 0, 0], sizes = [1, 16, 32], strides = [1, 1, 1]} : vector<4x16x32xf32> to vector<1x16x32xf32>
    %38 = vector.shape_cast %37 : vector<1x16x32xf32> to vector<16x32xf32>
    %39 = arith.maximumf %29, %38 : vector<16x32xf32>
    %c0_12 = arith.constant 0 : index
    %c0_13 = arith.constant 0 : index
    %40 = vector.load %arg6[%c0_12, %c0_13] : memref<1x32xf32, #tpu.memory_space<vmem>>, vector<1x32xf32>
    %c0_14 = arith.constant 0 : index
    %c0_15 = arith.constant 0 : index
    %41 = vector.load %arg7[%c0_14, %c0_15] : memref<1x32xf32, #tpu.memory_space<vmem>>, vector<1x32xf32>
    %cst = arith.constant dense<0.000000e+00> : vector<16xf32>
    %42 = vector.multi_reduction <add>, %36, %cst [1] : vector<16x32xf32> to vector<16xf32>
    %43 = vector.shape_cast %42 : vector<16xf32> to vector<16x1xf32>
    %cst_16 = arith.constant 3.200000e+01 : f32
    %44 = vector.broadcast %cst_16 : f32 to vector<16x1xf32>
    %45 = arith.divf %43, %44 : vector<16x1xf32>
    %46 = vector.broadcast %45 : vector<16x1xf32> to vector<16x32xf32>
    %47 = arith.subf %36, %46 : vector<16x32xf32>
    %48 = arith.mulf %47, %47 : vector<16x32xf32>
    %cst_17 = arith.constant dense<0.000000e+00> : vector<16xf32>
    %49 = vector.multi_reduction <add>, %48, %cst_17 [1] : vector<16x32xf32> to vector<16xf32>
    %50 = vector.shape_cast %49 : vector<16xf32> to vector<16x1xf32>
    %cst_18 = arith.constant 3.200000e+01 : f32
    %51 = vector.broadcast %cst_18 : f32 to vector<16x1xf32>
    %52 = arith.divf %50, %51 : vector<16x1xf32>
    %53 = vector.broadcast %45 : vector<16x1xf32> to vector<16x32xf32>
    %54 = arith.subf %36, %53 : vector<16x32xf32>
    %cst_19 = arith.constant 9.99999974E-6 : f32
    %55 = vector.broadcast %cst_19 : f32 to vector<16x1xf32>
    %56 = arith.addf %52, %55 : vector<16x1xf32>
    %57 = math.rsqrt %56 : vector<16x1xf32>
    %58 = vector.broadcast %57 : vector<16x1xf32> to vector<16x32xf32>
    %59 = arith.mulf %54, %58 : vector<16x32xf32>
    %60 = vector.broadcast %40 : vector<1x32xf32> to vector<16x32xf32>
    %61 = arith.mulf %59, %60 : vector<16x32xf32>
    %62 = vector.broadcast %41 : vector<1x32xf32> to vector<16x32xf32>
    %63 = arith.addf %61, %62 : vector<16x32xf32>
    %cst_20 = arith.constant dense<0.000000e+00> : vector<16xf32>
    %64 = vector.multi_reduction <add>, %39, %cst_20 [1] : vector<16x32xf32> to vector<16xf32>
    %65 = vector.shape_cast %64 : vector<16xf32> to vector<16x1xf32>
    %cst_21 = arith.constant 3.200000e+01 : f32
    %66 = vector.broadcast %cst_21 : f32 to vector<16x1xf32>
    %67 = arith.divf %65, %66 : vector<16x1xf32>
    %68 = vector.broadcast %67 : vector<16x1xf32> to vector<16x32xf32>
    %69 = arith.subf %39, %68 : vector<16x32xf32>
    %70 = arith.mulf %69, %69 : vector<16x32xf32>
    %cst_22 = arith.constant dense<0.000000e+00> : vector<16xf32>
    %71 = vector.multi_reduction <add>, %70, %cst_22 [1] : vector<16x32xf32> to vector<16xf32>
    %72 = vector.shape_cast %71 : vector<16xf32> to vector<16x1xf32>
    %cst_23 = arith.constant 3.200000e+01 : f32
    %73 = vector.broadcast %cst_23 : f32 to vector<16x1xf32>
    %74 = arith.divf %72, %73 : vector<16x1xf32>
    %75 = vector.broadcast %67 : vector<16x1xf32> to vector<16x32xf32>
    %76 = arith.subf %39, %75 : vector<16x32xf32>
    %cst_24 = arith.constant 9.99999974E-6 : f32
    %77 = vector.broadcast %cst_24 : f32 to vector<16x1xf32>
    %78 = arith.addf %74, %77 : vector<16x1xf32>
    %79 = math.rsqrt %78 : vector<16x1xf32>
    %80 = vector.broadcast %79 : vector<16x1xf32> to vector<16x32xf32>
    %81 = arith.mulf %76, %80 : vector<16x32xf32>
    %82 = vector.broadcast %40 : vector<1x32xf32> to vector<16x32xf32>
    %83 = arith.mulf %81, %82 : vector<16x32xf32>
    %84 = vector.broadcast %41 : vector<1x32xf32> to vector<16x32xf32>
    %85 = arith.addf %83, %84 : vector<16x32xf32>
    %c0_25 = arith.constant 0 : index
    %c0_26 = arith.constant 0 : index
    %c0_27 = arith.constant 0 : index
    %c0_28 = arith.constant 0 : index
    %86 = vector.load %arg3[%c0_25, %c0_26, %c0_27, %c0_28] : memref<1x4x16x8xf32, #tpu.memory_space<vmem>>, vector<1x4x16x8xf32>
    %87 = vector.shape_cast %86 : vector<1x4x16x8xf32> to vector<4x16x8xf32>
    %c0_29 = arith.constant 0 : index
    %c0_30 = arith.constant 0 : index
    %c0_31 = arith.constant 0 : index
    %c0_32 = arith.constant 0 : index
    %88 = vector.load %arg4[%c0_29, %c0_30, %c0_31, %c0_32] : memref<1x4x16x8xf32, #tpu.memory_space<vmem>>, vector<1x4x16x8xf32>
    %89 = vector.shape_cast %88 : vector<1x4x16x8xf32> to vector<4x16x8xf32>
    %90 = vector.shape_cast %63 : vector<16x32xf32> to vector<1x16x32xf32>
    %91 = vector.shape_cast %90 : vector<1x16x32xf32> to vector<1x16x32xf32>
    %92 = vector.broadcast %91 : vector<1x16x32xf32> to vector<4x16x32xf32>
    %93 = vector.shape_cast %85 : vector<16x32xf32> to vector<1x16x32xf32>
    %94 = vector.shape_cast %93 : vector<1x16x32xf32> to vector<1x16x32xf32>
    %95 = vector.broadcast %94 : vector<1x16x32xf32> to vector<4x16x32xf32>
    %c0_33 = arith.constant 0 : index
    %c0_34 = arith.constant 0 : index
    %c0_35 = arith.constant 0 : index
    %96 = vector.load %arg8[%c0_33, %c0_34, %c0_35] : memref<4x32x8xf32, #tpu.memory_space<vmem>>, vector<4x32x8xf32>
    "tpu.trace_start"() <{level = 10 : i32, message = "hlc,hcd->hld"}> : () -> ()
    %cst_36 = arith.constant dense<0.000000e+00> : vector<4x16x8xf32>
    %97 = tpu.matmul %92, %96, %cst_36 {dimension_numbers = #tpu.dot_dimension_numbers<[2], [1], [1], [2], [0, 0, 0, 1, 1, 2], [0], [0]>} : vector<4x16x32xf32>, vector<4x32x8xf32>, vector<4x16x8xf32> -> vector<4x16x8xf32>
    "tpu.trace_stop"() : () -> ()
    %c0_37 = arith.constant 0 : index
    %c0_38 = arith.constant 0 : index
    %c0_39 = arith.constant 0 : index
    %98 = vector.load %arg9[%c0_37, %c0_38, %c0_39] : memref<4x32x8xf32, #tpu.memory_space<vmem>>, vector<4x32x8xf32>
    "tpu.trace_start"() <{level = 10 : i32, message = "hlc,hcd->hld"}> : () -> ()
    %cst_40 = arith.constant dense<0.000000e+00> : vector<4x16x8xf32>
    %99 = tpu.matmul %95, %98, %cst_40 {dimension_numbers = #tpu.dot_dimension_numbers<[2], [1], [1], [2], [0, 0, 0, 1, 1, 2], [0], [0]>} : vector<4x16x32xf32>, vector<4x32x8xf32>, vector<4x16x8xf32> -> vector<4x16x8xf32>
    "tpu.trace_stop"() : () -> ()
    %c0_41 = arith.constant 0 : index
    %c0_42 = arith.constant 0 : index
    %c0_43 = arith.constant 0 : index
    %100 = vector.load %arg10[%c0_41, %c0_42, %c0_43] : memref<4x32x8xf32, #tpu.memory_space<vmem>>, vector<4x32x8xf32>
    "tpu.trace_start"() <{level = 10 : i32, message = "hlc,hcd->hld"}> : () -> ()
    %cst_44 = arith.constant dense<0.000000e+00> : vector<4x16x8xf32>
    %101 = tpu.matmul %95, %100, %cst_44 {dimension_numbers = #tpu.dot_dimension_numbers<[2], [1], [1], [2], [0, 0, 0, 1, 1, 2], [0], [0]>} : vector<4x16x32xf32>, vector<4x32x8xf32>, vector<4x16x8xf32> -> vector<4x16x8xf32>
    "tpu.trace_stop"() : () -> ()
    %102 = tpu.iota {dimensions = array<i32: 2>} : vector<4x16x8xi32>
    %c1_i32 = arith.constant 1 : i32
    %103 = vector.broadcast %c1_i32 : i32 to vector<4x16x8xi32>
    %104 = arith.andi %102, %103 : vector<4x16x8xi32>
    %c0_i32 = arith.constant 0 : i32
    %105 = vector.broadcast %c0_i32 : i32 to vector<4x16x8xi32>
    %106 = arith.cmpi eq, %104, %105 : vector<4x16x8xi32>
    %107 = vector.extract_strided_slice %97 {offsets = [0, 0, 1], sizes = [4, 16, 7], strides = [1, 1, 1]} : vector<4x16x8xf32> to vector<4x16x7xf32>
    %108 = vector.extract_strided_slice %97 {offsets = [0, 0, 0], sizes = [4, 16, 1], strides = [1, 1, 1]} : vector<4x16x8xf32> to vector<4x16x1xf32>
    %109 = tpu.concatenate %107, %108 in 2 : vector<4x16x7xf32>, vector<4x16x1xf32> -> vector<4x16x8xf32>
    %110 = vector.extract_strided_slice %97 {offsets = [0, 0, 7], sizes = [4, 16, 1], strides = [1, 1, 1]} : vector<4x16x8xf32> to vector<4x16x1xf32>
    %111 = vector.extract_strided_slice %97 {offsets = [0, 0, 0], sizes = [4, 16, 7], strides = [1, 1, 1]} : vector<4x16x8xf32> to vector<4x16x7xf32>
    %112 = tpu.concatenate %110, %111 in 2 : vector<4x16x1xf32>, vector<4x16x7xf32> -> vector<4x16x8xf32>
    %cst_45 = arith.constant 0.000000e+00 : f32
    %113 = vector.broadcast %cst_45 : f32 to vector<4x16x8xf32>
    %114 = arith.subf %113, %109 : vector<4x16x8xf32>
    %115 = arith.select %106, %114, %112 : vector<4x16x8xi1>, vector<4x16x8xf32>
    %116 = arith.mulf %97, %87 : vector<4x16x8xf32>
    %117 = arith.mulf %115, %89 : vector<4x16x8xf32>
    %118 = arith.addf %116, %117 : vector<4x16x8xf32>
    %119 = vector.extract_strided_slice %99 {offsets = [0, 0, 1], sizes = [4, 16, 7], strides = [1, 1, 1]} : vector<4x16x8xf32> to vector<4x16x7xf32>
    %120 = vector.extract_strided_slice %99 {offsets = [0, 0, 0], sizes = [4, 16, 1], strides = [1, 1, 1]} : vector<4x16x8xf32> to vector<4x16x1xf32>
    %121 = tpu.concatenate %119, %120 in 2 : vector<4x16x7xf32>, vector<4x16x1xf32> -> vector<4x16x8xf32>
    %122 = vector.extract_strided_slice %99 {offsets = [0, 0, 7], sizes = [4, 16, 1], strides = [1, 1, 1]} : vector<4x16x8xf32> to vector<4x16x1xf32>
    %123 = vector.extract_strided_slice %99 {offsets = [0, 0, 0], sizes = [4, 16, 7], strides = [1, 1, 1]} : vector<4x16x8xf32> to vector<4x16x7xf32>
    %124 = tpu.concatenate %122, %123 in 2 : vector<4x16x1xf32>, vector<4x16x7xf32> -> vector<4x16x8xf32>
    %cst_46 = arith.constant 0.000000e+00 : f32
    %125 = vector.broadcast %cst_46 : f32 to vector<4x16x8xf32>
    %126 = arith.subf %125, %121 : vector<4x16x8xf32>
    %127 = arith.select %106, %126, %124 : vector<4x16x8xi1>, vector<4x16x8xf32>
    %128 = arith.mulf %99, %87 : vector<4x16x8xf32>
    %129 = arith.mulf %127, %89 : vector<4x16x8xf32>
    %130 = arith.addf %128, %129 : vector<4x16x8xf32>
    "tpu.trace_start"() <{level = 10 : i32, message = "hld,hmd->hlm"}> : () -> ()
    %cst_47 = arith.constant dense<0.000000e+00> : vector<4x16x16xf32>
    %131 = tpu.matmul %118, %130, %cst_47 {dimension_numbers = #tpu.dot_dimension_numbers<[2], [2], [1], [1], [0, 0, 0, 1, 1, 1], [0], [0]>} : vector<4x16x8xf32>, vector<4x16x8xf32>, vector<4x16x16xf32> -> vector<4x16x16xf32>
    "tpu.trace_stop"() : () -> ()
    %cst_48 = arith.constant 0.353553385 : f32
    %132 = vector.broadcast %cst_48 : f32 to vector<4x16x16xf32>
    %133 = arith.mulf %131, %132 : vector<4x16x16xf32>
    %cst_49 = arith.constant dense<0xFF800000> : vector<4x16xf32>
    %134 = vector.multi_reduction <maximumf>, %133, %cst_49 [2] : vector<4x16x16xf32> to vector<4x16xf32>
    %135 = vector.shape_cast %134 : vector<4x16xf32> to vector<4x16x1xf32>
    %136 = vector.broadcast %135 : vector<4x16x1xf32> to vector<4x16x16xf32>
    %137 = arith.subf %133, %136 : vector<4x16x16xf32>
    %138 = math.exp %137 : vector<4x16x16xf32>
    %cst_50 = arith.constant dense<0.000000e+00> : vector<4x16xf32>
    %139 = vector.multi_reduction <add>, %138, %cst_50 [2] : vector<4x16x16xf32> to vector<4x16xf32>
    %140 = vector.shape_cast %139 : vector<4x16xf32> to vector<4x16x1xf32>
    %141 = tpu.reciprocal %140 {approx = true} : vector<4x16x1xf32> -> vector<4x16x1xf32>
    %142 = vector.broadcast %141 : vector<4x16x1xf32> to vector<4x16x16xf32>
    %143 = arith.mulf %138, %142 : vector<4x16x16xf32>
    "tpu.trace_start"() <{level = 10 : i32, message = "hlm,hmd->hld"}> : () -> ()
    %cst_51 = arith.constant dense<0.000000e+00> : vector<4x16x8xf32>
    %144 = tpu.matmul %143, %101, %cst_51 {dimension_numbers = #tpu.dot_dimension_numbers<[2], [1], [1], [2], [0, 0, 0, 1, 1, 2], [0], [0]>} : vector<4x16x16xf32>, vector<4x16x8xf32>, vector<4x16x8xf32> -> vector<4x16x8xf32>
    "tpu.trace_stop"() : () -> ()
    %145 = vector.extract_strided_slice %144 {offsets = [0, 0, 0], sizes = [1, 16, 8], strides = [1, 1, 1]} : vector<4x16x8xf32> to vector<1x16x8xf32>
    %146 = vector.shape_cast %145 : vector<1x16x8xf32> to vector<16x8xf32>
    %c0_52 = arith.constant 0 : index
    %c0_53 = arith.constant 0 : index
    %c0_54 = arith.constant 0 : index
    %147 = vector.load %arg11[%c0_52, %c0_53, %c0_54] : memref<4x8x32xf32, #tpu.memory_space<vmem>>, vector<1x8x32xf32>
    %148 = vector.shape_cast %147 : vector<1x8x32xf32> to vector<8x32xf32>
    %cst_55 = arith.constant dense<0.000000e+00> : vector<16x32xf32>
    %149 = tpu.matmul %146, %148, %cst_55 {dimension_numbers = #tpu.dot_dimension_numbers<[1], [0], [0], [1], [0, 0, 1, 1], [], []>} : vector<16x8xf32>, vector<8x32xf32>, vector<16x32xf32> -> vector<16x32xf32>
    %150 = vector.extract_strided_slice %144 {offsets = [1, 0, 0], sizes = [1, 16, 8], strides = [1, 1, 1]} : vector<4x16x8xf32> to vector<1x16x8xf32>
    %151 = vector.shape_cast %150 : vector<1x16x8xf32> to vector<16x8xf32>
    %c1_56 = arith.constant 1 : index
    %c0_57 = arith.constant 0 : index
    %c0_58 = arith.constant 0 : index
    %152 = vector.load %arg11[%c1_56, %c0_57, %c0_58] : memref<4x8x32xf32, #tpu.memory_space<vmem>>, vector<1x8x32xf32>
    %153 = vector.shape_cast %152 : vector<1x8x32xf32> to vector<8x32xf32>
    %cst_59 = arith.constant dense<0.000000e+00> : vector<16x32xf32>
    %154 = tpu.matmul %151, %153, %cst_59 {dimension_numbers = #tpu.dot_dimension_numbers<[1], [0], [0], [1], [0, 0, 1, 1], [], []>} : vector<16x8xf32>, vector<8x32xf32>, vector<16x32xf32> -> vector<16x32xf32>
    %155 = arith.addf %149, %154 : vector<16x32xf32>
    %156 = vector.extract_strided_slice %144 {offsets = [2, 0, 0], sizes = [1, 16, 8], strides = [1, 1, 1]} : vector<4x16x8xf32> to vector<1x16x8xf32>
    %157 = vector.shape_cast %156 : vector<1x16x8xf32> to vector<16x8xf32>
    %c2_60 = arith.constant 2 : index
    %c0_61 = arith.constant 0 : index
    %c0_62 = arith.constant 0 : index
    %158 = vector.load %arg11[%c2_60, %c0_61, %c0_62] : memref<4x8x32xf32, #tpu.memory_space<vmem>>, vector<1x8x32xf32>
    %159 = vector.shape_cast %158 : vector<1x8x32xf32> to vector<8x32xf32>
    %cst_63 = arith.constant dense<0.000000e+00> : vector<16x32xf32>
    %160 = tpu.matmul %157, %159, %cst_63 {dimension_numbers = #tpu.dot_dimension_numbers<[1], [0], [0], [1], [0, 0, 1, 1], [], []>} : vector<16x8xf32>, vector<8x32xf32>, vector<16x32xf32> -> vector<16x32xf32>
    %161 = arith.addf %155, %160 : vector<16x32xf32>
    %162 = vector.extract_strided_slice %144 {offsets = [3, 0, 0], sizes = [1, 16, 8], strides = [1, 1, 1]} : vector<4x16x8xf32> to vector<1x16x8xf32>
    %163 = vector.shape_cast %162 : vector<1x16x8xf32> to vector<16x8xf32>
    %c3_64 = arith.constant 3 : index
    %c0_65 = arith.constant 0 : index
    %c0_66 = arith.constant 0 : index
    %164 = vector.load %arg11[%c3_64, %c0_65, %c0_66] : memref<4x8x32xf32, #tpu.memory_space<vmem>>, vector<1x8x32xf32>
    %165 = vector.shape_cast %164 : vector<1x8x32xf32> to vector<8x32xf32>
    %cst_67 = arith.constant dense<0.000000e+00> : vector<16x32xf32>
    %166 = tpu.matmul %163, %165, %cst_67 {dimension_numbers = #tpu.dot_dimension_numbers<[1], [0], [0], [1], [0, 0, 1, 1], [], []>} : vector<16x8xf32>, vector<8x32xf32>, vector<16x32xf32> -> vector<16x32xf32>
    %167 = arith.addf %161, %166 : vector<16x32xf32>
    %c0_68 = arith.constant 0 : index
    %c0_69 = arith.constant 0 : index
    %168 = vector.load %arg12[%c0_68, %c0_69] : memref<8x4xf32, #tpu.memory_space<vmem>>, vector<8x4xf32>
    %169 = vector.extract_strided_slice %167 {offsets = [0, 0], sizes = [4, 32], strides = [1, 1]} : vector<16x32xf32> to vector<4x32xf32>
    %cst_70 = arith.constant dense<0.000000e+00> : vector<8x32xf32>
    %170 = tpu.matmul %168, %169, %cst_70 {dimension_numbers = #tpu.dot_dimension_numbers<[1], [0], [0], [1], [0, 0, 1, 1], [], []>} : vector<8x4xf32>, vector<4x32xf32>, vector<8x32xf32> -> vector<8x32xf32>
    %171 = vector.extract_strided_slice %167 {offsets = [4, 0], sizes = [4, 32], strides = [1, 1]} : vector<16x32xf32> to vector<4x32xf32>
    %cst_71 = arith.constant dense<0.000000e+00> : vector<8x32xf32>
    %172 = tpu.matmul %168, %171, %cst_71 {dimension_numbers = #tpu.dot_dimension_numbers<[1], [0], [0], [1], [0, 0, 1, 1], [], []>} : vector<8x4xf32>, vector<4x32xf32>, vector<8x32xf32> -> vector<8x32xf32>
    %173 = vector.extract_strided_slice %167 {offsets = [8, 0], sizes = [4, 32], strides = [1, 1]} : vector<16x32xf32> to vector<4x32xf32>
    %cst_72 = arith.constant dense<0.000000e+00> : vector<8x32xf32>
    %174 = tpu.matmul %168, %173, %cst_72 {dimension_numbers = #tpu.dot_dimension_numbers<[1], [0], [0], [1], [0, 0, 1, 1], [], []>} : vector<8x4xf32>, vector<4x32xf32>, vector<8x32xf32> -> vector<8x32xf32>
    %175 = vector.extract_strided_slice %167 {offsets = [12, 0], sizes = [4, 32], strides = [1, 1]} : vector<16x32xf32> to vector<4x32xf32>
    %cst_73 = arith.constant dense<0.000000e+00> : vector<8x32xf32>
    %176 = tpu.matmul %168, %175, %cst_73 {dimension_numbers = #tpu.dot_dimension_numbers<[1], [0], [0], [1], [0, 0, 1, 1], [], []>} : vector<8x4xf32>, vector<4x32xf32>, vector<8x32xf32> -> vector<8x32xf32>
    %cst_74 = arith.constant 1.000000e+00 : f32
    %177 = vector.broadcast %cst_74 : f32 to vector<8x32xf32>
    %178 = arith.mulf %170, %177 : vector<8x32xf32>
    %cst_75 = arith.constant 7.500000e-01 : f32
    %179 = vector.broadcast %cst_75 : f32 to vector<8x32xf32>
    %180 = arith.mulf %170, %179 : vector<8x32xf32>
    %cst_76 = arith.constant 2.500000e-01 : f32
    %181 = vector.broadcast %cst_76 : f32 to vector<8x32xf32>
    %182 = arith.mulf %172, %181 : vector<8x32xf32>
    %183 = arith.addf %180, %182 : vector<8x32xf32>
    %cst_77 = arith.constant 2.500000e-01 : f32
    %184 = vector.broadcast %cst_77 : f32 to vector<8x32xf32>
    %185 = arith.mulf %170, %184 : vector<8x32xf32>
    %cst_78 = arith.constant 7.500000e-01 : f32
    %186 = vector.broadcast %cst_78 : f32 to vector<8x32xf32>
    %187 = arith.mulf %172, %186 : vector<8x32xf32>
    %188 = arith.addf %185, %187 : vector<8x32xf32>
    %cst_79 = arith.constant 7.500000e-01 : f32
    %189 = vector.broadcast %cst_79 : f32 to vector<8x32xf32>
    %190 = arith.mulf %172, %189 : vector<8x32xf32>
    %cst_80 = arith.constant 2.500000e-01 : f32
    %191 = vector.broadcast %cst_80 : f32 to vector<8x32xf32>
    %192 = arith.mulf %174, %191 : vector<8x32xf32>
    %193 = arith.addf %190, %192 : vector<8x32xf32>
    %cst_81 = arith.constant 2.500000e-01 : f32
    %194 = vector.broadcast %cst_81 : f32 to vector<8x32xf32>
    %195 = arith.mulf %172, %194 : vector<8x32xf32>
    %cst_82 = arith.constant 7.500000e-01 : f32
    %196 = vector.broadcast %cst_82 : f32 to vector<8x32xf32>
    %197 = arith.mulf %174, %196 : vector<8x32xf32>
    %198 = arith.addf %195, %197 : vector<8x32xf32>
    %cst_83 = arith.constant 7.500000e-01 : f32
    %199 = vector.broadcast %cst_83 : f32 to vector<8x32xf32>
    %200 = arith.mulf %174, %199 : vector<8x32xf32>
    %cst_84 = arith.constant 2.500000e-01 : f32
    %201 = vector.broadcast %cst_84 : f32 to vector<8x32xf32>
    %202 = arith.mulf %176, %201 : vector<8x32xf32>
    %203 = arith.addf %200, %202 : vector<8x32xf32>
    %cst_85 = arith.constant 2.500000e-01 : f32
    %204 = vector.broadcast %cst_85 : f32 to vector<8x32xf32>
    %205 = arith.mulf %174, %204 : vector<8x32xf32>
    %cst_86 = arith.constant 7.500000e-01 : f32
    %206 = vector.broadcast %cst_86 : f32 to vector<8x32xf32>
    %207 = arith.mulf %176, %206 : vector<8x32xf32>
    %208 = arith.addf %205, %207 : vector<8x32xf32>
    %cst_87 = arith.constant 1.000000e+00 : f32
    %209 = vector.broadcast %cst_87 : f32 to vector<8x32xf32>
    %210 = arith.mulf %176, %209 : vector<8x32xf32>
    %211 = tpu.concatenate %178, %183, %188, %193, %198, %203, %208, %210 in 0 : vector<8x32xf32>, vector<8x32xf32>, vector<8x32xf32>, vector<8x32xf32>, vector<8x32xf32>, vector<8x32xf32>, vector<8x32xf32>, vector<8x32xf32> -> vector<64x32xf32>
    %c0_88 = arith.constant 0 : index
    %c0_89 = arith.constant 0 : index
    %c0_90 = arith.constant 0 : index
    %212 = vector.load %arg2[%c0_88, %c0_89, %c0_90] : memref<1x64x32xf32, #tpu.memory_space<vmem>>, vector<1x64x32xf32>
    %213 = vector.shape_cast %212 : vector<1x64x32xf32> to vector<64x32xf32>
    %c0_91 = arith.constant 0 : index
    %c0_92 = arith.constant 0 : index
    %214 = vector.load %arg13[%c0_91, %c0_92] : memref<32x64xf32, #tpu.memory_space<vmem>>, vector<32x64xf32>
    %cst_93 = arith.constant dense<0.000000e+00> : vector<64x64xf32>
    %215 = tpu.matmul %213, %214, %cst_93 {dimension_numbers = #tpu.dot_dimension_numbers<[1], [0], [0], [1], [0, 0, 1, 1], [], []>} : vector<64x32xf32>, vector<32x64xf32>, vector<64x64xf32> -> vector<64x64xf32>
    %c0_94 = arith.constant 0 : index
    %c0_95 = arith.constant 0 : index
    %216 = vector.load %arg14[%c0_94, %c0_95] : memref<32x64xf32, #tpu.memory_space<vmem>>, vector<32x64xf32>
    %cst_96 = arith.constant dense<0.000000e+00> : vector<64x64xf32>
    %217 = tpu.matmul %211, %216, %cst_96 {dimension_numbers = #tpu.dot_dimension_numbers<[1], [0], [0], [1], [0, 0, 1, 1], [], []>} : vector<64x32xf32>, vector<32x64xf32>, vector<64x64xf32> -> vector<64x64xf32>
    %218 = arith.addf %215, %217 : vector<64x64xf32>
    %cst_97 = arith.constant 0.000000e+00 : f32
    %219 = vector.broadcast %cst_97 : f32 to vector<64x64xf32>
    %220 = arith.cmpf oge, %218, %219 : vector<64x64xf32>
    %cst_98 = arith.constant 0.00999999977 : f32
    %221 = vector.broadcast %cst_98 : f32 to vector<64x64xf32>
    %222 = arith.mulf %221, %218 : vector<64x64xf32>
    %223 = arith.select %220, %218, %222 : vector<64x64xi1>, vector<64x64xf32>
    %c0_99 = arith.constant 0 : index
    %c0_100 = arith.constant 0 : index
    %224 = vector.load %arg15[%c0_99, %c0_100] : memref<64x32xf32, #tpu.memory_space<vmem>>, vector<64x32xf32>
    %cst_101 = arith.constant dense<0.000000e+00> : vector<64x32xf32>
    %225 = tpu.matmul %223, %224, %cst_101 {dimension_numbers = #tpu.dot_dimension_numbers<[1], [0], [0], [1], [0, 0, 1, 1], [], []>} : vector<64x64xf32>, vector<64x32xf32>, vector<64x32xf32> -> vector<64x32xf32>
    %c0_102 = arith.constant 0 : index
    %c0_103 = arith.constant 0 : index
    %226 = vector.load %arg16[%c0_102, %c0_103] : memref<1x32xf32, #tpu.memory_space<vmem>>, vector<1x32xf32>
    %c0_104 = arith.constant 0 : index
    %c0_105 = arith.constant 0 : index
    %227 = vector.load %arg17[%c0_104, %c0_105] : memref<1x32xf32, #tpu.memory_space<vmem>>, vector<1x32xf32>
    %cst_106 = arith.constant dense<0.000000e+00> : vector<64xf32>
    %228 = vector.multi_reduction <add>, %225, %cst_106 [1] : vector<64x32xf32> to vector<64xf32>
    %229 = vector.shape_cast %228 : vector<64xf32> to vector<64x1xf32>
    %cst_107 = arith.constant 3.200000e+01 : f32
    %230 = vector.broadcast %cst_107 : f32 to vector<64x1xf32>
    %231 = arith.divf %229, %230 : vector<64x1xf32>
    %232 = vector.broadcast %231 : vector<64x1xf32> to vector<64x32xf32>
    %233 = arith.subf %225, %232 : vector<64x32xf32>
    %234 = arith.mulf %233, %233 : vector<64x32xf32>
    %cst_108 = arith.constant dense<0.000000e+00> : vector<64xf32>
    %235 = vector.multi_reduction <add>, %234, %cst_108 [1] : vector<64x32xf32> to vector<64xf32>
    %236 = vector.shape_cast %235 : vector<64xf32> to vector<64x1xf32>
    %cst_109 = arith.constant 3.200000e+01 : f32
    %237 = vector.broadcast %cst_109 : f32 to vector<64x1xf32>
    %238 = arith.divf %236, %237 : vector<64x1xf32>
    %239 = vector.broadcast %231 : vector<64x1xf32> to vector<64x32xf32>
    %240 = arith.subf %225, %239 : vector<64x32xf32>
    %cst_110 = arith.constant 9.99999974E-6 : f32
    %241 = vector.broadcast %cst_110 : f32 to vector<64x1xf32>
    %242 = arith.addf %238, %241 : vector<64x1xf32>
    %243 = math.rsqrt %242 : vector<64x1xf32>
    %244 = vector.broadcast %243 : vector<64x1xf32> to vector<64x32xf32>
    %245 = arith.mulf %240, %244 : vector<64x32xf32>
    %246 = vector.broadcast %226 : vector<1x32xf32> to vector<64x32xf32>
    %247 = arith.mulf %245, %246 : vector<64x32xf32>
    %248 = vector.broadcast %227 : vector<1x32xf32> to vector<64x32xf32>
    %249 = arith.addf %247, %248 : vector<64x32xf32>
    %250 = arith.addf %213, %249 : vector<64x32xf32>
    %c0_111 = arith.constant 0 : index
    %c0_112 = arith.constant 0 : index
    %c0_113 = arith.constant 0 : index
    %251 = vector.load %arg18[%c0_111, %c0_112, %c0_113] : memref<1x64x32xf32, #tpu.memory_space<vmem>>, vector<1x64x32xf32>
    %252 = vector.shape_cast %251 : vector<1x64x32xf32> to vector<64x32xf32>
    %253 = vector.shape_cast %250 : vector<64x32xf32> to vector<1x64x32xf32>
    tpu.vector_store %arg18[%c0_111, %c0_112, %c0_113], %253 {strides = array<i32>} : memref<1x64x32xf32, #tpu.memory_space<vmem>>, vector<1x64x32xf32>,
    return
  }
  func.func @transform_0(%arg0: i32) -> (i32, i32, i32, i32) {
    %c0_i32 = arith.constant 0 : i32
    %c0_i32_0 = arith.constant 0 : i32
    %c0_i32_1 = arith.constant 0 : i32
    %c0_i32_2 = arith.constant 0 : i32
    return %arg0, %c0_i32, %c0_i32_0, %c0_i32_1 : i32, i32, i32, i32
  }
  func.func @transform_1(%arg0: i32) -> (i32, i32, i32) {
    %c0_i32 = arith.constant 0 : i32
    %c0_i32_0 = arith.constant 0 : i32
    %c0_i32_1 = arith.constant 0 : i32
    return %arg0, %c0_i32, %c0_i32_0 : i32, i32, i32
  }
  func.func @transform_2(%arg0: i32) -> (i32, i32, i32, i32) {
    %c0_i32 = arith.constant 0 : i32
    %c0_i32_0 = arith.constant 0 : i32
    %c0_i32_1 = arith.constant 0 : i32
    %c0_i32_2 = arith.constant 0 : i32
    return %arg0, %c0_i32, %c0_i32_0, %c0_i32_1 : i32, i32, i32, i32
  }
  func.func @transform_3(%arg0: i32) -> (i32, i32, i32, i32) {
    %c0_i32 = arith.constant 0 : i32
    %c0_i32_0 = arith.constant 0 : i32
    %c0_i32_1 = arith.constant 0 : i32
    %c0_i32_2 = arith.constant 0 : i32
    return %arg0, %c0_i32, %c0_i32_0, %c0_i32_1 : i32, i32, i32, i32
  }
  func.func @transform_4(%arg0: i32) -> (i32, i32, i32) {
    %c0_i32 = arith.constant 0 : i32
    %c0_i32_0 = arith.constant 0 : i32
    %c0_i32_1 = arith.constant 0 : i32
    %c0_i32_2 = arith.constant 0 : i32
    return %c0_i32, %c0_i32_0, %c0_i32_1 : i32, i32, i32
  }
  func.func @transform_5(%arg0: i32) -> (i32, i32) {
    %c0_i32 = arith.constant 0 : i32
    %c0_i32_0 = arith.constant 0 : i32
    %c0_i32_1 = arith.constant 0 : i32
    return %c0_i32, %c0_i32_0 : i32, i32
  }
  func.func @transform_6(%arg0: i32) -> (i32, i32) {
    %c0_i32 = arith.constant 0 : i32
    %c0_i32_0 = arith.constant 0 : i32
    %c0_i32_1 = arith.constant 0 : i32
    return %c0_i32, %c0_i32_0 : i32, i32
  }
  func.func @transform_7(%arg0: i32) -> (i32, i32, i32) {
    %c0_i32 = arith.constant 0 : i32
    %c0_i32_0 = arith.constant 0 : i32
    %c0_i32_1 = arith.constant 0 : i32
    %c0_i32_2 = arith.constant 0 : i32
    return %c0_i32, %c0_i32_0, %c0_i32_1 : i32, i32, i32
  }
  func.func @transform_8(%arg0: i32) -> (i32, i32, i32) {
    %c0_i32 = arith.constant 0 : i32
    %c0_i32_0 = arith.constant 0 : i32
    %c0_i32_1 = arith.constant 0 : i32
    %c0_i32_2 = arith.constant 0 : i32
    return %c0_i32, %c0_i32_0, %c0_i32_1 : i32, i32, i32
  }
  func.func @transform_9(%arg0: i32) -> (i32, i32, i32) {
    %c0_i32 = arith.constant 0 : i32
    %c0_i32_0 = arith.constant 0 : i32
    %c0_i32_1 = arith.constant 0 : i32
    %c0_i32_2 = arith.constant 0 : i32
    return %c0_i32, %c0_i32_0, %c0_i32_1 : i32, i32, i32
  }
  func.func @transform_10(%arg0: i32) -> (i32, i32, i32) {
    %c0_i32 = arith.constant 0 : i32
    %c0_i32_0 = arith.constant 0 : i32
    %c0_i32_1 = arith.constant 0 : i32
    %c0_i32_2 = arith.constant 0 : i32
    return %c0_i32, %c0_i32_0, %c0_i32_1 : i32, i32, i32
  }
  func.func @transform_11(%arg0: i32) -> (i32, i32) {
    %c0_i32 = arith.constant 0 : i32
    %c0_i32_0 = arith.constant 0 : i32
    %c0_i32_1 = arith.constant 0 : i32
    return %c0_i32, %c0_i32_0 : i32, i32
  }
  func.func @transform_12(%arg0: i32) -> (i32, i32) {
    %c0_i32 = arith.constant 0 : i32
    %c0_i32_0 = arith.constant 0 : i32
    %c0_i32_1 = arith.constant 0 : i32
    return %c0_i32, %c0_i32_0 : i32, i32
  }
  func.func @transform_13(%arg0: i32) -> (i32, i32) {
    %c0_i32 = arith.constant 0 : i32
    %c0_i32_0 = arith.constant 0 : i32
    %c0_i32_1 = arith.constant 0 : i32
    return %c0_i32, %c0_i32_0 : i32, i32
  }
  func.func @transform_14(%arg0: i32) -> (i32, i32) {
    %c0_i32 = arith.constant 0 : i32
    %c0_i32_0 = arith.constant 0 : i32
    %c0_i32_1 = arith.constant 0 : i32
    return %c0_i32, %c0_i32_0 : i32, i32
  }
  func.func @transform_15(%arg0: i32) -> (i32, i32) {
    %c0_i32 = arith.constant 0 : i32
    %c0_i32_0 = arith.constant 0 : i32
    %c0_i32_1 = arith.constant 0 : i32
    return %c0_i32, %c0_i32_0 : i32, i32
  }
  func.func @transform_16(%arg0: i32) -> (i32, i32) {
    %c0_i32 = arith.constant 0 : i32
    %c0_i32_0 = arith.constant 0 : i32
    %c0_i32_1 = arith.constant 0 : i32
    return %c0_i32, %c0_i32_0 : i32, i32
  }
  func.func @transform_17(%arg0: i32) -> (i32, i32, i32) {
    %c0_i32 = arith.constant 0 : i32
    %c0_i32_0 = arith.constant 0 : i32
    %c0_i32_1 = arith.constant 0 : i32
    return %arg0, %c0_i32, %c0_i32_0 : i32, i32, i32
  }
}

</mosaic_0001>

<llo_original>
// kernel: tpu_custom_call.1
$region0: #{tpu_custom_call.1}
  #allocation0 [shape = 'u32[]', space=smem, size = 0x4, offset = 0x4, fixed_abs, tag = 'smem constant byte address 0x4 - core index']
  #allocation1 [shape = 'u32[144,128]{1,0:T(1,128)}', space=vmem, size = 0x12000, scoped, tag = 'internal scratch']
  %s0 = inlined_call_operand.vmem [shape: f32[2,4,16,32], index: 0, kind: input, shape index: {}]
  %s1 = inlined_call_operand.vmem [shape: f32[2,64,32], index: 1, kind: input, shape index: {}]
  %s2 = inlined_call_operand.vmem [shape: f32[2,4,16,8], index: 2, kind: input, shape index: {}]
  %s3 = inlined_call_operand.vmem [shape: f32[2,4,16,8], index: 3, kind: input, shape index: {}]
  %s4 = inlined_call_operand.vmem [shape: f32[4,1,32], index: 4, kind: input, shape index: {}]
  %s5 = inlined_call_operand.vmem [shape: f32[1,32], index: 5, kind: input, shape index: {}]
  %s6 = inlined_call_operand.vmem [shape: f32[1,32], index: 6, kind: input, shape index: {}]
  %s7 = inlined_call_operand.vmem [shape: f32[4,32,8], index: 7, kind: input, shape index: {}]
  %s8 = inlined_call_operand.vmem [shape: f32[4,32,8], index: 8, kind: input, shape index: {}]
  %s9 = inlined_call_operand.vmem [shape: f32[4,32,8], index: 9, kind: input, shape index: {}]
  %s10 = inlined_call_operand.vmem [shape: f32[4,8,32], index: 10, kind: input, shape index: {}]
  %s11 = inlined_call_operand.vmem [shape: f32[8,4], index: 11, kind: input, shape index: {}]
  %s12 = inlined_call_operand.vmem [shape: f32[32,64], index: 12, kind: input, shape index: {}]
  %s13 = inlined_call_operand.vmem [shape: f32[32,64], index: 13, kind: input, shape index: {}]
  %s14 = inlined_call_operand.vmem [shape: f32[64,32], index: 14, kind: input, shape index: {}]
  %s15 = inlined_call_operand.vmem [shape: f32[1,32], index: 15, kind: input, shape index: {}]
  %s16 = inlined_call_operand.vmem [shape: f32[1,32], index: 16, kind: input, shape index: {}]
  %s17 = inlined_call_operand.vmem [shape: f32[2,64,32], index: 17, kind: output, shape index: {}]
  %s18 = sld [smem:[#allocation0]]
  $region101: #{tpu_custom_call.1} parent=0
    _
  %s20 = ssub.s32 1, %s18
  %s21 = scalar_select 0, %s20, %s18
  loop: start=0, step=1, limit=4
  $region2: #{tpu_custom_call.1} parent=0 // loop_pre_header
    _
  $region3: #{tpu_custom_call.1} parent=0 // loop_header
    %s23 = sphi 0, %s27
    %p24 = scmp.ge.s32.totalorder %s23, 4
    %s33 = sphi 0, %s35
    %s36 = sphi 0, %s33
    %s37 = sphi 0, %s36
    %s53 = sphi 0, %s37
    %s59 = sphi 0, %s61
    %s62 = sphi 0, %s59
    %s63 = sphi 0, %s62
    %s79 = sphi 0, %s63
    %s85 = sphi 0, %s87
    %s88 = sphi 0, %s85
    %s89 = sphi 0, %s88
    %s105 = sphi 0, %s89
    %s111 = sphi 0, %s113
    %s114 = sphi 0, %s111
    %s115 = sphi 0, %s114
    %s131 = sphi 0, %s115
    %s135 = sphi 0, %s135
    %s137 = sphi 0, %s135
    %s138 = sphi 0, %s137
    %s152 = sphi 0, %s138
    %s156 = sphi 0, %s156
    %s158 = sphi 0, %s156
    %s159 = sphi 0, %s158
    %s173 = sphi 0, %s159
    %s177 = sphi 0, %s177
    %s179 = sphi 0, %s177
    %s180 = sphi 0, %s179
    %s194 = sphi 0, %s180
    %s198 = sphi 0, %s198
    %s200 = sphi 0, %s198
    %s201 = sphi 0, %s200
    %s215 = sphi 0, %s201
    %s219 = sphi 0, %s219
    %s221 = sphi 0, %s219
    %s222 = sphi 0, %s221
    %s236 = sphi 0, %s222
    %s240 = sphi 0, %s240
    %s242 = sphi 0, %s240
    %s243 = sphi 0, %s242
    %s257 = sphi 0, %s243
    %s261 = sphi 0, %s261
    %s263 = sphi 0, %s261
    %s264 = sphi 0, %s263
    %s278 = sphi 0, %s264
    %s282 = sphi 0, %s282
    %s284 = sphi 0, %s282
    %s285 = sphi 0, %s284
    %s299 = sphi 0, %s285
    %s303 = sphi 0, %s303
    %s305 = sphi 0, %s303
    %s306 = sphi 0, %s305
    %s320 = sphi 0, %s306
    %s324 = sphi 0, %s324
    %s326 = sphi 0, %s324
    %s327 = sphi 0, %s326
    %s341 = sphi 0, %s327
    %s345 = sphi 0, %s345
    %s347 = sphi 0, %s345
    %s348 = sphi 0, %s347
    %s362 = sphi 0, %s348
    %s366 = sphi 0, %s366
    %s368 = sphi 0, %s366
    %s369 = sphi 0, %s368
    %s383 = sphi 0, %s369
    %s387 = sphi 0, %s387
    %s389 = sphi 0, %s387
    %s390 = sphi 0, %s389
    %s404 = sphi 0, %s390
    %s410 = sphi 0, %s412
    %s413 = sphi 0, %s410
    %s414 = sphi 0, %s413
    %s430 = sphi 0, %s414
  $region4: #{tpu_custom_call.1} parent=0 // loop_header_branch
    %26 = sbr.rel (%p24) target = $region8
  $region5: #{tpu_custom_call.1} parent=0 // loop_body
    %s28 = ssub.s32 %s23, 1
    %s29 = ssub.s32 %s23, 2
    %s30 = sadd.s32 %s23, 1
    %s31 = ssub.s32 %s23, %s30
    %p32 = scmp.eq.s32.totalorder %s31, 0
    %s34 = sadd.s32 %s33, 1
    %s35 = scalar_select %p32, %s33, %s34
    %p38 = pneg %p32
    %p39 = scmp.eq.s32.totalorder %s23, 1
    %p40 = por %p38, %p39
    %p41 = scmp.ne.s32.totalorder %s33, %s36
    %p42 = scmp.eq.s32.totalorder %s23, 0
    %p43 = por %p41, %p42
    %p44 = scmp.ne.s32.totalorder %s33, %s36
    %p45 = scmp.eq.s32.totalorder %s28, 1
    %p46 = por %p44, %p45
    %p47 = scmp.ne.s32.totalorder %s36, %s37
    %p48 = scmp.eq.s32.totalorder %s28, 0
    %p49 = por %p47, %p48
    %p50 = scmp.ne.s32.totalorder %s36, %s37
    %p51 = scmp.eq.s32.totalorder %s29, 1
    %p52 = por %p50, %p51
    %p54 = scmp.ne.s32.totalorder %s37, %s53
    %p55 = scmp.eq.s32.totalorder %s29, 0
    %p56 = por %p54, %p55
    %s57 = ssub.s32 %s23, %s30
    %p58 = scmp.eq.s32.totalorder %s57, 0
    %s60 = sadd.s32 %s59, 1
    %s61 = scalar_select %p58, %s59, %s60
    %p64 = pneg %p58
    %p65 = scmp.eq.s32.totalorder %s23, 1
    %p66 = por %p64, %p65
    %p67 = scmp.ne.s32.totalorder %s59, %s62
    %p68 = scmp.eq.s32.totalorder %s23, 0
    %p69 = por %p67, %p68
    %p70 = scmp.ne.s32.totalorder %s59, %s62
    %p71 = scmp.eq.s32.totalorder %s28, 1
    %p72 = por %p70, %p71
    %p73 = scmp.ne.s32.totalorder %s62, %s63
    %p74 = scmp.eq.s32.totalorder %s28, 0
    %p75 = por %p73, %p74
    %p76 = scmp.ne.s32.totalorder %s62, %s63
    %p77 = scmp.eq.s32.totalorder %s29, 1
    %p78 = por %p76, %p77
    %p80 = scmp.ne.s32.totalorder %s63, %s79
    %p81 = scmp.eq.s32.totalorder %s29, 0
    %p82 = por %p80, %p81
    %s83 = ssub.s32 %s23, %s30
    %p84 = scmp.eq.s32.totalorder %s83, 0
    %s86 = sadd.s32 %s85, 1
    %s87 = scalar_select %p84, %s85, %s86
    %p90 = pneg %p84
    %p91 = scmp.eq.s32.totalorder %s23, 1
    %p92 = por %p90, %p91
    %p93 = scmp.ne.s32.totalorder %s85, %s88
    %p94 = scmp.eq.s32.totalorder %s23, 0
    %p95 = por %p93, %p94
    %p96 = scmp.ne.s32.totalorder %s85, %s88
    %p97 = scmp.eq.s32.totalorder %s28, 1
    %p98 = por %p96, %p97
    %p99 = scmp.ne.s32.totalorder %s88, %s89
    %p100 = scmp.eq.s32.totalorder %s28, 0
    %p101 = por %p99, %p100
    %p102 = scmp.ne.s32.totalorder %s88, %s89
    %p103 = scmp.eq.s32.totalorder %s29, 1
    %p104 = por %p102, %p103
    %p106 = scmp.ne.s32.totalorder %s89, %s105
    %p107 = scmp.eq.s32.totalorder %s29, 0
    %p108 = por %p106, %p107
    %s109 = ssub.s32 %s23, %s30
    %p110 = scmp.eq.s32.totalorder %s109, 0
    %s112 = sadd.s32 %s111, 1
    %s113 = scalar_select %p110, %s111, %s112
    %p116 = pneg %p110
    %p117 = scmp.eq.s32.totalorder %s23, 1
    %p118 = por %p116, %p117
    %p119 = scmp.ne.s32.totalorder %s111, %s114
    %p120 = scmp.eq.s32.totalorder %s23, 0
    %p121 = por %p119, %p120
    %p122 = scmp.ne.s32.totalorder %s111, %s114
    %p123 = scmp.eq.s32.totalorder %s28, 1
    %p124 = por %p122, %p123
    %p125 = scmp.ne.s32.totalorder %s114, %s115
    %p126 = scmp.eq.s32.totalorder %s28, 0
    %p127 = por %p125, %p126
    %p128 = scmp.ne.s32.totalorder %s114, %s115
    %p129 = scmp.eq.s32.totalorder %s29, 1
    %p130 = por %p128, %p129
    %p132 = scmp.ne.s32.totalorder %s115, %s131
    %p133 = scmp.eq.s32.totalorder %s29, 0
    %p134 = por %p132, %p133
    %s136 = sadd.s32 %s135, 1
    %p139 = scmp.eq.s32.totalorder %s23, 1
    %p140 = scmp.ne.s32.totalorder %s135, %s137
    %p141 = scmp.eq.s32.totalorder %s23, 0
    %p142 = por %p140, %p141
    %p143 = scmp.ne.s32.totalorder %s135, %s137
    %p144 = scmp.eq.s32.totalorder %s28, 1
    %p145 = por %p143, %p144
    %p146 = scmp.ne.s32.totalorder %s137, %s138
    %p147 = scmp.eq.s32.totalorder %s28, 0
    %p148 = por %p146, %p147
    %p149 = scmp.ne.s32.totalorder %s137, %s138
    %p150 = scmp.eq.s32.totalorder %s29, 1
    %p151 = por %p149, %p150
    %p153 = scmp.ne.s32.totalorder %s138, %s152
    %p154 = scmp.eq.s32.totalorder %s29, 0
    %p155 = por %p153, %p154
    %s157 = sadd.s32 %s156, 1
    %p160 = scmp.eq.s32.totalorder %s23, 1
    %p161 = scmp.ne.s32.totalorder %s156, %s158
    %p162 = scmp.eq.s32.totalorder %s23, 0
    %p163 = por %p161, %p162
    %p164 = scmp.ne.s32.totalorder %s156, %s158
    %p165 = scmp.eq.s32.totalorder %s28, 1
    %p166 = por %p164, %p165
    %p167 = scmp.ne.s32.totalorder %s158, %s159
    %p168 = scmp.eq.s32.totalorder %s28, 0
    %p169 = por %p167, %p168
    %p170 = scmp.ne.s32.totalorder %s158, %s159
    %p171 = scmp.eq.s32.totalorder %s29, 1
    %p172 = por %p170, %p171
    %p174 = scmp.ne.s32.totalorder %s159, %s173
    %p175 = scmp.eq.s32.totalorder %s29, 0
    %p176 = por %p174, %p175
    %s178 = sadd.s32 %s177, 1
    %p181 = scmp.eq.s32.totalorder %s23, 1
    %p182 = scmp.ne.s32.totalorder %s177, %s179
    %p183 = scmp.eq.s32.totalorder %s23, 0
    %p184 = por %p182, %p183
    %p185 = scmp.ne.s32.totalorder %s177, %s179
    %p186 = scmp.eq.s32.totalorder %s28, 1
    %p187 = por %p185, %p186
    %p188 = scmp.ne.s32.totalorder %s179, %s180
    %p189 = scmp.eq.s32.totalorder %s28, 0
    %p190 = por %p188, %p189
    %p191 = scmp.ne.s32.totalorder %s179, %s180
    %p192 = scmp.eq.s32.totalorder %s29, 1
    %p193 = por %p191, %p192
    %p195 = scmp.ne.s32.totalorder %s180, %s194
    %p196 = scmp.eq.s32.totalorder %s29, 0
    %p197 = por %p195, %p196
    %s199 = sadd.s32 %s198, 1
    %p202 = scmp.eq.s32.totalorder %s23, 1
    %p203 = scmp.ne.s32.totalorder %s198, %s200
    %p204 = scmp.eq.s32.totalorder %s23, 0
    %p205 = por %p203, %p204
    %p206 = scmp.ne.s32.totalorder %s198, %s200
    %p207 = scmp.eq.s32.totalorder %s28, 1
    %p208 = por %p206, %p207
    %p209 = scmp.ne.s32.totalorder %s200, %s201
    %p210 = scmp.eq.s32.totalorder %s28, 0
    %p211 = por %p209, %p210
    %p212 = scmp.ne.s32.totalorder %s200, %s201
    %p213 = scmp.eq.s32.totalorder %s29, 1
    %p214 = por %p212, %p213
    %p216 = scmp.ne.s32.totalorder %s201, %s215
    %p217 = scmp.eq.s32.totalorder %s29, 0
    %p218 = por %p216, %p217
    %s220 = sadd.s32 %s219, 1
    %p223 = scmp.eq.s32.totalorder %s23, 1
    %p224 = scmp.ne.s32.totalorder %s219, %s221
    %p225 = scmp.eq.s32.totalorder %s23, 0
    %p226 = por %p224, %p225
    %p227 = scmp.ne.s32.totalorder %s219, %s221
    %p228 = scmp.eq.s32.totalorder %s28, 1
    %p229 = por %p227, %p228
    %p230 = scmp.ne.s32.totalorder %s221, %s222
    %p231 = scmp.eq.s32.totalorder %s28, 0
    %p232 = por %p230, %p231
    %p233 = scmp.ne.s32.totalorder %s221, %s222
    %p234 = scmp.eq.s32.totalorder %s29, 1
    %p235 = por %p233, %p234
    %p237 = scmp.ne.s32.totalorder %s222, %s236
    %p238 = scmp.eq.s32.totalorder %s29, 0
    %p239 = por %p237, %p238
    %s241 = sadd.s32 %s240, 1
    %p244 = scmp.eq.s32.totalorder %s23, 1
    %p245 = scmp.ne.s32.totalorder %s240, %s242
    %p246 = scmp.eq.s32.totalorder %s23, 0
    %p247 = por %p245, %p246
    %p248 = scmp.ne.s32.totalorder %s240, %s242
    %p249 = scmp.eq.s32.totalorder %s28, 1
    %p250 = por %p248, %p249
    %p251 = scmp.ne.s32.totalorder %s242, %s243
    %p252 = scmp.eq.s32.totalorder %s28, 0
    %p253 = por %p251, %p252
    %p254 = scmp.ne.s32.totalorder %s242, %s243
    %p255 = scmp.eq.s32.totalorder %s29, 1
    %p256 = por %p254, %p255
    %p258 = scmp.ne.s32.totalorder %s243, %s257
    %p259 = scmp.eq.s32.totalorder %s29, 0
    %p260 = por %p258, %p259
    %s262 = sadd.s32 %s261, 1
    %p265 = scmp.eq.s32.totalorder %s23, 1
    %p266 = scmp.ne.s32.totalorder %s261, %s263
    %p267 = scmp.eq.s32.totalorder %s23, 0
    %p268 = por %p266, %p267
    %p269 = scmp.ne.s32.totalorder %s261, %s263
    %p270 = scmp.eq.s32.totalorder %s28, 1
    %p271 = por %p269, %p270
    %p272 = scmp.ne.s32.totalorder %s263, %s264
    %p273 = scmp.eq.s32.totalorder %s28, 0
    %p274 = por %p272, %p273
    %p275 = scmp.ne.s32.totalorder %s263, %s264
    %p276 = scmp.eq.s32.totalorder %s29, 1
    %p277 = por %p275, %p276
    %p279 = scmp.ne.s32.totalorder %s264, %s278
    %p280 = scmp.eq.s32.totalorder %s29, 0
    %p281 = por %p279, %p280
    %s283 = sadd.s32 %s282, 1
    %p286 = scmp.eq.s32.totalorder %s23, 1
    %p287 = scmp.ne.s32.totalorder %s282, %s284
    %p288 = scmp.eq.s32.totalorder %s23, 0
    %p289 = por %p287, %p288
    %p290 = scmp.ne.s32.totalorder %s282, %s284
    %p291 = scmp.eq.s32.totalorder %s28, 1
    %p292 = por %p290, %p291
    %p293 = scmp.ne.s32.totalorder %s284, %s285
    %p294 = scmp.eq.s32.totalorder %s28, 0
    %p295 = por %p293, %p294
    %p296 = scmp.ne.s32.totalorder %s284, %s285
    %p297 = scmp.eq.s32.totalorder %s29, 1
    %p298 = por %p296, %p297
    %p300 = scmp.ne.s32.totalorder %s285, %s299
    %p301 = scmp.eq.s32.totalorder %s29, 0
    %p302 = por %p300, %p301
    %s304 = sadd.s32 %s303, 1
    %p307 = scmp.eq.s32.totalorder %s23, 1
    %p308 = scmp.ne.s32.totalorder %s303, %s305
    %p309 = scmp.eq.s32.totalorder %s23, 0
    %p310 = por %p308, %p309
    %p311 = scmp.ne.s32.totalorder %s303, %s305
    %p312 = scmp.eq.s32.totalorder %s28, 1
    %p313 = por %p311, %p312
    %p314 = scmp.ne.s32.totalorder %s305, %s306
    %p315 = scmp.eq.s32.totalorder %s28, 0
    %p316 = por %p314, %p315
    %p317 = scmp.ne.s32.totalorder %s305, %s306
    %p318 = scmp.eq.s32.totalorder %s29, 1
    %p319 = por %p317, %p318
    %p321 = scmp.ne.s32.totalorder %s306, %s320
    %p322 = scmp.eq.s32.totalorder %s29, 0
    %p323 = por %p321, %p322
    %s325 = sadd.s32 %s324, 1
    %p328 = scmp.eq.s32.totalorder %s23, 1
    %p329 = scmp.ne.s32.totalorder %s324, %s326
    %p330 = scmp.eq.s32.totalorder %s23, 0
    %p331 = por %p329, %p330
    %p332 = scmp.ne.s32.totalorder %s324, %s326
    %p333 = scmp.eq.s32.totalorder %s28, 1
    %p334 = por %p332, %p333
    %p335 = scmp.ne.s32.totalorder %s326, %s327
    %p336 = scmp.eq.s32.totalorder %s28, 0
    %p337 = por %p335, %p336
    %p338 = scmp.ne.s32.totalorder %s326, %s327
    %p339 = scmp.eq.s32.totalorder %s29, 1
    %p340 = por %p338, %p339
    %p342 = scmp.ne.s32.totalorder %s327, %s341
    %p343 = scmp.eq.s32.totalorder %s29, 0
    %p344 = por %p342, %p343
    %s346 = sadd.s32 %s345, 1
    %p349 = scmp.eq.s32.totalorder %s23, 1
    %p350 = scmp.ne.s32.totalorder %s345, %s347
    %p351 = scmp.eq.s32.totalorder %s23, 0
    %p352 = por %p350, %p351
    %p353 = scmp.ne.s32.totalorder %s345, %s347
    %p354 = scmp.eq.s32.totalorder %s28, 1
    %p355 = por %p353, %p354
    %p356 = scmp.ne.s32.totalorder %s347, %s348
    %p357 = scmp.eq.s32.totalorder %s28, 0
    %p358 = por %p356, %p357
    %p359 = scmp.ne.s32.totalorder %s347, %s348
    %p360 = scmp.eq.s32.totalorder %s29, 1
    %p361 = por %p359, %p360
    %p363 = scmp.ne.s32.totalorder %s348, %s362
    %p364 = scmp.eq.s32.totalorder %s29, 0
    %p365 = por %p363, %p364
    %s367 = sadd.s32 %s366, 1
    %p370 = scmp.eq.s32.totalorder %s23, 1
    %p371 = scmp.ne.s32.totalorder %s366, %s368
    %p372 = scmp.eq.s32.totalorder %s23, 0
    %p373 = por %p371, %p372
    %p374 = scmp.ne.s32.totalorder %s366, %s368
    %p375 = scmp.eq.s32.totalorder %s28, 1
    %p376 = por %p374, %p375
    %p377 = scmp.ne.s32.totalorder %s368, %s369
    %p378 = scmp.eq.s32.totalorder %s28, 0
    %p379 = por %p377, %p378
    %p380 = scmp.ne.s32.totalorder %s368, %s369
    %p381 = scmp.eq.s32.totalorder %s29, 1
    %p382 = por %p380, %p381
    %p384 = scmp.ne.s32.totalorder %s369, %s383
    %p385 = scmp.eq.s32.totalorder %s29, 0
    %p386 = por %p384, %p385
    %s388 = sadd.s32 %s387, 1
    %p391 = scmp.eq.s32.totalorder %s23, 1
    %p392 = scmp.ne.s32.totalorder %s387, %s389
    %p393 = scmp.eq.s32.totalorder %s23, 0
    %p394 = por %p392, %p393
    %p395 = scmp.ne.s32.totalorder %s387, %s389
    %p396 = scmp.eq.s32.totalorder %s28, 1
    %p397 = por %p395, %p396
    %p398 = scmp.ne.s32.totalorder %s389, %s390
    %p399 = scmp.eq.s32.totalorder %s28, 0
    %p400 = por %p398, %p399
    %p401 = scmp.ne.s32.totalorder %s389, %s390
    %p402 = scmp.eq.s32.totalorder %s29, 1
    %p403 = por %p401, %p402
    %p405 = scmp.ne.s32.totalorder %s390, %s404
    %p406 = scmp.eq.s32.totalorder %s29, 0
    %p407 = por %p405, %p406
    %s408 = ssub.s32 %s23, %s30
    %p409 = scmp.eq.s32.totalorder %s408, 0
    %s411 = sadd.s32 %s410, 1
    %s412 = scalar_select %p409, %s410, %s411
    %p415 = pneg %p409
    %p416 = scmp.eq.s32.totalorder %s23, 1
    %p417 = por %p415, %p416
    %p418 = scmp.ne.s32.totalorder %s410, %s413
    %p419 = scmp.eq.s32.totalorder %s23, 0
    %p420 = por %p418, %p419
    %p421 = scmp.ne.s32.totalorder %s410, %s413
    %p422 = scmp.eq.s32.totalorder %s28, 1
    %p423 = por %p421, %p422
    %p424 = scmp.ne.s32.totalorder %s413, %s414
    %p425 = scmp.eq.s32.totalorder %s28, 0
    %p426 = por %p424, %p425
    %p427 = scmp.ne.s32.totalorder %s413, %s414
    %p428 = scmp.eq.s32.totalorder %s29, 1
    %p429 = por %p427, %p428
    %p431 = scmp.ne.s32.totalorder %s414, %s430
    %p432 = scmp.eq.s32.totalorder %s29, 0
    %p433 = por %p431, %p432
    %p434 = scmp.le.s32.totalorder 1, %s23
    %p435 = scmp.lt.s32.totalorder %s23, 3
    %p436 = pnand %p434, %p435
    %p437 = pneg %p436
    // Predicated region
    $region9: #{tpu_custom_call.1} parent=5 // pred_check
      _
    $region10: #{tpu_custom_call.1} parent=5 // pred_check_branch
      %439 = sbr.rel (%p436) target = $region12
    $region11: #{tpu_custom_call.1} parent=5 // pred_region
      %s440 = ssub.s32 %s23, 1
      // Predicated region
      $region13: #{tpu_custom_call.1} parent=11 // pred_check
        %p441 = pneg %p148
      $region14: #{tpu_custom_call.1} parent=11 // pred_check_branch
        %443 = sbr.rel (%p441) target = $region16
      $region15: #{tpu_custom_call.1} parent=11 // pred_region
        _
      $region16: #{tpu_custom_call.1} parent=11 // pred_fallthru
        _
      // Predicated region
      $region17: #{tpu_custom_call.1} parent=11 // pred_check
        %p444 = pneg %p169
      $region18: #{tpu_custom_call.1} parent=11 // pred_check_branch
        %446 = sbr.rel (%p444) target = $region20
      $region19: #{tpu_custom_call.1} parent=11 // pred_region
        _
      $region20: #{tpu_custom_call.1} parent=11 // pred_fallthru
        _
      // Predicated region
      $region21: #{tpu_custom_call.1} parent=11 // pred_check
        %p447 = pneg %p190
      $region22: #{tpu_custom_call.1} parent=11 // pred_check_branch
        %449 = sbr.rel (%p447) target = $region24
      $region23: #{tpu_custom_call.1} parent=11 // pred_region
        _
      $region24: #{tpu_custom_call.1} parent=11 // pred_fallthru
        _
      // Predicated region
      $region25: #{tpu_custom_call.1} parent=11 // pred_check
        %p450 = pneg %p211
      $region26: #{tpu_custom_call.1} parent=11 // pred_check_branch
        %452 = sbr.rel (%p450) target = $region28
      $region27: #{tpu_custom_call.1} parent=11 // pred_region
        _
      $region28: #{tpu_custom_call.1} parent=11 // pred_fallthru
        _
      // Predicated region
      $region29: #{tpu_custom_call.1} parent=11 // pred_check
        %p453 = pneg %p232
      $region30: #{tpu_custom_call.1} parent=11 // pred_check_branch
        %455 = sbr.rel (%p453) target = $region32
      $region31: #{tpu_custom_call.1} parent=11 // pred_region
        _
      $region32: #{tpu_custom_call.1} parent=11 // pred_fallthru
        _
      // Predicated region
      $region33: #{tpu_custom_call.1} parent=11 // pred_check
        %p456 = pneg %p253
      $region34: #{tpu_custom_call.1} parent=11 // pred_check_branch
        %458 = sbr.rel (%p456) target = $region36
      $region35: #{tpu_custom_call.1} parent=11 // pred_region
        _
      $region36: #{tpu_custom_call.1} parent=11 // pred_fallthru
        _
      // Predicated region
      $region37: #{tpu_custom_call.1} parent=11 // pred_check
        %p459 = pneg %p274
      $region38: #{tpu_custom_call.1} parent=11 // pred_check_branch
        %461 = sbr.rel (%p459) target = $region40
      $region39: #{tpu_custom_call.1} parent=11 // pred_region
        _
      $region40: #{tpu_custom_call.1} parent=11 // pred_fallthru
        _
      // Predicated region
      $region41: #{tpu_custom_call.1} parent=11 // pred_check
        %p462 = pneg %p295
      $region42: #{tpu_custom_call.1} parent=11 // pred_check_branch
        %464 = sbr.rel (%p462) target = $region44
      $region43: #{tpu_custom_call.1} parent=11 // pred_region
        _
      $region44: #{tpu_custom_call.1} parent=11 // pred_fallthru
        _
      // Predicated region
      $region45: #{tpu_custom_call.1} parent=11 // pred_check
        %p465 = pneg %p316
      $region46: #{tpu_custom_call.1} parent=11 // pred_check_branch
        %467 = sbr.rel (%p465) target = $region48
      $region47: #{tpu_custom_call.1} parent=11 // pred_region
        _
      $region48: #{tpu_custom_call.1} parent=11 // pred_fallthru
        _
      // Predicated region
      $region49: #{tpu_custom_call.1} parent=11 // pred_check
        %p468 = pneg %p337
      $region50: #{tpu_custom_call.1} parent=11 // pred_check_branch
        %470 = sbr.rel (%p468) target = $region52
      $region51: #{tpu_custom_call.1} parent=11 // pred_region
        _
      $region52: #{tpu_custom_call.1} parent=11 // pred_fallthru
        _
      // Predicated region
      $region53: #{tpu_custom_call.1} parent=11 // pred_check
        %p471 = pneg %p358
      $region54: #{tpu_custom_call.1} parent=11 // pred_check_branch
        %473 = sbr.rel (%p471) target = $region56
      $region55: #{tpu_custom_call.1} parent=11 // pred_region
        _
      $region56: #{tpu_custom_call.1} parent=11 // pred_fallthru
        _
      // Predicated region
      $region57: #{tpu_custom_call.1} parent=11 // pred_check
        %p474 = pneg %p379
      $region58: #{tpu_custom_call.1} parent=11 // pred_check_branch
        %476 = sbr.rel (%p474) target = $region60
      $region59: #{tpu_custom_call.1} parent=11 // pred_region
        _
      $region60: #{tpu_custom_call.1} parent=11 // pred_fallthru
        _
      // Predicated region
      $region61: #{tpu_custom_call.1} parent=11 // pred_check
        %p477 = pneg %p400
      $region62: #{tpu_custom_call.1} parent=11 // pred_check_branch
        %479 = sbr.rel (%p477) target = $region64
      $region63: #{tpu_custom_call.1} parent=11 // pred_region
        _
      $region64: #{tpu_custom_call.1} parent=11 // pred_fallthru
        _
    $region12: #{tpu_custom_call.1} parent=5 // pred_fallthru
      _
    %p480 = scmp.lt.s32.totalorder %s23, 2
    // Predicated region
    $region65: #{tpu_custom_call.1} parent=5 // pred_check
      %p481 = pneg %p480
    $region66: #{tpu_custom_call.1} parent=5 // pred_check_branch
      %483 = sbr.rel (%p481) target = $region68
    $region67: #{tpu_custom_call.1} parent=5 // pred_region
      // Predicated region
      $region69: #{tpu_custom_call.1} parent=67 // pred_check
        %p484 = pneg %p43
      $region70: #{tpu_custom_call.1} parent=67 // pred_check_branch
        %486 = sbr.rel (%p484) target = $region72
      $region71: #{tpu_custom_call.1} parent=67 // pred_region
        %p487 = scmp.lt.s32.totalorder %s23, 1
        %s488 = scalar_select %p487, %s23, 1
        %s489 = smul.addr %s488, 8
        %s490 = smul.addr %s489, 8
        %s491 = scalar_lea.vmem %s0, %s490
      $region72: #{tpu_custom_call.1} parent=67 // pred_fallthru
        _
      // Predicated region
      $region73: #{tpu_custom_call.1} parent=67 // pred_check
        %p492 = pneg %p69
      $region74: #{tpu_custom_call.1} parent=67 // pred_check_branch
        %494 = sbr.rel (%p492) target = $region76
      $region75: #{tpu_custom_call.1} parent=67 // pred_region
        %p495 = scmp.lt.s32.totalorder %s23, 1
        %s496 = scalar_select %p495, %s23, 1
        %s497 = smul.addr %s496, 8
        %s498 = smul.addr %s497, 8
        %s499 = scalar_lea.vmem %s1, %s498
      $region76: #{tpu_custom_call.1} parent=67 // pred_fallthru
        _
      // Predicated region
      $region77: #{tpu_custom_call.1} parent=67 // pred_check
        %p500 = pneg %p95
      $region78: #{tpu_custom_call.1} parent=67 // pred_check_branch
        %502 = sbr.rel (%p500) target = $region80
      $region79: #{tpu_custom_call.1} parent=67 // pred_region
        %p503 = scmp.lt.s32.totalorder %s23, 1
        %s504 = scalar_select %p503, %s23, 1
        %s505 = smul.addr %s504, 8
        %s506 = smul.addr %s505, 8
        %s507 = scalar_lea.vmem %s2, %s506
      $region80: #{tpu_custom_call.1} parent=67 // pred_fallthru
        _
      // Predicated region
      $region81: #{tpu_custom_call.1} parent=67 // pred_check
        %p508 = pneg %p121
      $region82: #{tpu_custom_call.1} parent=67 // pred_check_branch
        %510 = sbr.rel (%p508) target = $region84
      $region83: #{tpu_custom_call.1} parent=67 // pred_region
        %p511 = scmp.lt.s32.totalorder %s23, 1
        %s512 = scalar_select %p511, %s23, 1
        %s513 = smul.addr %s512, 8
        %s514 = smul.addr %s513, 8
        %s515 = scalar_lea.vmem %s3, %s514
      $region84: #{tpu_custom_call.1} parent=67 // pred_fallthru
        _
    $region68: #{tpu_custom_call.1} parent=5 // pred_fallthru
      _
    %p516 = scmp.le.s32.totalorder 1, %s23
    %p517 = scmp.lt.s32.totalorder %s23, 3
    %p518 = pnand %p516, %p517
    %p519 = pneg %p518
    // Predicated region
    $region85: #{tpu_custom_call.1} parent=5 // pred_check
      _
    $region86: #{tpu_custom_call.1} parent=5 // pred_check_branch
      %521 = sbr.rel (%p518) target = $region88
    $region87: #{tpu_custom_call.1} parent=5 // pred_region
      %s522 = ssub.s32 %s23, 1
      %p523 = scmp.lt.s32.totalorder %s28, 1
      %s524 = scalar_select %p523, %s28, 1
      %s525 = smul.addr %s524, 8
      %s526 = smul.addr %s525, 8
      %s527 = scalar_lea.vmem %s0, %s526
      %p528 = pneg %p49
      %p529 = pneg %p46
      %p530 = scmp.lt.s32.totalorder %s28, 1
      %s531 = scalar_select %p530, %s28, 1
      %s532 = smul.addr %s531, 8
      %s533 = smul.addr %s532, 8
      %s534 = scalar_lea.vmem %s1, %s533
      %p535 = pneg %p75
      %p536 = pneg %p72
      %p537 = scmp.lt.s32.totalorder %s28, 1
      %s538 = scalar_select %p537, %s28, 1
      %s539 = smul.addr %s538, 8
      %s540 = smul.addr %s539, 8
      %s541 = scalar_lea.vmem %s2, %s540
      %p542 = pneg %p101
      %p543 = pneg %p98
      %p544 = scmp.lt.s32.totalorder %s28, 1
      %s545 = scalar_select %p544, %s28, 1
      %s546 = smul.addr %s545, 8
      %s547 = smul.addr %s546, 8
      %s548 = scalar_lea.vmem %s3, %s547
      %p549 = pneg %p127
      %p550 = pneg %p124
      %p551 = pneg %p148
      %p552 = pneg %p145
      %p553 = pneg %p169
      %p554 = pneg %p166
      %p555 = pneg %p190
      %p556 = pneg %p187
      %p557 = pneg %p211
      %p558 = pneg %p208
      %p559 = pneg %p232
      %p560 = pneg %p229
      %p561 = pneg %p253
      %p562 = pneg %p250
      %p563 = pneg %p274
      %p564 = pneg %p271
      %p565 = pneg %p295
      %p566 = pneg %p292
      %p567 = pneg %p316
      %p568 = pneg %p313
      %p569 = pneg %p337
      %p570 = pneg %p334
      %p571 = pneg %p358
      %p572 = pneg %p355
      %p573 = pneg %p379
      %p574 = pneg %p376
      %p575 = pneg %p400
      %p576 = pneg %p397
      %p577 = pneg %p426
      %p578 = pneg %p423
      %p579 = scmp.lt.s32.totalorder %s28, 1
      %s580 = scalar_select %p579, %s28, 1
      %s581 = smul.addr %s580, 8
      %s582 = smul.addr %s581, 8
      %s583 = scalar_lea.vmem %s17, %s582
      %p584 = scmp.lt.s32.totalorder %s28, 1
      %s585 = scalar_select %p584, %s28, 1
      %s586 = smul.addr %s585, 8
      %s587 = smul.addr %s586, 8
      %s588 = scalar_lea.vmem %s0, %s587
      %p589 = scmp.lt.s32.totalorder %s28, 1
      %s590 = scalar_select %p589, %s28, 1
      %s591 = smul.addr %s590, 8
      %s592 = smul.addr %s591, 8
      %s593 = scalar_lea.vmem %s1, %s592
      %p594 = scmp.lt.s32.totalorder %s28, 1
      %s595 = scalar_select %p594, %s28, 1
      %s596 = smul.addr %s595, 8
      %s597 = smul.addr %s596, 8
      %s598 = scalar_lea.vmem %s2, %s597
      %p599 = scmp.lt.s32.totalorder %s28, 1
      %s600 = scalar_select %p599, %s28, 1
      %s601 = smul.addr %s600, 8
      %s602 = smul.addr %s601, 8
      %s603 = scalar_lea.vmem %s3, %s602
      %p604 = scmp.lt.s32.totalorder %s28, 1
      %s605 = scalar_select %p604, %s28, 1
      %s606 = smul.addr %s605, 8
      %s607 = smul.addr %s606, 8
      %s608 = scalar_lea.vmem %s17, %s607
      %v609 = vld [vmem:[%s588] sm:$0xff]
      %v610 = vld [vmem:[%s588 + $0x8] sm:$0xff]
      %v611 = vld [vmem:[%s588 + $0x10] sm:$0xff]
      %v612 = vld [vmem:[%s588 + $0x18] sm:$0xff]
      %v613 = vld [vmem:[%s588 + $0x20] sm:$0xff]
      %v614 = vld [vmem:[%s588 + $0x28] sm:$0xff]
      %v615 = vld [vmem:[%s588 + $0x30] sm:$0xff]
      %v616 = vld [vmem:[%s588 + $0x38] sm:$0xff]
      %v617 = vld [vmem:[%s4] sm:$0x1]
      %v619 = vlaneseq
      %v620 = vshrl.u32 %v619, 7
      %v621 = vsub.s32 0, %v620
      %v622 = vrot.slane %v617, %v621
      %v624 = vmul.f32 %v609, %v622
      %v625 = vmul.f32 %v610, %v622
      %s626 = scalar_lea.vmem %s4, 1
      %v627 = vld [vmem:[%s626] sm:$0x1]
      %v629 = vlaneseq
      %v630 = vshrl.u32 %v629, 7
      %v631 = vsub.s32 0, %v630
      %v632 = vrot.slane %v627, %v631
      %v634 = vmul.f32 %v611, %v632
      %v635 = vmul.f32 %v612, %v632
      %v636 = vadd.f32 %v624, %v634
      %v637 = vadd.f32 %v625, %v635
      %v638 = vmax.f32 %v609, %v611
      %v639 = vmax.f32 %v610, %v612
      %s640 = scalar_lea.vmem %s4, 2
      %v641 = vld [vmem:[%s640] sm:$0x1]
      %v643 = vlaneseq
      %v644 = vshrl.u32 %v643, 7
      %v645 = vsub.s32 0, %v644
      %v646 = vrot.slane %v641, %v645
      %v648 = vmul.f32 %v613, %v646
      %v649 = vmul.f32 %v614, %v646
      %v650 = vadd.f32 %v636, %v648
      %v651 = vadd.f32 %v637, %v649
      %v652 = vmax.f32 %v638, %v613
      %v653 = vmax.f32 %v639, %v614
      %s654 = scalar_lea.vmem %s4, 3
      %v655 = vld [vmem:[%s654] sm:$0x1]
      %v657 = vlaneseq
      %v658 = vshrl.u32 %v657, 7
      %v659 = vsub.s32 0, %v658
      %v660 = vrot.slane %v655, %v659
      %v662 = vmul.f32 %v615, %v660
      %v663 = vmul.f32 %v616, %v660
      %v664 = vadd.f32 %v650, %v662
      %v665 = vadd.f32 %v651, %v663
      %v666 = vmax.f32 %v652, %v615
      %v667 = vmax.f32 %v653, %v616
      %v668 = vld [vmem:[%s5] sm:$0x1]
      %v669 = vld [vmem:[%s6] sm:$0x1]
      %vm670 = vcmask 261120
      %v671 = vsel %vm670, %v664, 0.0
      %672 = vadd.xlane.f32.xlu0 %v671
      %v673 = vpop.xlane.xlu0 %672
      %v674 = vsel %vm670, %v665, 0.0
      %675 = vadd.xlane.f32.xlu0 %v674
      %v676 = vpop.xlane.xlu0 %675
      %v677 = vrcp.pop 32.0
      %v678 = vmul.f32 %v673, %v677
      %v679 = vmul.f32 %v676, %v677
      %v680 = vsub.f32 %v664, %v678
      %v681 = vsub.f32 %v665, %v679
      %v682 = vmul.f32 %v680, %v680
      %v683 = vmul.f32 %v681, %v681
      %v684 = vsel %vm670, %v682, 0.0
      %685 = vadd.xlane.f32.xlu0 %v684
      %v686 = vpop.xlane.xlu0 %685
      %v687 = vsel %vm670, %v683, 0.0
      %688 = vadd.xlane.f32.xlu0 %v687
      %v689 = vpop.xlane.xlu0 %688
      %v690 = vmul.f32 %v686, %v677
      %v691 = vmul.f32 %v689, %v677
      %v692 = vadd.f32 %v690, 1e-05
      %v693 = vadd.f32 %v691, 1e-05
      %v694 = vrsqrt.pop %v692
      %v695 = vrsqrt.pop %v693
      %v696 = vmul.f32 %v680, %v694
      %v697 = vmul.f32 %v681, %v695
      %v699 = vlaneseq
      %v700 = vshrl.u32 %v699, 7
      %v701 = vsub.s32 0, %v700
      %v702 = vrot.slane %v668, %v701
      %v704 = vmul.f32 %v696, %v702
      %v705 = vmul.f32 %v697, %v702
      %v707 = vlaneseq
      %v708 = vshrl.u32 %v707, 7
      %v709 = vsub.s32 0, %v708
      %v710 = vrot.slane %v669, %v709
      %v712 = vadd.f32 %v704, %v710
      %v713 = vadd.f32 %v705, %v710
      %v714 = vsel %vm670, %v666, 0.0
      %715 = vadd.xlane.f32.xlu0 %v714
      %v716 = vpop.xlane.xlu0 %715
      %v717 = vsel %vm670, %v667, 0.0
      %718 = vadd.xlane.f32.xlu0 %v717
      %v719 = vpop.xlane.xlu0 %718
      %v720 = vmul.f32 %v716, %v677
      %v721 = vmul.f32 %v719, %v677
      %v722 = vsub.f32 %v666, %v720
      %v723 = vsub.f32 %v667, %v721
      %v724 = vmul.f32 %v722, %v722
      %v725 = vmul.f32 %v723, %v723
      %v726 = vsel %vm670, %v724, 0.0
      %727 = vadd.xlane.f32.xlu0 %v726
      %v728 = vpop.xlane.xlu0 %727
      %v729 = vsel %vm670, %v725, 0.0
      %730 = vadd.xlane.f32.xlu0 %v729
      %v731 = vpop.xlane.xlu0 %730
      %v732 = vmul.f32 %v728, %v677
      %v733 = vmul.f32 %v731, %v677
      %v734 = vadd.f32 %v732, 1e-05
      %v735 = vadd.f32 %v733, 1e-05
      %v736 = vrsqrt.pop %v734
      %v737 = vrsqrt.pop %v735
      %v738 = vmul.f32 %v722, %v736
      %v739 = vmul.f32 %v723, %v737
      %v740 = vmul.f32 %v738, %v702
      %v741 = vmul.f32 %v739, %v702
      %v742 = vadd.f32 %v740, %v710
      %v743 = vadd.f32 %v741, %v710
      %v744 = vld [vmem:[%s598] sm:$0xff]
      %v745 = vld [vmem:[%s598 + $0x8] sm:$0xff]
      %v746 = vld [vmem:[%s598 + $0x10] sm:$0xff]
      %v747 = vld [vmem:[%s598 + $0x18] sm:$0xff]
      %v748 = vld [vmem:[%s598 + $0x20] sm:$0xff]
      %v749 = vld [vmem:[%s598 + $0x28] sm:$0xff]
      %v750 = vld [vmem:[%s598 + $0x30] sm:$0xff]
      %v751 = vld [vmem:[%s598 + $0x38] sm:$0xff]
      %v752 = vld [vmem:[%s603] sm:$0xff]
      %v753 = vld [vmem:[%s603 + $0x8] sm:$0xff]
      %v754 = vld [vmem:[%s603 + $0x10] sm:$0xff]
      %v755 = vld [vmem:[%s603 + $0x18] sm:$0xff]
      %v756 = vld [vmem:[%s603 + $0x20] sm:$0xff]
      %v757 = vld [vmem:[%s603 + $0x28] sm:$0xff]
      %v758 = vld [vmem:[%s603 + $0x30] sm:$0xff]
      %v759 = vld [vmem:[%s603 + $0x38] sm:$0xff]
      %v760 = vld [vmem:[%s7] sm:$0xff]
      %v761 = vld [vmem:[%s7 + $0x8] sm:$0xff]
      %v762 = vld [vmem:[%s7 + $0x10] sm:$0xff]
      %v763 = vld [vmem:[%s7 + $0x18] sm:$0xff]
      %v764 = vld [vmem:[%s7 + $0x20] sm:$0xff]
      %v765 = vld [vmem:[%s7 + $0x28] sm:$0xff]
      %v766 = vld [vmem:[%s7 + $0x30] sm:$0xff]
      %v767 = vld [vmem:[%s7 + $0x38] sm:$0xff]
      %v768 = vld [vmem:[%s7 + $0x40] sm:$0xff]
      %v769 = vld [vmem:[%s7 + $0x48] sm:$0xff]
      %v770 = vld [vmem:[%s7 + $0x50] sm:$0xff]
      %v771 = vld [vmem:[%s7 + $0x58] sm:$0xff]
      %v772 = vld [vmem:[%s7 + $0x60] sm:$0xff]
      %v773 = vld [vmem:[%s7 + $0x68] sm:$0xff]
      %v774 = vld [vmem:[%s7 + $0x70] sm:$0xff]
      %v775 = vld [vmem:[%s7 + $0x78] sm:$0xff]
      %v777 = vsel %vm670, %v712, 0
      %v780 = vsel %vm670, %v713, 0
      %782 = vmatprep.subr.mxu0 0.0
      %783 = vmatpush1.msra.mxu0 %v760
      %784 = vmatprep.subr.mxu0 0.0
      %785 = vmatpush1.msra.mxu0 %v761
      %786 = vmatprep.subr.mxu0 0.0
      %787 = vmatpush1.msra.mxu0 %v762
      %788 = vmatprep.subr.mxu0 0.0
      %789 = vmatpush1.msra.mxu0 %v763
      %790 = vmatprep.subr.mxu0 0.0
      %791 = vmatpush1.msra.mxu0 0.0
      %792 = vmatprep.subr.mxu0 0.0
      %793 = vmatpush1.msra.mxu0 0.0
      %794 = vmatprep.subr.mxu0 0.0
      %795 = vmatpush1.msra.mxu0 0.0
      %796 = vmatprep.subr.mxu0 0.0
      %797 = vmatpush1.msra.mxu0 0.0
      %798 = vmatprep.subr.mxu0 0.0
      %799 = vmatpush1.msra.mxu0 0.0
      %800 = vmatprep.subr.mxu0 0.0
      %801 = vmatpush1.msra.mxu0 0.0
      %802 = vmatprep.subr.mxu0 0.0
      %803 = vmatpush1.msra.mxu0 0.0
      %804 = vmatprep.subr.mxu0 0.0
      %805 = vmatpush1.msra.mxu0 0.0
      %806 = vmatprep.subr.mxu0 0.0
      %807 = vmatpush1.msra.mxu0 0.0
      %808 = vmatprep.subr.mxu0 0.0
      %809 = vmatpush1.msra.mxu0 0.0
      %810 = vmatprep.subr.mxu0 0.0
      %811 = vmatpush1.msra.mxu0 0.0
      %812 = vmatprep.subr.mxu0 0.0
      %813 = vmatpush1.msra.mxu0 0.0
      %814 = vmatprep.subr.mxu0 0.0
      %815 = vmatpush1.msra.mxu0 0.0
      %816 = vmatprep.subr.mxu0 0.0
      %817 = vmatpush1.msra.mxu0 0.0
      %818 = vmatprep.subr.mxu0 0.0
      %819 = vmatpush1.msra.mxu0 0.0
      %820 = vmatprep.subr.mxu0 0.0
      %821 = vmatpush1.msra.mxu0 0.0
      %822 = vmatprep.subr.mxu0 0.0
      %823 = vmatpush1.msra.mxu0 0.0
      %824 = vmatprep.subr.mxu0 0.0
      %825 = vmatpush1.msra.mxu0 0.0
      %826 = vmatprep.subr.mxu0 0.0
      %827 = vmatpush1.msra.mxu0 0.0
      %828 = vmatprep.subr.mxu0 0.0
      %829 = vmatpush1.msra.mxu0 0.0
      %830 = vmatprep.subr.mxu0 0.0
      %831 = vmatpush1.msra.mxu0 0.0
      %832 = vmatprep.subr.mxu0 0.0
      %833 = vmatpush1.msra.mxu0 0.0
      %834 = vmatprep.subr.mxu0 0.0
      %835 = vmatpush1.msra.mxu0 0.0
      %836 = vmatprep.subr.mxu0 0.0
      %837 = vmatpush1.msra.mxu0 0.0
      %838 = vmatprep.subr.mxu0 0.0
      %839 = vmatpush1.msra.mxu0 0.0
      %840 = vmatprep.subr.mxu0 0.0
      %841 = vmatpush1.msra.mxu0 0.0
      %842 = vmatprep.subr.mxu0 0.0
      %843 = vmatpush1.msra.mxu0 0.0
      %844 = vmatprep.subr.mxu0 0.0
      %845 = vmatpush1.msra.mxu0 0.0
      %846 = vmatprep.mubr.f32.mxu0 0.0
      %847 = vmatmul.mubr.f32.gmra.mrb[0].mxu0 %v777
      %v848 = vpop.f32.mrb[0].mxu0
      %v849 = vadd.f32 0.0, %v848
      %v850 = vpop.f32.mrb[0].mxu0
      %851 = vmatprep.mubr.f32.mxu0 0.0
      %852 = vmatmul.mubr.f32.gmra.mrb[0].mxu0 %v780
      %v853 = vpop.f32.mrb[0].mxu0
      %v854 = vadd.f32 0.0, %v853
      %v855 = vpop.f32.mrb[0].mxu0
      %856 = vdwg.mxu0
      %857 = vmatprep.subr.mxu0 0.0
      %858 = vmatpush1.msra.mxu0 %v764
      %859 = vmatprep.subr.mxu0 0.0
      %860 = vmatpush1.msra.mxu0 %v765
      %861 = vmatprep.subr.mxu0 0.0
      %862 = vmatpush1.msra.mxu0 %v766
      %863 = vmatprep.subr.mxu0 0.0
      %864 = vmatpush1.msra.mxu0 %v767
      %865 = vmatprep.subr.mxu0 0.0
      %866 = vmatpush1.msra.mxu0 0.0
      %867 = vmatprep.subr.mxu0 0.0
      %868 = vmatpush1.msra.mxu0 0.0
      %869 = vmatprep.subr.mxu0 0.0
      %870 = vmatpush1.msra.mxu0 0.0
      %871 = vmatprep.subr.mxu0 0.0
      %872 = vmatpush1.msra.mxu0 0.0
      %873 = vmatprep.subr.mxu0 0.0
      %874 = vmatpush1.msra.mxu0 0.0
      %875 = vmatprep.subr.mxu0 0.0
      %876 = vmatpush1.msra.mxu0 0.0
      %877 = vmatprep.subr.mxu0 0.0
      %878 = vmatpush1.msra.mxu0 0.0
      %879 = vmatprep.subr.mxu0 0.0
      %880 = vmatpush1.msra.mxu0 0.0
      %881 = vmatprep.subr.mxu0 0.0
      %882 = vmatpush1.msra.mxu0 0.0
      %883 = vmatprep.subr.mxu0 0.0
      %884 = vmatpush1.msra.mxu0 0.0
      %885 = vmatprep.subr.mxu0 0.0
      %886 = vmatpush1.msra.mxu0 0.0
      %887 = vmatprep.subr.mxu0 0.0
      %888 = vmatpush1.msra.mxu0 0.0
      %889 = vmatprep.subr.mxu0 0.0
      %890 = vmatpush1.msra.mxu0 0.0
      %891 = vmatprep.subr.mxu0 0.0
      %892 = vmatpush1.msra.mxu0 0.0
      %893 = vmatprep.subr.mxu0 0.0
      %894 = vmatpush1.msra.mxu0 0.0
      %895 = vmatprep.subr.mxu0 0.0
      %896 = vmatpush1.msra.mxu0 0.0
      %897 = vmatprep.subr.mxu0 0.0
      %898 = vmatpush1.msra.mxu0 0.0
      %899 = vmatprep.subr.mxu0 0.0
      %900 = vmatpush1.msra.mxu0 0.0
      %901 = vmatprep.subr.mxu0 0.0
      %902 = vmatpush1.msra.mxu0 0.0
      %903 = vmatprep.subr.mxu0 0.0
      %904 = vmatpush1.msra.mxu0 0.0
      %905 = vmatprep.subr.mxu0 0.0
      %906 = vmatpush1.msra.mxu0 0.0
      %907 = vmatprep.subr.mxu0 0.0
      %908 = vmatpush1.msra.mxu0 0.0
      %909 = vmatprep.subr.mxu0 0.0
      %910 = vmatpush1.msra.mxu0 0.0
      %911 = vmatprep.subr.mxu0 0.0
      %912 = vmatpush1.msra.mxu0 0.0
      %913 = vmatprep.subr.mxu0 0.0
      %914 = vmatpush1.msra.mxu0 0.0
      %915 = vmatprep.subr.mxu0 0.0
      %916 = vmatpush1.msra.mxu0 0.0
      %917 = vmatprep.subr.mxu0 0.0
      %918 = vmatpush1.msra.mxu0 0.0
      %919 = vmatprep.subr.mxu0 0.0
      %920 = vmatpush1.msra.mxu0 0.0
      %921 = vmatprep.mubr.f32.mxu0 0.0
      %922 = vmatmul.mubr.f32.gmra.mrb[0].mxu0 %v777
      %v923 = vpop.f32.mrb[0].mxu0
      %v924 = vadd.f32 0.0, %v923
      %v925 = vpop.f32.mrb[0].mxu0
      %926 = vmatprep.mubr.f32.mxu0 0.0
      %927 = vmatmul.mubr.f32.gmra.mrb[0].mxu0 %v780
      %v928 = vpop.f32.mrb[0].mxu0
      %v929 = vadd.f32 0.0, %v928
      %v930 = vpop.f32.mrb[0].mxu0
      %931 = vdwg.mxu0
      %932 = vmatprep.subr.mxu0 0.0
      %933 = vmatpush1.msra.mxu0 %v768
      %934 = vmatprep.subr.mxu0 0.0
      %935 = vmatpush1.msra.mxu0 %v769
      %936 = vmatprep.subr.mxu0 0.0
      %937 = vmatpush1.msra.mxu0 %v770
      %938 = vmatprep.subr.mxu0 0.0
      %939 = vmatpush1.msra.mxu0 %v771
      %940 = vmatprep.subr.mxu0 0.0
      %941 = vmatpush1.msra.mxu0 0.0
      %942 = vmatprep.subr.mxu0 0.0
      %943 = vmatpush1.msra.mxu0 0.0
      %944 = vmatprep.subr.mxu0 0.0
      %945 = vmatpush1.msra.mxu0 0.0
      %946 = vmatprep.subr.mxu0 0.0
      %947 = vmatpush1.msra.mxu0 0.0
      %948 = vmatprep.subr.mxu0 0.0
      %949 = vmatpush1.msra.mxu0 0.0
      %950 = vmatprep.subr.mxu0 0.0
      %951 = vmatpush1.msra.mxu0 0.0
      %952 = vmatprep.subr.mxu0 0.0
      %953 = vmatpush1.msra.mxu0 0.0
      %954 = vmatprep.subr.mxu0 0.0
      %955 = vmatpush1.msra.mxu0 0.0
      %956 = vmatprep.subr.mxu0 0.0
      %957 = vmatpush1.msra.mxu0 0.0
      %958 = vmatprep.subr.mxu0 0.0
      %959 = vmatpush1.msra.mxu0 0.0
      %960 = vmatprep.subr.mxu0 0.0
      %961 = vmatpush1.msra.mxu0 0.0
      %962 = vmatprep.subr.mxu0 0.0
      %963 = vmatpush1.msra.mxu0 0.0
      %964 = vmatprep.subr.mxu0 0.0
      %965 = vmatpush1.msra.mxu0 0.0
      %966 = vmatprep.subr.mxu0 0.0
      %967 = vmatpush1.msra.mxu0 0.0
      %968 = vmatprep.subr.mxu0 0.0
      %969 = vmatpush1.msra.mxu0 0.0
      %970 = vmatprep.subr.mxu0 0.0
      %971 = vmatpush1.msra.mxu0 0.0
      %972 = vmatprep.subr.mxu0 0.0
      %973 = vmatpush1.msra.mxu0 0.0
      %974 = vmatprep.subr.mxu0 0.0
      %975 = vmatpush1.msra.mxu0 0.0
      %976 = vmatprep.subr.mxu0 0.0
      %977 = vmatpush1.msra.mxu0 0.0
      %978 = vmatprep.subr.mxu0 0.0
      %979 = vmatpush1.msra.mxu0 0.0
      %980 = vmatprep.subr.mxu0 0.0
      %981 = vmatpush1.msra.mxu0 0.0
      %982 = vmatprep.subr.mxu0 0.0
      %983 = vmatpush1.msra.mxu0 0.0
      %984 = vmatprep.subr.mxu0 0.0
      %985 = vmatpush1.msra.mxu0 0.0
      %986 = vmatprep.subr.mxu0 0.0
      %987 = vmatpush1.msra.mxu0 0.0
      %988 = vmatprep.subr.mxu0 0.0
      %989 = vmatpush1.msra.mxu0 0.0
      %990 = vmatprep.subr.mxu0 0.0
      %991 = vmatpush1.msra.mxu0 0.0
      %992 = vmatprep.subr.mxu0 0.0
      %993 = vmatpush1.msra.mxu0 0.0
      %994 = vmatprep.subr.mxu0 0.0
      %995 = vmatpush1.msra.mxu0 0.0
      %996 = vmatprep.mubr.f32.mxu0 0.0
      %997 = vmatmul.mubr.f32.gmra.mrb[0].mxu0 %v777
      %v998 = vpop.f32.mrb[0].mxu0
      %v999 = vadd.f32 0.0, %v998
      %v1000 = vpop.f32.mrb[0].mxu0
      %1001 = vmatprep.mubr.f32.mxu0 0.0
      %1002 = vmatmul.mubr.f32.gmra.mrb[0].mxu0 %v780
      %v1003 = vpop.f32.mrb[0].mxu0
      %v1004 = vadd.f32 0.0, %v1003
      %v1005 = vpop.f32.mrb[0].mxu0
      %1006 = vdwg.mxu0
      %1007 = vmatprep.subr.mxu0 0.0
      %1008 = vmatpush1.msra.mxu0 %v772
      %1009 = vmatprep.subr.mxu0 0.0
      %1010 = vmatpush1.msra.mxu0 %v773
      %1011 = vmatprep.subr.mxu0 0.0
      %1012 = vmatpush1.msra.mxu0 %v774
      %1013 = vmatprep.subr.mxu0 0.0
      %1014 = vmatpush1.msra.mxu0 %v775
      %1015 = vmatprep.subr.mxu0 0.0
      %1016 = vmatpush1.msra.mxu0 0.0
      %1017 = vmatprep.subr.mxu0 0.0
      %1018 = vmatpush1.msra.mxu0 0.0
      %1019 = vmatprep.subr.mxu0 0.0
      %1020 = vmatpush1.msra.mxu0 0.0
      %1021 = vmatprep.subr.mxu0 0.0
      %1022 = vmatpush1.msra.mxu0 0.0
      %1023 = vmatprep.subr.mxu0 0.0
      %1024 = vmatpush1.msra.mxu0 0.0
      %1025 = vmatprep.subr.mxu0 0.0
      %1026 = vmatpush1.msra.mxu0 0.0
      %1027 = vmatprep.subr.mxu0 0.0
      %1028 = vmatpush1.msra.mxu0 0.0
      %1029 = vmatprep.subr.mxu0 0.0
      %1030 = vmatpush1.msra.mxu0 0.0
      %1031 = vmatprep.subr.mxu0 0.0
      %1032 = vmatpush1.msra.mxu0 0.0
      %1033 = vmatprep.subr.mxu0 0.0
      %1034 = vmatpush1.msra.mxu0 0.0
      %1035 = vmatprep.subr.mxu0 0.0
      %1036 = vmatpush1.msra.mxu0 0.0
      %1037 = vmatprep.subr.mxu0 0.0
      %1038 = vmatpush1.msra.mxu0 0.0
      %1039 = vmatprep.subr.mxu0 0.0
      %1040 = vmatpush1.msra.mxu0 0.0
      %1041 = vmatprep.subr.mxu0 0.0
      %1042 = vmatpush1.msra.mxu0 0.0
      %1043 = vmatprep.subr.mxu0 0.0
      %1044 = vmatpush1.msra.mxu0 0.0
      %1045 = vmatprep.subr.mxu0 0.0
      %1046 = vmatpush1.msra.mxu0 0.0
      %1047 = vmatprep.subr.mxu0 0.0
      %1048 = vmatpush1.msra.mxu0 0.0
      %1049 = vmatprep.subr.mxu0 0.0
      %1050 = vmatpush1.msra.mxu0 0.0
      %1051 = vmatprep.subr.mxu0 0.0
      %1052 = vmatpush1.msra.mxu0 0.0
      %1053 = vmatprep.subr.mxu0 0.0
      %1054 = vmatpush1.msra.mxu0 0.0
      %1055 = vmatprep.subr.mxu0 0.0
      %1056 = vmatpush1.msra.mxu0 0.0
      %1057 = vmatprep.subr.mxu0 0.0
      %1058 = vmatpush1.msra.mxu0 0.0
      %1059 = vmatprep.subr.mxu0 0.0
      %1060 = vmatpush1.msra.mxu0 0.0
      %1061 = vmatprep.subr.mxu0 0.0
      %1062 = vmatpush1.msra.mxu0 0.0
      %1063 = vmatprep.subr.mxu0 0.0
      %1064 = vmatpush1.msra.mxu0 0.0
      %1065 = vmatprep.subr.mxu0 0.0
      %1066 = vmatpush1.msra.mxu0 0.0
      %1067 = vmatprep.subr.mxu0 0.0
      %1068 = vmatpush1.msra.mxu0 0.0
      %1069 = vmatprep.subr.mxu0 0.0
      %1070 = vmatpush1.msra.mxu0 0.0
      %1071 = vmatprep.mubr.f32.mxu0 0.0
      %1072 = vmatmul.mubr.f32.gmra.mrb[0].mxu0 %v777
      %v1073 = vpop.f32.mrb[0].mxu0
      %v1074 = vadd.f32 0.0, %v1073
      %v1075 = vpop.f32.mrb[0].mxu0
      %1076 = vmatprep.mubr.f32.mxu0 0.0
      %1077 = vmatmul.mubr.f32.gmra.mrb[0].mxu0 %v780
      %v1078 = vpop.f32.mrb[0].mxu0
      %v1079 = vadd.f32 0.0, %v1078
      %v1080 = vpop.f32.mrb[0].mxu0
      %1081 = vdwg.mxu0
      %v1082 = vld [vmem:[%s8] sm:$0xff]
      %v1083 = vld [vmem:[%s8 + $0x8] sm:$0xff]
      %v1084 = vld [vmem:[%s8 + $0x10] sm:$0xff]
      %v1085 = vld [vmem:[%s8 + $0x18] sm:$0xff]
      %v1086 = vld [vmem:[%s8 + $0x20] sm:$0xff]
      %v1087 = vld [vmem:[%s8 + $0x28] sm:$0xff]
      %v1088 = vld [vmem:[%s8 + $0x30] sm:$0xff]
      %v1089 = vld [vmem:[%s8 + $0x38] sm:$0xff]
      %v1090 = vld [vmem:[%s8 + $0x40] sm:$0xff]
      %v1091 = vld [vmem:[%s8 + $0x48] sm:$0xff]
      %v1092 = vld [vmem:[%s8 + $0x50] sm:$0xff]
      %v1093 = vld [vmem:[%s8 + $0x58] sm:$0xff]
      %v1094 = vld [vmem:[%s8 + $0x60] sm:$0xff]
      %v1095 = vld [vmem:[%s8 + $0x68] sm:$0xff]
      %v1096 = vld [vmem:[%s8 + $0x70] sm:$0xff]
      %v1097 = vld [vmem:[%s8 + $0x78] sm:$0xff]
      %v1099 = vsel %vm670, %v742, 0
      %v1102 = vsel %vm670, %v743, 0
      %1104 = vmatprep.subr.mxu0 0.0
      %1105 = vmatpush1.msra.mxu0 %v1082
      %1106 = vmatprep.subr.mxu0 0.0
      %1107 = vmatpush1.msra.mxu0 %v1083
      %1108 = vmatprep.subr.mxu0 0.0
      %1109 = vmatpush1.msra.mxu0 %v1084
      %1110 = vmatprep.subr.mxu0 0.0
      %1111 = vmatpush1.msra.mxu0 %v1085
      %1112 = vmatprep.subr.mxu0 0.0
      %1113 = vmatpush1.msra.mxu0 0.0
      %1114 = vmatprep.subr.mxu0 0.0
      %1115 = vmatpush1.msra.mxu0 0.0
      %1116 = vmatprep.subr.mxu0 0.0
      %1117 = vmatpush1.msra.mxu0 0.0
      %1118 = vmatprep.subr.mxu0 0.0
      %1119 = vmatpush1.msra.mxu0 0.0
      %1120 = vmatprep.subr.mxu0 0.0
      %1121 = vmatpush1.msra.mxu0 0.0
      %1122 = vmatprep.subr.mxu0 0.0
      %1123 = vmatpush1.msra.mxu0 0.0
      %1124 = vmatprep.subr.mxu0 0.0
      %1125 = vmatpush1.msra.mxu0 0.0
      %1126 = vmatprep.subr.mxu0 0.0
      %1127 = vmatpush1.msra.mxu0 0.0
      %1128 = vmatprep.subr.mxu0 0.0
      %1129 = vmatpush1.msra.mxu0 0.0
      %1130 = vmatprep.subr.mxu0 0.0
      %1131 = vmatpush1.msra.mxu0 0.0
      %1132 = vmatprep.subr.mxu0 0.0
      %1133 = vmatpush1.msra.mxu0 0.0
      %1134 = vmatprep.subr.mxu0 0.0
      %1135 = vmatpush1.msra.mxu0 0.0
      %1136 = vmatprep.subr.mxu0 0.0
      %1137 = vmatpush1.msra.mxu0 0.0
      %1138 = vmatprep.subr.mxu0 0.0
      %1139 = vmatpush1.msra.mxu0 0.0
      %1140 = vmatprep.subr.mxu0 0.0
      %1141 = vmatpush1.msra.mxu0 0.0
      %1142 = vmatprep.subr.mxu0 0.0
      %1143 = vmatpush1.msra.mxu0 0.0
      %1144 = vmatprep.subr.mxu0 0.0
      %1145 = vmatpush1.msra.mxu0 0.0
      %1146 = vmatprep.subr.mxu0 0.0
      %1147 = vmatpush1.msra.mxu0 0.0
      %1148 = vmatprep.subr.mxu0 0.0
      %1149 = vmatpush1.msra.mxu0 0.0
      %1150 = vmatprep.subr.mxu0 0.0
      %1151 = vmatpush1.msra.mxu0 0.0
      %1152 = vmatprep.subr.mxu0 0.0
      %1153 = vmatpush1.msra.mxu0 0.0
      %1154 = vmatprep.subr.mxu0 0.0
      %1155 = vmatpush1.msra.mxu0 0.0
      %1156 = vmatprep.subr.mxu0 0.0
      %1157 = vmatpush1.msra.mxu0 0.0
      %1158 = vmatprep.subr.mxu0 0.0
      %1159 = vmatpush1.msra.mxu0 0.0
      %1160 = vmatprep.subr.mxu0 0.0
      %1161 = vmatpush1.msra.mxu0 0.0
      %1162 = vmatprep.subr.mxu0 0.0
      %1163 = vmatpush1.msra.mxu0 0.0
      %1164 = vmatprep.subr.mxu0 0.0
      %1165 = vmatpush1.msra.mxu0 0.0
      %1166 = vmatprep.subr.mxu0 0.0
      %1167 = vmatpush1.msra.mxu0 0.0
      %1168 = vmatprep.mubr.f32.mxu0 0.0
      %1169 = vmatmul.mubr.f32.gmra.mrb[0].mxu0 %v1099
      %v1170 = vpop.f32.mrb[0].mxu0
      %v1171 = vadd.f32 0.0, %v1170
      %v1172 = vpop.f32.mrb[0].mxu0
      %1173 = vmatprep.mubr.f32.mxu0 0.0
      %1174 = vmatmul.mubr.f32.gmra.mrb[0].mxu0 %v1102
      %v1175 = vpop.f32.mrb[0].mxu0
      %v1176 = vadd.f32 0.0, %v1175
      %v1177 = vpop.f32.mrb[0].mxu0
      %1178 = vdwg.mxu0
      %1179 = vmatprep.subr.mxu0 0.0
      %1180 = vmatpush1.msra.mxu0 %v1086
      %1181 = vmatprep.subr.mxu0 0.0
      %1182 = vmatpush1.msra.mxu0 %v1087
      %1183 = vmatprep.subr.mxu0 0.0
      %1184 = vmatpush1.msra.mxu0 %v1088
      %1185 = vmatprep.subr.mxu0 0.0
      %1186 = vmatpush1.msra.mxu0 %v1089
      %1187 = vmatprep.subr.mxu0 0.0
      %1188 = vmatpush1.msra.mxu0 0.0
      %1189 = vmatprep.subr.mxu0 0.0
      %1190 = vmatpush1.msra.mxu0 0.0
      %1191 = vmatprep.subr.mxu0 0.0
      %1192 = vmatpush1.msra.mxu0 0.0
      %1193 = vmatprep.subr.mxu0 0.0
      %1194 = vmatpush1.msra.mxu0 0.0
      %1195 = vmatprep.subr.mxu0 0.0
      %1196 = vmatpush1.msra.mxu0 0.0
      %1197 = vmatprep.subr.mxu0 0.0
      %1198 = vmatpush1.msra.mxu0 0.0
      %1199 = vmatprep.subr.mxu0 0.0
      %1200 = vmatpush1.msra.mxu0 0.0
      %1201 = vmatprep.subr.mxu0 0.0
      %1202 = vmatpush1.msra.mxu0 0.0
      %1203 = vmatprep.subr.mxu0 0.0
      %1204 = vmatpush1.msra.mxu0 0.0
      %1205 = vmatprep.subr.mxu0 0.0
      %1206 = vmatpush1.msra.mxu0 0.0
      %1207 = vmatprep.subr.mxu0 0.0
      %1208 = vmatpush1.msra.mxu0 0.0
      %1209 = vmatprep.subr.mxu0 0.0
      %1210 = vmatpush1.msra.mxu0 0.0
      %1211 = vmatprep.subr.mxu0 0.0
      %1212 = vmatpush1.msra.mxu0 0.0
      %1213 = vmatprep.subr.mxu0 0.0
      %1214 = vmatpush1.msra.mxu0 0.0
      %1215 = vmatprep.subr.mxu0 0.0
      %1216 = vmatpush1.msra.mxu0 0.0
      %1217 = vmatprep.subr.mxu0 0.0
      %1218 = vmatpush1.msra.mxu0 0.0
      %1219 = vmatprep.subr.mxu0 0.0
      %1220 = vmatpush1.msra.mxu0 0.0
      %1221 = vmatprep.subr.mxu0 0.0
      %1222 = vmatpush1.msra.mxu0 0.0
      %1223 = vmatprep.subr.mxu0 0.0
      %1224 = vmatpush1.msra.mxu0 0.0
      %1225 = vmatprep.subr.mxu0 0.0
      %1226 = vmatpush1.msra.mxu0 0.0
      %1227 = vmatprep.subr.mxu0 0.0
      %1228 = vmatpush1.msra.mxu0 0.0
      %1229 = vmatprep.subr.mxu0 0.0
      %1230 = vmatpush1.msra.mxu0 0.0
      %1231 = vmatprep.subr.mxu0 0.0
      %1232 = vmatpush1.msra.mxu0 0.0
      %1233 = vmatprep.subr.mxu0 0.0
      %1234 = vmatpush1.msra.mxu0 0.0
      %1235 = vmatprep.subr.mxu0 0.0
      %1236 = vmatpush1.msra.mxu0 0.0
      %1237 = vmatprep.subr.mxu0 0.0
      %1238 = vmatpush1.msra.mxu0 0.0
      %1239 = vmatprep.subr.mxu0 0.0
      %1240 = vmatpush1.msra.mxu0 0.0
      %1241 = vmatprep.subr.mxu0 0.0
      %1242 = vmatpush1.msra.mxu0 0.0
      %1243 = vmatprep.mubr.f32.mxu0 0.0
      %1244 = vmatmul.mubr.f32.gmra.mrb[0].mxu0 %v1099
      %v1245 = vpop.f32.mrb[0].mxu0
      %v1246 = vadd.f32 0.0, %v1245
      %v1247 = vpop.f32.mrb[0].mxu0
      %1248 = vmatprep.mubr.f32.mxu0 0.0
      %1249 = vmatmul.mubr.f32.gmra.mrb[0].mxu0 %v1102
      %v1250 = vpop.f32.mrb[0].mxu0
      %v1251 = vadd.f32 0.0, %v1250
      %v1252 = vpop.f32.mrb[0].mxu0
      %1253 = vdwg.mxu0
      %1254 = vmatprep.subr.mxu0 0.0
      %1255 = vmatpush1.msra.mxu0 %v1090
      %1256 = vmatprep.subr.mxu0 0.0
      %1257 = vmatpush1.msra.mxu0 %v1091
      %1258 = vmatprep.subr.mxu0 0.0
      %1259 = vmatpush1.msra.mxu0 %v1092
      %1260 = vmatprep.subr.mxu0 0.0
      %1261 = vmatpush1.msra.mxu0 %v1093
      %1262 = vmatprep.subr.mxu0 0.0
      %1263 = vmatpush1.msra.mxu0 0.0
      %1264 = vmatprep.subr.mxu0 0.0
      %1265 = vmatpush1.msra.mxu0 0.0
      %1266 = vmatprep.subr.mxu0 0.0
      %1267 = vmatpush1.msra.mxu0 0.0
      %1268 = vmatprep.subr.mxu0 0.0
      %1269 = vmatpush1.msra.mxu0 0.0
      %1270 = vmatprep.subr.mxu0 0.0
      %1271 = vmatpush1.msra.mxu0 0.0
      %1272 = vmatprep.subr.mxu0 0.0
      %1273 = vmatpush1.msra.mxu0 0.0
      %1274 = vmatprep.subr.mxu0 0.0
      %1275 = vmatpush1.msra.mxu0 0.0
      %1276 = vmatprep.subr.mxu0 0.0
      %1277 = vmatpush1.msra.mxu0 0.0
      %1278 = vmatprep.subr.mxu0 0.0
      %1279 = vmatpush1.msra.mxu0 0.0
      %1280 = vmatprep.subr.mxu0 0.0
      %1281 = vmatpush1.msra.mxu0 0.0
      %1282 = vmatprep.subr.mxu0 0.0
      %1283 = vmatpush1.msra.mxu0 0.0
      %1284 = vmatprep.subr.mxu0 0.0
      %1285 = vmatpush1.msra.mxu0 0.0
      %1286 = vmatprep.subr.mxu0 0.0
      %1287 = vmatpush1.msra.mxu0 0.0
      %1288 = vmatprep.subr.mxu0 0.0
      %1289 = vmatpush1.msra.mxu0 0.0
      %1290 = vmatprep.subr.mxu0 0.0
      %1291 = vmatpush1.msra.mxu0 0.0
      %1292 = vmatprep.subr.mxu0 0.0
      %1293 = vmatpush1.msra.mxu0 0.0
      %1294 = vmatprep.subr.mxu0 0.0
      %1295 = vmatpush1.msra.mxu0 0.0
      %1296 = vmatprep.subr.mxu0 0.0
      %1297 = vmatpush1.msra.mxu0 0.0
      %1298 = vmatprep.subr.mxu0 0.0
      %1299 = vmatpush1.msra.mxu0 0.0
      %1300 = vmatprep.subr.mxu0 0.0
      %1301 = vmatpush1.msra.mxu0 0.0
      %1302 = vmatprep.subr.mxu0 0.0
      %1303 = vmatpush1.msra.mxu0 0.0
      %1304 = vmatprep.subr.mxu0 0.0
      %1305 = vmatpush1.msra.mxu0 0.0
      %1306 = vmatprep.subr.mxu0 0.0
      %1307 = vmatpush1.msra.mxu0 0.0
      %1308 = vmatprep.subr.mxu0 0.0
      %1309 = vmatpush1.msra.mxu0 0.0
      %1310 = vmatprep.subr.mxu0 0.0
      %1311 = vmatpush1.msra.mxu0 0.0
      %1312 = vmatprep.subr.mxu0 0.0
      %1313 = vmatpush1.msra.mxu0 0.0
      %1314 = vmatprep.subr.mxu0 0.0
      %1315 = vmatpush1.msra.mxu0 0.0
      %1316 = vmatprep.subr.mxu0 0.0
      %1317 = vmatpush1.msra.mxu0 0.0
      %1318 = vmatprep.mubr.f32.mxu0 0.0
      %1319 = vmatmul.mubr.f32.gmra.mrb[0].mxu0 %v1099
      %v1320 = vpop.f32.mrb[0].mxu0
      %v1321 = vadd.f32 0.0, %v1320
      %v1322 = vpop.f32.mrb[0].mxu0
      %1323 = vmatprep.mubr.f32.mxu0 0.0
      %1324 = vmatmul.mubr.f32.gmra.mrb[0].mxu0 %v1102
      %v1325 = vpop.f32.mrb[0].mxu0
      %v1326 = vadd.f32 0.0, %v1325
      %v1327 = vpop.f32.mrb[0].mxu0
      %1328 = vdwg.mxu0
      %1329 = vmatprep.subr.mxu0 0.0
      %1330 = vmatpush1.msra.mxu0 %v1094
      %1331 = vmatprep.subr.mxu0 0.0
      %1332 = vmatpush1.msra.mxu0 %v1095
      %1333 = vmatprep.subr.mxu0 0.0
      %1334 = vmatpush1.msra.mxu0 %v1096
      %1335 = vmatprep.subr.mxu0 0.0
      %1336 = vmatpush1.msra.mxu0 %v1097
      %1337 = vmatprep.subr.mxu0 0.0
      %1338 = vmatpush1.msra.mxu0 0.0
      %1339 = vmatprep.subr.mxu0 0.0
      %1340 = vmatpush1.msra.mxu0 0.0
      %1341 = vmatprep.subr.mxu0 0.0
      %1342 = vmatpush1.msra.mxu0 0.0
      %1343 = vmatprep.subr.mxu0 0.0
      %1344 = vmatpush1.msra.mxu0 0.0
      %1345 = vmatprep.subr.mxu0 0.0
      %1346 = vmatpush1.msra.mxu0 0.0
      %1347 = vmatprep.subr.mxu0 0.0
      %1348 = vmatpush1.msra.mxu0 0.0
      %1349 = vmatprep.subr.mxu0 0.0
      %1350 = vmatpush1.msra.mxu0 0.0
      %1351 = vmatprep.subr.mxu0 0.0
      %1352 = vmatpush1.msra.mxu0 0.0
      %1353 = vmatprep.subr.mxu0 0.0
      %1354 = vmatpush1.msra.mxu0 0.0
      %1355 = vmatprep.subr.mxu0 0.0
      %1356 = vmatpush1.msra.mxu0 0.0
      %1357 = vmatprep.subr.mxu0 0.0
      %1358 = vmatpush1.msra.mxu0 0.0
      %1359 = vmatprep.subr.mxu0 0.0
      %1360 = vmatpush1.msra.mxu0 0.0
      %1361 = vmatprep.subr.mxu0 0.0
      %1362 = vmatpush1.msra.mxu0 0.0
      %1363 = vmatprep.subr.mxu0 0.0
      %1364 = vmatpush1.msra.mxu0 0.0
      %1365 = vmatprep.subr.mxu0 0.0
      %1366 = vmatpush1.msra.mxu0 0.0
      %1367 = vmatprep.subr.mxu0 0.0
      %1368 = vmatpush1.msra.mxu0 0.0
      %1369 = vmatprep.subr.mxu0 0.0
      %1370 = vmatpush1.msra.mxu0 0.0
      %1371 = vmatprep.subr.mxu0 0.0
      %1372 = vmatpush1.msra.mxu0 0.0
      %1373 = vmatprep.subr.mxu0 0.0
      %1374 = vmatpush1.msra.mxu0 0.0
      %1375 = vmatprep.subr.mxu0 0.0
      %1376 = vmatpush1.msra.mxu0 0.0
      %1377 = vmatprep.subr.mxu0 0.0
      %1378 = vmatpush1.msra.mxu0 0.0
      %1379 = vmatprep.subr.mxu0 0.0
      %1380 = vmatpush1.msra.mxu0 0.0
      %1381 = vmatprep.subr.mxu0 0.0
      %1382 = vmatpush1.msra.mxu0 0.0
      %1383 = vmatprep.subr.mxu0 0.0
      %1384 = vmatpush1.msra.mxu0 0.0
      %1385 = vmatprep.subr.mxu0 0.0
      %1386 = vmatpush1.msra.mxu0 0.0
      %1387 = vmatprep.subr.mxu0 0.0
      %1388 = vmatpush1.msra.mxu0 0.0
      %1389 = vmatprep.subr.mxu0 0.0
      %1390 = vmatpush1.msra.mxu0 0.0
      %1391 = vmatprep.subr.mxu0 0.0
      %1392 = vmatpush1.msra.mxu0 0.0
      %1393 = vmatprep.mubr.f32.mxu0 0.0
      %1394 = vmatmul.mubr.f32.gmra.mrb[0].mxu0 %v1099
      %v1395 = vpop.f32.mrb[0].mxu0
      %v1396 = vadd.f32 0.0, %v1395
      %v1397 = vpop.f32.mrb[0].mxu0
      %1398 = vmatprep.mubr.f32.mxu0 0.0
      %1399 = vmatmul.mubr.f32.gmra.mrb[0].mxu0 %v1102
      %v1400 = vpop.f32.mrb[0].mxu0
      %v1401 = vadd.f32 0.0, %v1400
      %v1402 = vpop.f32.mrb[0].mxu0
      %1403 = vdwg.mxu0
      %v1404 = vld [vmem:[%s9] sm:$0xff]
      %v1405 = vld [vmem:[%s9 + $0x8] sm:$0xff]
      %v1406 = vld [vmem:[%s9 + $0x10] sm:$0xff]
      %v1407 = vld [vmem:[%s9 + $0x18] sm:$0xff]
      %v1408 = vld [vmem:[%s9 + $0x20] sm:$0xff]
      %v1409 = vld [vmem:[%s9 + $0x28] sm:$0xff]
      %v1410 = vld [vmem:[%s9 + $0x30] sm:$0xff]
      %v1411 = vld [vmem:[%s9 + $0x38] sm:$0xff]
      %v1412 = vld [vmem:[%s9 + $0x40] sm:$0xff]
      %v1413 = vld [vmem:[%s9 + $0x48] sm:$0xff]
      %v1414 = vld [vmem:[%s9 + $0x50] sm:$0xff]
      %v1415 = vld [vmem:[%s9 + $0x58] sm:$0xff]
      %v1416 = vld [vmem:[%s9 + $0x60] sm:$0xff]
      %v1417 = vld [vmem:[%s9 + $0x68] sm:$0xff]
      %v1418 = vld [vmem:[%s9 + $0x70] sm:$0xff]
      %v1419 = vld [vmem:[%s9 + $0x78] sm:$0xff]
      %1420 = vmatprep.subr.mxu0 0.0
      %1421 = vmatpush1.msra.mxu0 %v1404
      %1422 = vmatprep.subr.mxu0 0.0
      %1423 = vmatpush1.msra.mxu0 %v1405
      %1424 = vmatprep.subr.mxu0 0.0
      %1425 = vmatpush1.msra.mxu0 %v1406
      %1426 = vmatprep.subr.mxu0 0.0
      %1427 = vmatpush1.msra.mxu0 %v1407
      %1428 = vmatprep.subr.mxu0 0.0
      %1429 = vmatpush1.msra.mxu0 0.0
      %1430 = vmatprep.subr.mxu0 0.0
      %1431 = vmatpush1.msra.mxu0 0.0
      %1432 = vmatprep.subr.mxu0 0.0
      %1433 = vmatpush1.msra.mxu0 0.0
      %1434 = vmatprep.subr.mxu0 0.0
      %1435 = vmatpush1.msra.mxu0 0.0
      %1436 = vmatprep.subr.mxu0 0.0
      %1437 = vmatpush1.msra.mxu0 0.0
      %1438 = vmatprep.subr.mxu0 0.0
      %1439 = vmatpush1.msra.mxu0 0.0
      %1440 = vmatprep.subr.mxu0 0.0
      %1441 = vmatpush1.msra.mxu0 0.0
      %1442 = vmatprep.subr.mxu0 0.0
      %1443 = vmatpush1.msra.mxu0 0.0
      %1444 = vmatprep.subr.mxu0 0.0
      %1445 = vmatpush1.msra.mxu0 0.0
      %1446 = vmatprep.subr.mxu0 0.0
      %1447 = vmatpush1.msra.mxu0 0.0
      %1448 = vmatprep.subr.mxu0 0.0
      %1449 = vmatpush1.msra.mxu0 0.0
      %1450 = vmatprep.subr.mxu0 0.0
      %1451 = vmatpush1.msra.mxu0 0.0
      %1452 = vmatprep.subr.mxu0 0.0
      %1453 = vmatpush1.msra.mxu0 0.0
      %1454 = vmatprep.subr.mxu0 0.0
      %1455 = vmatpush1.msra.mxu0 0.0
      %1456 = vmatprep.subr.mxu0 0.0
      %1457 = vmatpush1.msra.mxu0 0.0
      %1458 = vmatprep.subr.mxu0 0.0
      %1459 = vmatpush1.msra.mxu0 0.0
      %1460 = vmatprep.subr.mxu0 0.0
      %1461 = vmatpush1.msra.mxu0 0.0
      %1462 = vmatprep.subr.mxu0 0.0
      %1463 = vmatpush1.msra.mxu0 0.0
      %1464 = vmatprep.subr.mxu0 0.0
      %1465 = vmatpush1.msra.mxu0 0.0
      %1466 = vmatprep.subr.mxu0 0.0
      %1467 = vmatpush1.msra.mxu0 0.0
      %1468 = vmatprep.subr.mxu0 0.0
      %1469 = vmatpush1.msra.mxu0 0.0
      %1470 = vmatprep.subr.mxu0 0.0
      %1471 = vmatpush1.msra.mxu0 0.0
      %1472 = vmatprep.subr.mxu0 0.0
      %1473 = vmatpush1.msra.mxu0 0.0
      %1474 = vmatprep.subr.mxu0 0.0
      %1475 = vmatpush1.msra.mxu0 0.0
      %1476 = vmatprep.subr.mxu0 0.0
      %1477 = vmatpush1.msra.mxu0 0.0
      %1478 = vmatprep.subr.mxu0 0.0
      %1479 = vmatpush1.msra.mxu0 0.0
      %1480 = vmatprep.subr.mxu0 0.0
      %1481 = vmatpush1.msra.mxu0 0.0
      %1482 = vmatprep.subr.mxu0 0.0
      %1483 = vmatpush1.msra.mxu0 0.0
      %1484 = vmatprep.mubr.f32.mxu0 0.0
      %1485 = vmatmul.mubr.f32.gmra.mrb[0].mxu0 %v1099
      %v1486 = vpop.f32.mrb[0].mxu0
      %v1487 = vadd.f32 0.0, %v1486
      %v1488 = vpop.f32.mrb[0].mxu0
      %1489 = vmatprep.mubr.f32.mxu0 0.0
      %1490 = vmatmul.mubr.f32.gmra.mrb[0].mxu0 %v1102
      %v1491 = vpop.f32.mrb[0].mxu0
      %v1492 = vadd.f32 0.0, %v1491
      %v1493 = vpop.f32.mrb[0].mxu0
      %1494 = vdwg.mxu0
      %1495 = vmatprep.subr.mxu0 0.0
      %1496 = vmatpush1.msra.mxu0 %v1408
      %1497 = vmatprep.subr.mxu0 0.0
      %1498 = vmatpush1.msra.mxu0 %v1409
      %1499 = vmatprep.subr.mxu0 0.0
      %1500 = vmatpush1.msra.mxu0 %v1410
      %1501 = vmatprep.subr.mxu0 0.0
      %1502 = vmatpush1.msra.mxu0 %v1411
      %1503 = vmatprep.subr.mxu0 0.0
      %1504 = vmatpush1.msra.mxu0 0.0
      %1505 = vmatprep.subr.mxu0 0.0
      %1506 = vmatpush1.msra.mxu0 0.0
      %1507 = vmatprep.subr.mxu0 0.0
      %1508 = vmatpush1.msra.mxu0 0.0
      %1509 = vmatprep.subr.mxu0 0.0
      %1510 = vmatpush1.msra.mxu0 0.0
      %1511 = vmatprep.subr.mxu0 0.0
      %1512 = vmatpush1.msra.mxu0 0.0
      %1513 = vmatprep.subr.mxu0 0.0
      %1514 = vmatpush1.msra.mxu0 0.0
      %1515 = vmatprep.subr.mxu0 0.0
      %1516 = vmatpush1.msra.mxu0 0.0
      %1517 = vmatprep.subr.mxu0 0.0
      %1518 = vmatpush1.msra.mxu0 0.0
      %1519 = vmatprep.subr.mxu0 0.0
      %1520 = vmatpush1.msra.mxu0 0.0
      %1521 = vmatprep.subr.mxu0 0.0
      %1522 = vmatpush1.msra.mxu0 0.0
      %1523 = vmatprep.subr.mxu0 0.0
      %1524 = vmatpush1.msra.mxu0 0.0
      %1525 = vmatprep.subr.mxu0 0.0
      %1526 = vmatpush1.msra.mxu0 0.0
      %1527 = vmatprep.subr.mxu0 0.0
      %1528 = vmatpush1.msra.mxu0 0.0
      %1529 = vmatprep.subr.mxu0 0.0
      %1530 = vmatpush1.msra.mxu0 0.0
      %1531 = vmatprep.subr.mxu0 0.0
      %1532 = vmatpush1.msra.mxu0 0.0
      %1533 = vmatprep.subr.mxu0 0.0
      %1534 = vmatpush1.msra.mxu0 0.0
      %1535 = vmatprep.subr.mxu0 0.0
      %1536 = vmatpush1.msra.mxu0 0.0
      %1537 = vmatprep.subr.mxu0 0.0
      %1538 = vmatpush1.msra.mxu0 0.0
      %1539 = vmatprep.subr.mxu0 0.0
      %1540 = vmatpush1.msra.mxu0 0.0
      %1541 = vmatprep.subr.mxu0 0.0
      %1542 = vmatpush1.msra.mxu0 0.0
      %1543 = vmatprep.subr.mxu0 0.0
      %1544 = vmatpush1.msra.mxu0 0.0
      %1545 = vmatprep.subr.mxu0 0.0
      %1546 = vmatpush1.msra.mxu0 0.0
      %1547 = vmatprep.subr.mxu0 0.0
      %1548 = vmatpush1.msra.mxu0 0.0
      %1549 = vmatprep.subr.mxu0 0.0
      %1550 = vmatpush1.msra.mxu0 0.0
      %1551 = vmatprep.subr.mxu0 0.0
      %1552 = vmatpush1.msra.mxu0 0.0
      %1553 = vmatprep.subr.mxu0 0.0
      %1554 = vmatpush1.msra.mxu0 0.0
      %1555 = vmatprep.subr.mxu0 0.0
      %1556 = vmatpush1.msra.mxu0 0.0
      %1557 = vmatprep.subr.mxu0 0.0
      %1558 = vmatpush1.msra.mxu0 0.0
      %1559 = vmatprep.mubr.f32.mxu0 0.0
      %1560 = vmatmul.mubr.f32.gmra.mrb[0].mxu0 %v1099
      %v1561 = vpop.f32.mrb[0].mxu0
      %v1562 = vadd.f32 0.0, %v1561
      %v1563 = vpop.f32.mrb[0].mxu0
      %1564 = vmatprep.mubr.f32.mxu0 0.0
      %1565 = vmatmul.mubr.f32.gmra.mrb[0].mxu0 %v1102
      %v1566 = vpop.f32.mrb[0].mxu0
      %v1567 = vadd.f32 0.0, %v1566
      %v1568 = vpop.f32.mrb[0].mxu0
      %1569 = vdwg.mxu0
      %1570 = vmatprep.subr.mxu0 0.0
      %1571 = vmatpush1.msra.mxu0 %v1412
      %1572 = vmatprep.subr.mxu0 0.0
      %1573 = vmatpush1.msra.mxu0 %v1413
      %1574 = vmatprep.subr.mxu0 0.0
      %1575 = vmatpush1.msra.mxu0 %v1414
      %1576 = vmatprep.subr.mxu0 0.0
      %1577 = vmatpush1.msra.mxu0 %v1415
      %1578 = vmatprep.subr.mxu0 0.0
      %1579 = vmatpush1.msra.mxu0 0.0
      %1580 = vmatprep.subr.mxu0 0.0
      %1581 = vmatpush1.msra.mxu0 0.0
      %1582 = vmatprep.subr.mxu0 0.0
      %1583 = vmatpush1.msra.mxu0 0.0
      %1584 = vmatprep.subr.mxu0 0.0
      %1585 = vmatpush1.msra.mxu0 0.0
      %1586 = vmatprep.subr.mxu0 0.0
      %1587 = vmatpush1.msra.mxu0 0.0
      %1588 = vmatprep.subr.mxu0 0.0
      %1589 = vmatpush1.msra.mxu0 0.0
      %1590 = vmatprep.subr.mxu0 0.0
      %1591 = vmatpush1.msra.mxu0 0.0
      %1592 = vmatprep.subr.mxu0 0.0
      %1593 = vmatpush1.msra.mxu0 0.0
      %1594 = vmatprep.subr.mxu0 0.0
      %1595 = vmatpush1.msra.mxu0 0.0
      %1596 = vmatprep.subr.mxu0 0.0
      %1597 = vmatpush1.msra.mxu0 0.0
      %1598 = vmatprep.subr.mxu0 0.0
      %1599 = vmatpush1.msra.mxu0 0.0
      %1600 = vmatprep.subr.mxu0 0.0
      %1601 = vmatpush1.msra.mxu0 0.0
      %1602 = vmatprep.subr.mxu0 0.0
      %1603 = vmatpush1.msra.mxu0 0.0
      %1604 = vmatprep.subr.mxu0 0.0
      %1605 = vmatpush1.msra.mxu0 0.0
      %1606 = vmatprep.subr.mxu0 0.0
      %1607 = vmatpush1.msra.mxu0 0.0
      %1608 = vmatprep.subr.mxu0 0.0
      %1609 = vmatpush1.msra.mxu0 0.0
      %1610 = vmatprep.subr.mxu0 0.0
      %1611 = vmatpush1.msra.mxu0 0.0
      %1612 = vmatprep.subr.mxu0 0.0
      %1613 = vmatpush1.msra.mxu0 0.0
      %1614 = vmatprep.subr.mxu0 0.0
      %1615 = vmatpush1.msra.mxu0 0.0
      %1616 = vmatprep.subr.mxu0 0.0
      %1617 = vmatpush1.msra.mxu0 0.0
      %1618 = vmatprep.subr.mxu0 0.0
      %1619 = vmatpush1.msra.mxu0 0.0
      %1620 = vmatprep.subr.mxu0 0.0
      %1621 = vmatpush1.msra.mxu0 0.0
      %1622 = vmatprep.subr.mxu0 0.0
      %1623 = vmatpush1.msra.mxu0 0.0
      %1624 = vmatprep.subr.mxu0 0.0
      %1625 = vmatpush1.msra.mxu0 0.0
      %1626 = vmatprep.subr.mxu0 0.0
      %1627 = vmatpush1.msra.mxu0 0.0
      %1628 = vmatprep.subr.mxu0 0.0
      %1629 = vmatpush1.msra.mxu0 0.0
      %1630 = vmatprep.subr.mxu0 0.0
      %1631 = vmatpush1.msra.mxu0 0.0
      %1632 = vmatprep.subr.mxu0 0.0
      %1633 = vmatpush1.msra.mxu0 0.0
      %1634 = vmatprep.mubr.f32.mxu0 0.0
      %1635 = vmatmul.mubr.f32.gmra.mrb[0].mxu0 %v1099
      %v1636 = vpop.f32.mrb[0].mxu0
      %v1637 = vadd.f32 0.0, %v1636
      %v1638 = vpop.f32.mrb[0].mxu0
      %1639 = vmatprep.mubr.f32.mxu0 0.0
      %1640 = vmatmul.mubr.f32.gmra.mrb[0].mxu0 %v1102
      %v1641 = vpop.f32.mrb[0].mxu0
      %v1642 = vadd.f32 0.0, %v1641
      %v1643 = vpop.f32.mrb[0].mxu0
      %1644 = vdwg.mxu0
      %1645 = vmatprep.subr.mxu0 0.0
      %1646 = vmatpush1.msra.mxu0 %v1416
      %1647 = vmatprep.subr.mxu0 0.0
      %1648 = vmatpush1.msra.mxu0 %v1417
      %1649 = vmatprep.subr.mxu0 0.0
      %1650 = vmatpush1.msra.mxu0 %v1418
      %1651 = vmatprep.subr.mxu0 0.0
      %1652 = vmatpush1.msra.mxu0 %v1419
      %1653 = vmatprep.subr.mxu0 0.0
      %1654 = vmatpush1.msra.mxu0 0.0
      %1655 = vmatprep.subr.mxu0 0.0
      %1656 = vmatpush1.msra.mxu0 0.0
      %1657 = vmatprep.subr.mxu0 0.0
      %1658 = vmatpush1.msra.mxu0 0.0
      %1659 = vmatprep.subr.mxu0 0.0
      %1660 = vmatpush1.msra.mxu0 0.0
      %1661 = vmatprep.subr.mxu0 0.0
      %1662 = vmatpush1.msra.mxu0 0.0
      %1663 = vmatprep.subr.mxu0 0.0
      %1664 = vmatpush1.msra.mxu0 0.0
      %1665 = vmatprep.subr.mxu0 0.0
      %1666 = vmatpush1.msra.mxu0 0.0
      %1667 = vmatprep.subr.mxu0 0.0
      %1668 = vmatpush1.msra.mxu0 0.0
      %1669 = vmatprep.subr.mxu0 0.0
      %1670 = vmatpush1.msra.mxu0 0.0
      %1671 = vmatprep.subr.mxu0 0.0
      %1672 = vmatpush1.msra.mxu0 0.0
      %1673 = vmatprep.subr.mxu0 0.0
      %1674 = vmatpush1.msra.mxu0 0.0
      %1675 = vmatprep.subr.mxu0 0.0
      %1676 = vmatpush1.msra.mxu0 0.0
      %1677 = vmatprep.subr.mxu0 0.0
      %1678 = vmatpush1.msra.mxu0 0.0
      %1679 = vmatprep.subr.mxu0 0.0
      %1680 = vmatpush1.msra.mxu0 0.0
      %1681 = vmatprep.subr.mxu0 0.0
      %1682 = vmatpush1.msra.mxu0 0.0
      %1683 = vmatprep.subr.mxu0 0.0
      %1684 = vmatpush1.msra.mxu0 0.0
      %1685 = vmatprep.subr.mxu0 0.0
      %1686 = vmatpush1.msra.mxu0 0.0
      %1687 = vmatprep.subr.mxu0 0.0
      %1688 = vmatpush1.msra.mxu0 0.0
      %1689 = vmatprep.subr.mxu0 0.0
      %1690 = vmatpush1.msra.mxu0 0.0
      %1691 = vmatprep.subr.mxu0 0.0
      %1692 = vmatpush1.msra.mxu0 0.0
      %1693 = vmatprep.subr.mxu0 0.0
      %1694 = vmatpush1.msra.mxu0 0.0
      %1695 = vmatprep.subr.mxu0 0.0
      %1696 = vmatpush1.msra.mxu0 0.0
      %1697 = vmatprep.subr.mxu0 0.0
      %1698 = vmatpush1.msra.mxu0 0.0
      %1699 = vmatprep.subr.mxu0 0.0
      %1700 = vmatpush1.msra.mxu0 0.0
      %1701 = vmatprep.subr.mxu0 0.0
      %1702 = vmatpush1.msra.mxu0 0.0
      %1703 = vmatprep.subr.mxu0 0.0
      %1704 = vmatpush1.msra.mxu0 0.0
      %1705 = vmatprep.subr.mxu0 0.0
      %1706 = vmatpush1.msra.mxu0 0.0
      %1707 = vmatprep.subr.mxu0 0.0
      %1708 = vmatpush1.msra.mxu0 0.0
      %1709 = vmatprep.mubr.f32.mxu0 0.0
      %1710 = vmatmul.mubr.f32.gmra.mrb[0].mxu0 %v1099
      %v1711 = vpop.f32.mrb[0].mxu0
      %v1712 = vadd.f32 0.0, %v1711
      %v1713 = vpop.f32.mrb[0].mxu0
      %1714 = vmatprep.mubr.f32.mxu0 0.0
      %1715 = vmatmul.mubr.f32.gmra.mrb[0].mxu0 %v1102
      %v1716 = vpop.f32.mrb[0].mxu0
      %v1717 = vadd.f32 0.0, %v1716
      %v1718 = vpop.f32.mrb[0].mxu0
      %1719 = vdwg.mxu0
      %v1720 = vlaneseq
      %v1721 = vand.u32 %v1720, 127
      %v1722 = vand.u32 %v1721, 1
      %vm1723 = vcmp.eq.s32.totalorder %v1722, 0
      %1732 = vrot.lane.b32.xlu0 %v849, 127
      %v1733 = vpop.permute.xlu0 %1732
      %1734 = vrot.lane.b32.xlu0 %v854, 127
      %v1735 = vpop.permute.xlu0 %1734
      %1736 = vrot.lane.b32.xlu0 %v924, 127
      %v1737 = vpop.permute.xlu0 %1736
      %1738 = vrot.lane.b32.xlu0 %v929, 127
      %v1739 = vpop.permute.xlu0 %1738
      %1740 = vrot.lane.b32.xlu0 %v999, 127
      %v1741 = vpop.permute.xlu0 %1740
      %1742 = vrot.lane.b32.xlu0 %v1004, 127
      %v1743 = vpop.permute.xlu0 %1742
      %1744 = vrot.lane.b32.xlu0 %v1074, 127
      %v1745 = vpop.permute.xlu0 %1744
      %1746 = vrot.lane.b32.xlu0 %v1079, 127
      %v1747 = vpop.permute.xlu0 %1746
      %1756 = vrot.lane.b32.xlu0 %v849, 7
      %v1757 = vpop.permute.xlu0 %1756
      %1758 = vrot.lane.b32.xlu0 %v854, 7
      %v1759 = vpop.permute.xlu0 %1758
      %1760 = vrot.lane.b32.xlu0 %v924, 7
      %v1761 = vpop.permute.xlu0 %1760
      %1762 = vrot.lane.b32.xlu0 %v929, 7
      %v1763 = vpop.permute.xlu0 %1762
      %1764 = vrot.lane.b32.xlu0 %v999, 7
      %v1765 = vpop.permute.xlu0 %1764
      %1766 = vrot.lane.b32.xlu0 %v1004, 7
      %v1767 = vpop.permute.xlu0 %1766
      %1768 = vrot.lane.b32.xlu0 %v1074, 7
      %v1769 = vpop.permute.xlu0 %1768
      %1770 = vrot.lane.b32.xlu0 %v1079, 7
      %v1771 = vpop.permute.xlu0 %1770
      %vm1780 = vcmask 56320
      %v1781 = vsel %vm1780, %v1733, %v1757
      %v1782 = vsel %vm1780, %v1735, %v1759
      %v1783 = vsel %vm1780, %v1737, %v1761
      %v1784 = vsel %vm1780, %v1739, %v1763
      %v1785 = vsel %vm1780, %v1741, %v1765
      %v1786 = vsel %vm1780, %v1743, %v1767
      %v1787 = vsel %vm1780, %v1745, %v1769
      %v1788 = vsel %vm1780, %v1747, %v1771
      %1789 = vrot.lane.b32.xlu0 %v849, 121
      %v1790 = vpop.permute.xlu0 %1789
      %1791 = vrot.lane.b32.xlu0 %v854, 121
      %v1792 = vpop.permute.xlu0 %1791
      %1793 = vrot.lane.b32.xlu0 %v924, 121
      %v1794 = vpop.permute.xlu0 %1793
      %1795 = vrot.lane.b32.xlu0 %v929, 121
      %v1796 = vpop.permute.xlu0 %1795
      %1797 = vrot.lane.b32.xlu0 %v999, 121
      %v1798 = vpop.permute.xlu0 %1797
      %1799 = vrot.lane.b32.xlu0 %v1004, 121
      %v1800 = vpop.permute.xlu0 %1799
      %1801 = vrot.lane.b32.xlu0 %v1074, 121
      %v1802 = vpop.permute.xlu0 %1801
      %1803 = vrot.lane.b32.xlu0 %v1079, 121
      %v1804 = vpop.permute.xlu0 %1803
      %1813 = vrot.lane.b32.xlu0 %v849, 1
      %v1814 = vpop.permute.xlu0 %1813
      %1815 = vrot.lane.b32.xlu0 %v854, 1
      %v1816 = vpop.permute.xlu0 %1815
      %1817 = vrot.lane.b32.xlu0 %v924, 1
      %v1818 = vpop.permute.xlu0 %1817
      %1819 = vrot.lane.b32.xlu0 %v929, 1
      %v1820 = vpop.permute.xlu0 %1819
      %1821 = vrot.lane.b32.xlu0 %v999, 1
      %v1822 = vpop.permute.xlu0 %1821
      %1823 = vrot.lane.b32.xlu0 %v1004, 1
      %v1824 = vpop.permute.xlu0 %1823
      %1825 = vrot.lane.b32.xlu0 %v1074, 1
      %v1826 = vpop.permute.xlu0 %1825
      %1827 = vrot.lane.b32.xlu0 %v1079, 1
      %v1828 = vpop.permute.xlu0 %1827
      %vm1837 = vcmask 7168
      %v1838 = vsel %vm1837, %v1790, %v1814
      %v1839 = vsel %vm1837, %v1792, %v1816
      %v1840 = vsel %vm1837, %v1794, %v1818
      %v1841 = vsel %vm1837, %v1796, %v1820
      %v1842 = vsel %vm1837, %v1798, %v1822
      %v1843 = vsel %vm1837, %v1800, %v1824
      %v1844 = vsel %vm1837, %v1802, %v1826
      %v1845 = vsel %vm1837, %v1804, %v1828
      %v1846 = vsub.f32 0.0, %v1781
      %v1847 = vsub.f32 0.0, %v1782
      %v1848 = vsub.f32 0.0, %v1783
      %v1849 = vsub.f32 0.0, %v1784
      %v1850 = vsub.f32 0.0, %v1785
      %v1851 = vsub.f32 0.0, %v1786
      %v1852 = vsub.f32 0.0, %v1787
      %v1853 = vsub.f32 0.0, %v1788
      %v1854 = vsel %vm1723, %v1846, %v1838
      %v1855 = vsel %vm1723, %v1847, %v1839
      %v1856 = vsel %vm1723, %v1848, %v1840
      %v1857 = vsel %vm1723, %v1849, %v1841
      %v1858 = vsel %vm1723, %v1850, %v1842
      %v1859 = vsel %vm1723, %v1851, %v1843
      %v1860 = vsel %vm1723, %v1852, %v1844
      %v1861 = vsel %vm1723, %v1853, %v1845
      %v1862 = vmul.f32 %v849, %v744
      %v1863 = vmul.f32 %v854, %v745
      %v1864 = vmul.f32 %v924, %v746
      %v1865 = vmul.f32 %v929, %v747
      %v1866 = vmul.f32 %v999, %v748
      %v1867 = vmul.f32 %v1004, %v749
      %v1868 = vmul.f32 %v1074, %v750
      %v1869 = vmul.f32 %v1079, %v751
      %v1870 = vmul.f32 %v1854, %v752
      %v1871 = vmul.f32 %v1855, %v753
      %v1872 = vmul.f32 %v1856, %v754
      %v1873 = vmul.f32 %v1857, %v755
      %v1874 = vmul.f32 %v1858, %v756
      %v1875 = vmul.f32 %v1859, %v757
      %v1876 = vmul.f32 %v1860, %v758
      %v1877 = vmul.f32 %v1861, %v759
      %v1878 = vadd.f32 %v1862, %v1870
      %v1879 = vadd.f32 %v1863, %v1871
      %v1880 = vadd.f32 %v1864, %v1872
      %v1881 = vadd.f32 %v1865, %v1873
      %v1882 = vadd.f32 %v1866, %v1874
      %v1883 = vadd.f32 %v1867, %v1875
      %v1884 = vadd.f32 %v1868, %v1876
      %v1885 = vadd.f32 %v1869, %v1877
      %1894 = vrot.lane.b32.xlu0 %v1171, 127
      %v1895 = vpop.permute.xlu0 %1894
      %1896 = vrot.lane.b32.xlu0 %v1176, 127
      %v1897 = vpop.permute.xlu0 %1896
      %1898 = vrot.lane.b32.xlu0 %v1246, 127
      %v1899 = vpop.permute.xlu0 %1898
      %1900 = vrot.lane.b32.xlu0 %v1251, 127
      %v1901 = vpop.permute.xlu0 %1900
      %1902 = vrot.lane.b32.xlu0 %v1321, 127
      %v1903 = vpop.permute.xlu0 %1902
      %1904 = vrot.lane.b32.xlu0 %v1326, 127
      %v1905 = vpop.permute.xlu0 %1904
      %1906 = vrot.lane.b32.xlu0 %v1396, 127
      %v1907 = vpop.permute.xlu0 %1906
      %1908 = vrot.lane.b32.xlu0 %v1401, 127
      %v1909 = vpop.permute.xlu0 %1908
      %1918 = vrot.lane.b32.xlu0 %v1171, 7
      %v1919 = vpop.permute.xlu0 %1918
      %1920 = vrot.lane.b32.xlu0 %v1176, 7
      %v1921 = vpop.permute.xlu0 %1920
      %1922 = vrot.lane.b32.xlu0 %v1246, 7
      %v1923 = vpop.permute.xlu0 %1922
      %1924 = vrot.lane.b32.xlu0 %v1251, 7
      %v1925 = vpop.permute.xlu0 %1924
      %1926 = vrot.lane.b32.xlu0 %v1321, 7
      %v1927 = vpop.permute.xlu0 %1926
      %1928 = vrot.lane.b32.xlu0 %v1326, 7
      %v1929 = vpop.permute.xlu0 %1928
      %1930 = vrot.lane.b32.xlu0 %v1396, 7
      %v1931 = vpop.permute.xlu0 %1930
      %1932 = vrot.lane.b32.xlu0 %v1401, 7
      %v1933 = vpop.permute.xlu0 %1932
      %v1942 = vsel %vm1780, %v1895, %v1919
      %v1943 = vsel %vm1780, %v1897, %v1921
      %v1944 = vsel %vm1780, %v1899, %v1923
      %v1945 = vsel %vm1780, %v1901, %v1925
      %v1946 = vsel %vm1780, %v1903, %v1927
      %v1947 = vsel %vm1780, %v1905, %v1929
      %v1948 = vsel %vm1780, %v1907, %v1931
      %v1949 = vsel %vm1780, %v1909, %v1933
      %1950 = vrot.lane.b32.xlu0 %v1171, 121
      %v1951 = vpop.permute.xlu0 %1950
      %1952 = vrot.lane.b32.xlu0 %v1176, 121
      %v1953 = vpop.permute.xlu0 %1952
      %1954 = vrot.lane.b32.xlu0 %v1246, 121
      %v1955 = vpop.permute.xlu0 %1954
      %1956 = vrot.lane.b32.xlu0 %v1251, 121
      %v1957 = vpop.permute.xlu0 %1956
      %1958 = vrot.lane.b32.xlu0 %v1321, 121
      %v1959 = vpop.permute.xlu0 %1958
      %1960 = vrot.lane.b32.xlu0 %v1326, 121
      %v1961 = vpop.permute.xlu0 %1960
      %1962 = vrot.lane.b32.xlu0 %v1396, 121
      %v1963 = vpop.permute.xlu0 %1962
      %1964 = vrot.lane.b32.xlu0 %v1401, 121
      %v1965 = vpop.permute.xlu0 %1964
      %1974 = vrot.lane.b32.xlu0 %v1171, 1
      %v1975 = vpop.permute.xlu0 %1974
      %1976 = vrot.lane.b32.xlu0 %v1176, 1
      %v1977 = vpop.permute.xlu0 %1976
      %1978 = vrot.lane.b32.xlu0 %v1246, 1
      %v1979 = vpop.permute.xlu0 %1978
      %1980 = vrot.lane.b32.xlu0 %v1251, 1
      %v1981 = vpop.permute.xlu0 %1980
      %1982 = vrot.lane.b32.xlu0 %v1321, 1
      %v1983 = vpop.permute.xlu0 %1982
      %1984 = vrot.lane.b32.xlu0 %v1326, 1
      %v1985 = vpop.permute.xlu0 %1984
      %1986 = vrot.lane.b32.xlu0 %v1396, 1
      %v1987 = vpop.permute.xlu0 %1986
      %1988 = vrot.lane.b32.xlu0 %v1401, 1
      %v1989 = vpop.permute.xlu0 %1988
      %v1998 = vsel %vm1837, %v1951, %v1975
      %v1999 = vsel %vm1837, %v1953, %v1977
      %v2000 = vsel %vm1837, %v1955, %v1979
      %v2001 = vsel %vm1837, %v1957, %v1981
      %v2002 = vsel %vm1837, %v1959, %v1983
      %v2003 = vsel %vm1837, %v1961, %v1985
      %v2004 = vsel %vm1837, %v1963, %v1987
      %v2005 = vsel %vm1837, %v1965, %v1989
      %v2006 = vsub.f32 0.0, %v1942
      %v2007 = vsub.f32 0.0, %v1943
      %v2008 = vsub.f32 0.0, %v1944
      %v2009 = vsub.f32 0.0, %v1945
      %v2010 = vsub.f32 0.0, %v1946
      %v2011 = vsub.f32 0.0, %v1947
      %v2012 = vsub.f32 0.0, %v1948
      %v2013 = vsub.f32 0.0, %v1949
      %v2014 = vsel %vm1723, %v2006, %v1998
      %v2015 = vsel %vm1723, %v2007, %v1999
      %v2016 = vsel %vm1723, %v2008, %v2000
      %v2017 = vsel %vm1723, %v2009, %v2001
      %v2018 = vsel %vm1723, %v2010, %v2002
      %v2019 = vsel %vm1723, %v2011, %v2003
      %v2020 = vsel %vm1723, %v2012, %v2004
      %v2021 = vsel %vm1723, %v2013, %v2005
      %v2022 = vmul.f32 %v1171, %v744
      %v2023 = vmul.f32 %v1176, %v745
      %v2024 = vmul.f32 %v1246, %v746
      %v2025 = vmul.f32 %v1251, %v747
      %v2026 = vmul.f32 %v1321, %v748
      %v2027 = vmul.f32 %v1326, %v749
      %v2028 = vmul.f32 %v1396, %v750
      %v2029 = vmul.f32 %v1401, %v751
      %v2030 = vmul.f32 %v2014, %v752
      %v2031 = vmul.f32 %v2015, %v753
      %v2032 = vmul.f32 %v2016, %v754
      %v2033 = vmul.f32 %v2017, %v755
      %v2034 = vmul.f32 %v2018, %v756
      %v2035 = vmul.f32 %v2019, %v757
      %v2036 = vmul.f32 %v2020, %v758
      %v2037 = vmul.f32 %v2021, %v759
      %v2038 = vadd.f32 %v2022, %v2030
      %v2039 = vadd.f32 %v2023, %v2031
      %v2040 = vadd.f32 %v2024, %v2032
      %v2041 = vadd.f32 %v2025, %v2033
      %v2042 = vadd.f32 %v2026, %v2034
      %v2043 = vadd.f32 %v2027, %v2035
      %v2044 = vadd.f32 %v2028, %v2036
      %v2045 = vadd.f32 %v2029, %v2037
      %vm2046 = vcmask 64512
      %v2048 = vsel %vm2046, %v1878, 0
      %v2051 = vsel %vm2046, %v1879, 0
      %v2054 = vsel %vm2046, %v2038, 0
      %v2057 = vsel %vm2046, %v2039, 0
      %2059 = vmatprep.subr.mxu0 0.0
      %2060 = vmatpush1.xpose.msra.mxu0 %v2054
      %2061 = vmatprep.subr.mxu0 0.0
      %2062 = vmatpush1.xpose.msra.mxu0 %v2057
      %2063 = vmatprep.subr.mxu0 0.0
      %2064 = vmatpush1.xpose.msra.mxu0 0.0
      %2065 = vmatprep.subr.mxu0 0.0
      %2066 = vmatpush1.xpose.msra.mxu0 0.0
      %2067 = vmatprep.subr.mxu0 0.0
      %2068 = vmatpush1.xpose.msra.mxu0 0.0
      %2069 = vmatprep.subr.mxu0 0.0
      %2070 = vmatpush1.xpose.msra.mxu0 0.0
      %2071 = vmatprep.subr.mxu0 0.0
      %2072 = vmatpush1.xpose.msra.mxu0 0.0
      %2073 = vmatprep.subr.mxu0 0.0
      %2074 = vmatpush1.xpose.msra.mxu0 0.0
      %2075 = vmatprep.subr.mxu0 0.0
      %2076 = vmatpush1.xpose.msra.mxu0 0.0
      %2077 = vmatprep.subr.mxu0 0.0
      %2078 = vmatpush1.xpose.msra.mxu0 0.0
      %2079 = vmatprep.subr.mxu0 0.0
      %2080 = vmatpush1.xpose.msra.mxu0 0.0
      %2081 = vmatprep.subr.mxu0 0.0
      %2082 = vmatpush1.xpose.msra.mxu0 0.0
      %2083 = vmatprep.subr.mxu0 0.0
      %2084 = vmatpush1.xpose.msra.mxu0 0.0
      %2085 = vmatprep.subr.mxu0 0.0
      %2086 = vmatpush1.xpose.msra.mxu0 0.0
      %2087 = vmatprep.subr.mxu0 0.0
      %2088 = vmatpush1.xpose.msra.mxu0 0.0
      %2089 = vmatprep.subr.mxu0 0.0
      %2090 = vmatpush1.xpose.msra.mxu0 0.0
      %2091 = vmatprep.subr.mxu0 0.0
      %2092 = vmatpush1.xpose.msra.mxu0 0.0
      %2093 = vmatprep.subr.mxu0 0.0
      %2094 = vmatpush1.xpose.msra.mxu0 0.0
      %2095 = vmatprep.subr.mxu0 0.0
      %2096 = vmatpush1.xpose.msra.mxu0 0.0
      %2097 = vmatprep.subr.mxu0 0.0
      %2098 = vmatpush1.xpose.msra.mxu0 0.0
      %2099 = vmatprep.subr.mxu0 0.0
      %2100 = vmatpush1.xpose.msra.mxu0 0.0
      %2101 = vmatprep.subr.mxu0 0.0
      %2102 = vmatpush1.xpose.msra.mxu0 0.0
      %2103 = vmatprep.subr.mxu0 0.0
      %2104 = vmatpush1.xpose.msra.mxu0 0.0
      %2105 = vmatprep.subr.mxu0 0.0
      %2106 = vmatpush1.xpose.msra.mxu0 0.0
      %2107 = vmatprep.subr.mxu0 0.0
      %2108 = vmatpush1.xpose.msra.mxu0 0.0
      %2109 = vmatprep.subr.mxu0 0.0
      %2110 = vmatpush1.xpose.msra.mxu0 0.0
      %2111 = vmatprep.subr.mxu0 0.0
      %2112 = vmatpush1.xpose.msra.mxu0 0.0
      %2113 = vmatprep.subr.mxu0 0.0
      %2114 = vmatpush1.xpose.msra.mxu0 0.0
      %2115 = vmatprep.subr.mxu0 0.0
      %2116 = vmatpush1.xpose.msra.mxu0 0.0
      %2117 = vmatprep.subr.mxu0 0.0
      %2118 = vmatpush1.xpose.msra.mxu0 0.0
      %2119 = vmatprep.subr.mxu0 0.0
      %2120 = vmatpush1.xpose.msra.mxu0 0.0
      %2121 = vmatprep.subr.mxu0 0.0
      %2122 = vmatpush1.xpose.msra.mxu0 0.0
      %2123 = vmatprep.mubr.f32.mxu0 0.0
      %2124 = vmatmul.mubr.f32.gmra.mrb[0].mxu0 %v2048
      %v2125 = vpop.f32.mrb[0].mxu0
      %v2126 = vadd.f32 0.0, %v2125
      %v2127 = vpop.f32.mrb[0].mxu0
      %2128 = vmatprep.mubr.f32.mxu0 0.0
      %2129 = vmatmul.mubr.f32.gmra.mrb[0].mxu0 %v2051
      %v2130 = vpop.f32.mrb[0].mxu0
      %v2131 = vadd.f32 0.0, %v2130
      %v2132 = vpop.f32.mrb[0].mxu0
      %2133 = vdwg.mxu0
      %v2135 = vsel %vm2046, %v1880, 0
      %v2138 = vsel %vm2046, %v1881, 0
      %v2141 = vsel %vm2046, %v2040, 0
      %v2144 = vsel %vm2046, %v2041, 0
      %2146 = vmatprep.subr.mxu0 0.0
      %2147 = vmatpush1.xpose.msra.mxu0 %v2141
      %2148 = vmatprep.subr.mxu0 0.0
      %2149 = vmatpush1.xpose.msra.mxu0 %v2144
      %2150 = vmatprep.subr.mxu0 0.0
      %2151 = vmatpush1.xpose.msra.mxu0 0.0
      %2152 = vmatprep.subr.mxu0 0.0
      %2153 = vmatpush1.xpose.msra.mxu0 0.0
      %2154 = vmatprep.subr.mxu0 0.0
      %2155 = vmatpush1.xpose.msra.mxu0 0.0
      %2156 = vmatprep.subr.mxu0 0.0
      %2157 = vmatpush1.xpose.msra.mxu0 0.0
      %2158 = vmatprep.subr.mxu0 0.0
      %2159 = vmatpush1.xpose.msra.mxu0 0.0
      %2160 = vmatprep.subr.mxu0 0.0
      %2161 = vmatpush1.xpose.msra.mxu0 0.0
      %2162 = vmatprep.subr.mxu0 0.0
      %2163 = vmatpush1.xpose.msra.mxu0 0.0
      %2164 = vmatprep.subr.mxu0 0.0
      %2165 = vmatpush1.xpose.msra.mxu0 0.0
      %2166 = vmatprep.subr.mxu0 0.0
      %2167 = vmatpush1.xpose.msra.mxu0 0.0
      %2168 = vmatprep.subr.mxu0 0.0
      %2169 = vmatpush1.xpose.msra.mxu0 0.0
      %2170 = vmatprep.subr.mxu0 0.0
      %2171 = vmatpush1.xpose.msra.mxu0 0.0
      %2172 = vmatprep.subr.mxu0 0.0
      %2173 = vmatpush1.xpose.msra.mxu0 0.0
      %2174 = vmatprep.subr.mxu0 0.0
      %2175 = vmatpush1.xpose.msra.mxu0 0.0
      %2176 = vmatprep.subr.mxu0 0.0
      %2177 = vmatpush1.xpose.msra.mxu0 0.0
      %2178 = vmatprep.subr.mxu0 0.0
      %2179 = vmatpush1.xpose.msra.mxu0 0.0
      %2180 = vmatprep.subr.mxu0 0.0
      %2181 = vmatpush1.xpose.msra.mxu0 0.0
      %2182 = vmatprep.subr.mxu0 0.0
      %2183 = vmatpush1.xpose.msra.mxu0 0.0
      %2184 = vmatprep.subr.mxu0 0.0
      %2185 = vmatpush1.xpose.msra.mxu0 0.0
      %2186 = vmatprep.subr.mxu0 0.0
      %2187 = vmatpush1.xpose.msra.mxu0 0.0
      %2188 = vmatprep.subr.mxu0 0.0
      %2189 = vmatpush1.xpose.msra.mxu0 0.0
      %2190 = vmatprep.subr.mxu0 0.0
      %2191 = vmatpush1.xpose.msra.mxu0 0.0
      %2192 = vmatprep.subr.mxu0 0.0
      %2193 = vmatpush1.xpose.msra.mxu0 0.0
      %2194 = vmatprep.subr.mxu0 0.0
      %2195 = vmatpush1.xpose.msra.mxu0 0.0
      %2196 = vmatprep.subr.mxu0 0.0
      %2197 = vmatpush1.xpose.msra.mxu0 0.0
      %2198 = vmatprep.subr.mxu0 0.0
      %2199 = vmatpush1.xpose.msra.mxu0 0.0
      %2200 = vmatprep.subr.mxu0 0.0
      %2201 = vmatpush1.xpose.msra.mxu0 0.0
      %2202 = vmatprep.subr.mxu0 0.0
      %2203 = vmatpush1.xpose.msra.mxu0 0.0
      %2204 = vmatprep.subr.mxu0 0.0
      %2205 = vmatpush1.xpose.msra.mxu0 0.0
      %2206 = vmatprep.subr.mxu0 0.0
      %2207 = vmatpush1.xpose.msra.mxu0 0.0
      %2208 = vmatprep.subr.mxu0 0.0
      %2209 = vmatpush1.xpose.msra.mxu0 0.0
      %2210 = vmatprep.mubr.f32.mxu0 0.0
      %2211 = vmatmul.mubr.f32.gmra.mrb[0].mxu0 %v2135
      %v2212 = vpop.f32.mrb[0].mxu0
      %v2213 = vadd.f32 0.0, %v2212
      %v2214 = vpop.f32.mrb[0].mxu0
      %2215 = vmatprep.mubr.f32.mxu0 0.0
      %2216 = vmatmul.mubr.f32.gmra.mrb[0].mxu0 %v2138
      %v2217 = vpop.f32.mrb[0].mxu0
      %v2218 = vadd.f32 0.0, %v2217
      %v2219 = vpop.f32.mrb[0].mxu0
      %2220 = vdwg.mxu0
      %v2222 = vsel %vm2046, %v1882, 0
      %v2225 = vsel %vm2046, %v1883, 0
      %v2228 = vsel %vm2046, %v2042, 0
      %v2231 = vsel %vm2046, %v2043, 0
      %2233 = vmatprep.subr.mxu0 0.0
      %2234 = vmatpush1.xpose.msra.mxu0 %v2228
      %2235 = vmatprep.subr.mxu0 0.0
      %2236 = vmatpush1.xpose.msra.mxu0 %v2231
      %2237 = vmatprep.subr.mxu0 0.0
      %2238 = vmatpush1.xpose.msra.mxu0 0.0
      %2239 = vmatprep.subr.mxu0 0.0
      %2240 = vmatpush1.xpose.msra.mxu0 0.0
      %2241 = vmatprep.subr.mxu0 0.0
      %2242 = vmatpush1.xpose.msra.mxu0 0.0
      %2243 = vmatprep.subr.mxu0 0.0
      %2244 = vmatpush1.xpose.msra.mxu0 0.0
      %2245 = vmatprep.subr.mxu0 0.0
      %2246 = vmatpush1.xpose.msra.mxu0 0.0
      %2247 = vmatprep.subr.mxu0 0.0
      %2248 = vmatpush1.xpose.msra.mxu0 0.0
      %2249 = vmatprep.subr.mxu0 0.0
      %2250 = vmatpush1.xpose.msra.mxu0 0.0
      %2251 = vmatprep.subr.mxu0 0.0
      %2252 = vmatpush1.xpose.msra.mxu0 0.0
      %2253 = vmatprep.subr.mxu0 0.0
      %2254 = vmatpush1.xpose.msra.mxu0 0.0
      %2255 = vmatprep.subr.mxu0 0.0
      %2256 = vmatpush1.xpose.msra.mxu0 0.0
      %2257 = vmatprep.subr.mxu0 0.0
      %2258 = vmatpush1.xpose.msra.mxu0 0.0
      %2259 = vmatprep.subr.mxu0 0.0
      %2260 = vmatpush1.xpose.msra.mxu0 0.0
      %2261 = vmatprep.subr.mxu0 0.0
      %2262 = vmatpush1.xpose.msra.mxu0 0.0
      %2263 = vmatprep.subr.mxu0 0.0
      %2264 = vmatpush1.xpose.msra.mxu0 0.0
      %2265 = vmatprep.subr.mxu0 0.0
      %2266 = vmatpush1.xpose.msra.mxu0 0.0
      %2267 = vmatprep.subr.mxu0 0.0
      %2268 = vmatpush1.xpose.msra.mxu0 0.0
      %2269 = vmatprep.subr.mxu0 0.0
      %2270 = vmatpush1.xpose.msra.mxu0 0.0
      %2271 = vmatprep.subr.mxu0 0.0
      %2272 = vmatpush1.xpose.msra.mxu0 0.0
      %2273 = vmatprep.subr.mxu0 0.0
      %2274 = vmatpush1.xpose.msra.mxu0 0.0
      %2275 = vmatprep.subr.mxu0 0.0
      %2276 = vmatpush1.xpose.msra.mxu0 0.0
      %2277 = vmatprep.subr.mxu0 0.0
      %2278 = vmatpush1.xpose.msra.mxu0 0.0
      %2279 = vmatprep.subr.mxu0 0.0
      %2280 = vmatpush1.xpose.msra.mxu0 0.0
      %2281 = vmatprep.subr.mxu0 0.0
      %2282 = vmatpush1.xpose.msra.mxu0 0.0
      %2283 = vmatprep.subr.mxu0 0.0
      %2284 = vmatpush1.xpose.msra.mxu0 0.0
      %2285 = vmatprep.subr.mxu0 0.0
      %2286 = vmatpush1.xpose.msra.mxu0 0.0
      %2287 = vmatprep.subr.mxu0 0.0
      %2288 = vmatpush1.xpose.msra.mxu0 0.0
      %2289 = vmatprep.subr.mxu0 0.0
      %2290 = vmatpush1.xpose.msra.mxu0 0.0
      %2291 = vmatprep.subr.mxu0 0.0
      %2292 = vmatpush1.xpose.msra.mxu0 0.0
      %2293 = vmatprep.subr.mxu0 0.0
      %2294 = vmatpush1.xpose.msra.mxu0 0.0
      %2295 = vmatprep.subr.mxu0 0.0
      %2296 = vmatpush1.xpose.msra.mxu0 0.0
      %2297 = vmatprep.mubr.f32.mxu0 0.0
      %2298 = vmatmul.mubr.f32.gmra.mrb[0].mxu0 %v2222
      %v2299 = vpop.f32.mrb[0].mxu0
      %v2300 = vadd.f32 0.0, %v2299
      %v2301 = vpop.f32.mrb[0].mxu0
      %2302 = vmatprep.mubr.f32.mxu0 0.0
      %2303 = vmatmul.mubr.f32.gmra.mrb[0].mxu0 %v2225
      %v2304 = vpop.f32.mrb[0].mxu0
      %v2305 = vadd.f32 0.0, %v2304
      %v2306 = vpop.f32.mrb[0].mxu0
      %2307 = vdwg.mxu0
      %v2309 = vsel %vm2046, %v1884, 0
      %v2312 = vsel %vm2046, %v1885, 0
      %v2315 = vsel %vm2046, %v2044, 0
      %v2318 = vsel %vm2046, %v2045, 0
      %2320 = vmatprep.subr.mxu0 0.0
      %2321 = vmatpush1.xpose.msra.mxu0 %v2315
      %2322 = vmatprep.subr.mxu0 0.0
      %2323 = vmatpush1.xpose.msra.mxu0 %v2318
      %2324 = vmatprep.subr.mxu0 0.0
      %2325 = vmatpush1.xpose.msra.mxu0 0.0
      %2326 = vmatprep.subr.mxu0 0.0
      %2327 = vmatpush1.xpose.msra.mxu0 0.0
      %2328 = vmatprep.subr.mxu0 0.0
      %2329 = vmatpush1.xpose.msra.mxu0 0.0
      %2330 = vmatprep.subr.mxu0 0.0
      %2331 = vmatpush1.xpose.msra.mxu0 0.0
      %2332 = vmatprep.subr.mxu0 0.0
      %2333 = vmatpush1.xpose.msra.mxu0 0.0
      %2334 = vmatprep.subr.mxu0 0.0
      %2335 = vmatpush1.xpose.msra.mxu0 0.0
      %2336 = vmatprep.subr.mxu0 0.0
      %2337 = vmatpush1.xpose.msra.mxu0 0.0
      %2338 = vmatprep.subr.mxu0 0.0
      %2339 = vmatpush1.xpose.msra.mxu0 0.0
      %2340 = vmatprep.subr.mxu0 0.0
      %2341 = vmatpush1.xpose.msra.mxu0 0.0
      %2342 = vmatprep.subr.mxu0 0.0
      %2343 = vmatpush1.xpose.msra.mxu0 0.0
      %2344 = vmatprep.subr.mxu0 0.0
      %2345 = vmatpush1.xpose.msra.mxu0 0.0
      %2346 = vmatprep.subr.mxu0 0.0
      %2347 = vmatpush1.xpose.msra.mxu0 0.0
      %2348 = vmatprep.subr.mxu0 0.0
      %2349 = vmatpush1.xpose.msra.mxu0 0.0
      %2350 = vmatprep.subr.mxu0 0.0
      %2351 = vmatpush1.xpose.msra.mxu0 0.0
      %2352 = vmatprep.subr.mxu0 0.0
      %2353 = vmatpush1.xpose.msra.mxu0 0.0
      %2354 = vmatprep.subr.mxu0 0.0
      %2355 = vmatpush1.xpose.msra.mxu0 0.0
      %2356 = vmatprep.subr.mxu0 0.0
      %2357 = vmatpush1.xpose.msra.mxu0 0.0
      %2358 = vmatprep.subr.mxu0 0.0
      %2359 = vmatpush1.xpose.msra.mxu0 0.0
      %2360 = vmatprep.subr.mxu0 0.0
      %2361 = vmatpush1.xpose.msra.mxu0 0.0
      %2362 = vmatprep.subr.mxu0 0.0
      %2363 = vmatpush1.xpose.msra.mxu0 0.0
      %2364 = vmatprep.subr.mxu0 0.0
      %2365 = vmatpush1.xpose.msra.mxu0 0.0
      %2366 = vmatprep.subr.mxu0 0.0
      %2367 = vmatpush1.xpose.msra.mxu0 0.0
      %2368 = vmatprep.subr.mxu0 0.0
      %2369 = vmatpush1.xpose.msra.mxu0 0.0
      %2370 = vmatprep.subr.mxu0 0.0
      %2371 = vmatpush1.xpose.msra.mxu0 0.0
      %2372 = vmatprep.subr.mxu0 0.0
      %2373 = vmatpush1.xpose.msra.mxu0 0.0
      %2374 = vmatprep.subr.mxu0 0.0
      %2375 = vmatpush1.xpose.msra.mxu0 0.0
      %2376 = vmatprep.subr.mxu0 0.0
      %2377 = vmatpush1.xpose.msra.mxu0 0.0
      %2378 = vmatprep.subr.mxu0 0.0
      %2379 = vmatpush1.xpose.msra.mxu0 0.0
      %2380 = vmatprep.subr.mxu0 0.0
      %2381 = vmatpush1.xpose.msra.mxu0 0.0
      %2382 = vmatprep.subr.mxu0 0.0
      %2383 = vmatpush1.xpose.msra.mxu0 0.0
      %2384 = vmatprep.mubr.f32.mxu0 0.0
      %2385 = vmatmul.mubr.f32.gmra.mrb[0].mxu0 %v2309
      %v2386 = vpop.f32.mrb[0].mxu0
      %v2387 = vadd.f32 0.0, %v2386
      %v2388 = vpop.f32.mrb[0].mxu0
      %2389 = vmatprep.mubr.f32.mxu0 0.0
      %2390 = vmatmul.mubr.f32.gmra.mrb[0].mxu0 %v2312
      %v2391 = vpop.f32.mrb[0].mxu0
      %v2392 = vadd.f32 0.0, %v2391
      %v2393 = vpop.f32.mrb[0].mxu0
      %2394 = vdwg.mxu0
      %v2395 = vmul.f32 %v2126, 0.35355338
      %v2396 = vmul.f32 %v2131, 0.35355338
      %v2397 = vmul.f32 %v2213, 0.35355338
      %v2398 = vmul.f32 %v2218, 0.35355338
      %v2399 = vmul.f32 %v2300, 0.35355338
      %v2400 = vmul.f32 %v2305, 0.35355338
      %v2401 = vmul.f32 %v2387, 0.35355338
      %v2402 = vmul.f32 %v2392, 0.35355338
      %vm2403 = vcmask 130048
      %v2404 = vsel %vm2403, %v2395, -inf
      %2405 = vmax.xlane.f32.xlu0 %v2404
      %v2406 = vpop.xlane.xlu0 %2405
      %v2407 = vsel %vm2403, %v2396, -inf
      %2408 = vmax.xlane.f32.xlu0 %v2407
      %v2409 = vpop.xlane.xlu0 %2408
      %v2410 = vsel %vm2403, %v2397, -inf
      %2411 = vmax.xlane.f32.xlu0 %v2410
      %v2412 = vpop.xlane.xlu0 %2411
      %v2413 = vsel %vm2403, %v2398, -inf
      %2414 = vmax.xlane.f32.xlu0 %v2413
      %v2415 = vpop.xlane.xlu0 %2414
      %v2416 = vsel %vm2403, %v2399, -inf
      %2417 = vmax.xlane.f32.xlu0 %v2416
      %v2418 = vpop.xlane.xlu0 %2417
      %v2419 = vsel %vm2403, %v2400, -inf
      %2420 = vmax.xlane.f32.xlu0 %v2419
      %v2421 = vpop.xlane.xlu0 %2420
      %v2422 = vsel %vm2403, %v2401, -inf
      %2423 = vmax.xlane.f32.xlu0 %v2422
      %v2424 = vpop.xlane.xlu0 %2423
      %v2425 = vsel %vm2403, %v2402, -inf
      %2426 = vmax.xlane.f32.xlu0 %v2425
      %v2427 = vpop.xlane.xlu0 %2426
      %v2428 = vsub.f32 %v2395, %v2406
      %v2429 = vsub.f32 %v2396, %v2409
      %v2430 = vsub.f32 %v2397, %v2412
      %v2431 = vsub.f32 %v2398, %v2415
      %v2432 = vsub.f32 %v2399, %v2418
      %v2433 = vsub.f32 %v2400, %v2421
      %v2434 = vsub.f32 %v2401, %v2424
      %v2435 = vsub.f32 %v2402, %v2427
      %v2436 = vmul.f32 %v2428, 1.442695
      %v2437 = vpow.pop %v2436
      %v2438 = vmul.f32 %v2429, 1.442695
      %v2439 = vpow.pop %v2438
      %v2440 = vmul.f32 %v2430, 1.442695
      %v2441 = vpow.pop %v2440
      %v2442 = vmul.f32 %v2431, 1.442695
      %v2443 = vpow.pop %v2442
      %v2444 = vmul.f32 %v2432, 1.442695
      %v2445 = vpow.pop %v2444
      %v2446 = vmul.f32 %v2433, 1.442695
      %v2447 = vpow.pop %v2446
      %v2448 = vmul.f32 %v2434, 1.442695
      %v2449 = vpow.pop %v2448
      %v2450 = vmul.f32 %v2435, 1.442695
      %v2451 = vpow.pop %v2450
      %v2452 = vsel %vm2403, %v2437, 0.0
      %2453 = vadd.xlane.f32.xlu0 %v2452
      %v2454 = vpop.xlane.xlu0 %2453
      %v2455 = vsel %vm2403, %v2439, 0.0
      %2456 = vadd.xlane.f32.xlu0 %v2455
      %v2457 = vpop.xlane.xlu0 %2456
      %v2458 = vsel %vm2403, %v2441, 0.0
      %2459 = vadd.xlane.f32.xlu0 %v2458
      %v2460 = vpop.xlane.xlu0 %2459
      %v2461 = vsel %vm2403, %v2443, 0.0
      %2462 = vadd.xlane.f32.xlu0 %v2461
      %v2463 = vpop.xlane.xlu0 %2462
      %v2464 = vsel %vm2403, %v2445, 0.0
      %2465 = vadd.xlane.f32.xlu0 %v2464
      %v2466 = vpop.xlane.xlu0 %2465
      %v2467 = vsel %vm2403, %v2447, 0.0
      %2468 = vadd.xlane.f32.xlu0 %v2467
      %v2469 = vpop.xlane.xlu0 %2468
      %v2470 = vsel %vm2403, %v2449, 0.0
      %2471 = vadd.xlane.f32.xlu0 %v2470
      %v2472 = vpop.xlane.xlu0 %2471
      %v2473 = vsel %vm2403, %v2451, 0.0
      %2474 = vadd.xlane.f32.xlu0 %v2473
      %v2475 = vpop.xlane.xlu0 %2474
      %v2476 = vrcp.pop %v2454
      %v2477 = vrcp.pop %v2457
      %v2478 = vrcp.pop %v2460
      %v2479 = vrcp.pop %v2463
      %v2480 = vrcp.pop %v2466
      %v2481 = vrcp.pop %v2469
      %v2482 = vrcp.pop %v2472
      %v2483 = vrcp.pop %v2475
      %v2484 = vmul.f32 %v2437, %v2476
      %v2485 = vmul.f32 %v2439, %v2477
      %v2486 = vmul.f32 %v2441, %v2478
      %v2487 = vmul.f32 %v2443, %v2479
      %v2488 = vmul.f32 %v2445, %v2480
      %v2489 = vmul.f32 %v2447, %v2481
      %v2490 = vmul.f32 %v2449, %v2482
      %v2491 = vmul.f32 %v2451, %v2483
      %v2493 = vsel %vm2403, %v2484, 0
      %v2496 = vsel %vm2403, %v2485, 0
      %2498 = vmatprep.subr.mxu0 0.0
      %2499 = vmatpush1.msra.mxu0 %v1487
      %2500 = vmatprep.subr.mxu0 0.0
      %2501 = vmatpush1.msra.mxu0 %v1492
      %2502 = vmatprep.subr.mxu0 0.0
      %2503 = vmatpush1.msra.mxu0 0.0
      %2504 = vmatprep.subr.mxu0 0.0
      %2505 = vmatpush1.msra.mxu0 0.0
      %2506 = vmatprep.subr.mxu0 0.0
      %2507 = vmatpush1.msra.mxu0 0.0
      %2508 = vmatprep.subr.mxu0 0.0
      %2509 = vmatpush1.msra.mxu0 0.0
      %2510 = vmatprep.subr.mxu0 0.0
      %2511 = vmatpush1.msra.mxu0 0.0
      %2512 = vmatprep.subr.mxu0 0.0
      %2513 = vmatpush1.msra.mxu0 0.0
      %2514 = vmatprep.subr.mxu0 0.0
      %2515 = vmatpush1.msra.mxu0 0.0
      %2516 = vmatprep.subr.mxu0 0.0
      %2517 = vmatpush1.msra.mxu0 0.0
      %2518 = vmatprep.subr.mxu0 0.0
      %2519 = vmatpush1.msra.mxu0 0.0
      %2520 = vmatprep.subr.mxu0 0.0
      %2521 = vmatpush1.msra.mxu0 0.0
      %2522 = vmatprep.subr.mxu0 0.0
      %2523 = vmatpush1.msra.mxu0 0.0
      %2524 = vmatprep.subr.mxu0 0.0
      %2525 = vmatpush1.msra.mxu0 0.0
      %2526 = vmatprep.subr.mxu0 0.0
      %2527 = vmatpush1.msra.mxu0 0.0
      %2528 = vmatprep.subr.mxu0 0.0
      %2529 = vmatpush1.msra.mxu0 0.0
      %2530 = vmatprep.subr.mxu0 0.0
      %2531 = vmatpush1.msra.mxu0 0.0
      %2532 = vmatprep.subr.mxu0 0.0
      %2533 = vmatpush1.msra.mxu0 0.0
      %2534 = vmatprep.subr.mxu0 0.0
      %2535 = vmatpush1.msra.mxu0 0.0
      %2536 = vmatprep.subr.mxu0 0.0
      %2537 = vmatpush1.msra.mxu0 0.0
      %2538 = vmatprep.subr.mxu0 0.0
      %2539 = vmatpush1.msra.mxu0 0.0
      %2540 = vmatprep.subr.mxu0 0.0
      %2541 = vmatpush1.msra.mxu0 0.0
      %2542 = vmatprep.subr.mxu0 0.0
      %2543 = vmatpush1.msra.mxu0 0.0
      %2544 = vmatprep.subr.mxu0 0.0
      %2545 = vmatpush1.msra.mxu0 0.0
      %2546 = vmatprep.subr.mxu0 0.0
      %2547 = vmatpush1.msra.mxu0 0.0
      %2548 = vmatprep.subr.mxu0 0.0
      %2549 = vmatpush1.msra.mxu0 0.0
      %2550 = vmatprep.subr.mxu0 0.0
      %2551 = vmatpush1.msra.mxu0 0.0
      %2552 = vmatprep.subr.mxu0 0.0
      %2553 = vmatpush1.msra.mxu0 0.0
      %2554 = vmatprep.subr.mxu0 0.0
      %2555 = vmatpush1.msra.mxu0 0.0
      %2556 = vmatprep.subr.mxu0 0.0
      %2557 = vmatpush1.msra.mxu0 0.0
      %2558 = vmatprep.subr.mxu0 0.0
      %2559 = vmatpush1.msra.mxu0 0.0
      %2560 = vmatprep.subr.mxu0 0.0
      %2561 = vmatpush1.msra.mxu0 0.0
      %2562 = vmatprep.mubr.f32.mxu0 0.0
      %2563 = vmatmul.mubr.f32.gmra.mrb[0].mxu0 %v2493
      %v2564 = vpop.f32.mrb[0].mxu0
      %v2565 = vadd.f32 0.0, %v2564
      %v2566 = vpop.f32.mrb[0].mxu0
      %2567 = vmatprep.mubr.f32.mxu0 0.0
      %2568 = vmatmul.mubr.f32.gmra.mrb[0].mxu0 %v2496
      %v2569 = vpop.f32.mrb[0].mxu0
      %v2570 = vadd.f32 0.0, %v2569
      %v2571 = vpop.f32.mrb[0].mxu0
      %2572 = vdwg.mxu0
      %v2574 = vsel %vm2403, %v2486, 0
      %v2577 = vsel %vm2403, %v2487, 0
      %2579 = vmatprep.subr.mxu0 0.0
      %2580 = vmatpush1.msra.mxu0 %v1562
      %2581 = vmatprep.subr.mxu0 0.0
      %2582 = vmatpush1.msra.mxu0 %v1567
      %2583 = vmatprep.subr.mxu0 0.0
      %2584 = vmatpush1.msra.mxu0 0.0
      %2585 = vmatprep.subr.mxu0 0.0
      %2586 = vmatpush1.msra.mxu0 0.0
      %2587 = vmatprep.subr.mxu0 0.0
      %2588 = vmatpush1.msra.mxu0 0.0
      %2589 = vmatprep.subr.mxu0 0.0
      %2590 = vmatpush1.msra.mxu0 0.0
      %2591 = vmatprep.subr.mxu0 0.0
      %2592 = vmatpush1.msra.mxu0 0.0
      %2593 = vmatprep.subr.mxu0 0.0
      %2594 = vmatpush1.msra.mxu0 0.0
      %2595 = vmatprep.subr.mxu0 0.0
      %2596 = vmatpush1.msra.mxu0 0.0
      %2597 = vmatprep.subr.mxu0 0.0
      %2598 = vmatpush1.msra.mxu0 0.0
      %2599 = vmatprep.subr.mxu0 0.0
      %2600 = vmatpush1.msra.mxu0 0.0
      %2601 = vmatprep.subr.mxu0 0.0
      %2602 = vmatpush1.msra.mxu0 0.0
      %2603 = vmatprep.subr.mxu0 0.0
      %2604 = vmatpush1.msra.mxu0 0.0
      %2605 = vmatprep.subr.mxu0 0.0
      %2606 = vmatpush1.msra.mxu0 0.0
      %2607 = vmatprep.subr.mxu0 0.0
      %2608 = vmatpush1.msra.mxu0 0.0
      %2609 = vmatprep.subr.mxu0 0.0
      %2610 = vmatpush1.msra.mxu0 0.0
      %2611 = vmatprep.subr.mxu0 0.0
      %2612 = vmatpush1.msra.mxu0 0.0
      %2613 = vmatprep.subr.mxu0 0.0
      %2614 = vmatpush1.msra.mxu0 0.0
      %2615 = vmatprep.subr.mxu0 0.0
      %2616 = vmatpush1.msra.mxu0 0.0
      %2617 = vmatprep.subr.mxu0 0.0
      %2618 = vmatpush1.msra.mxu0 0.0
      %2619 = vmatprep.subr.mxu0 0.0
      %2620 = vmatpush1.msra.mxu0 0.0
      %2621 = vmatprep.subr.mxu0 0.0
      %2622 = vmatpush1.msra.mxu0 0.0
      %2623 = vmatprep.subr.mxu0 0.0
      %2624 = vmatpush1.msra.mxu0 0.0
      %2625 = vmatprep.subr.mxu0 0.0
      %2626 = vmatpush1.msra.mxu0 0.0
      %2627 = vmatprep.subr.mxu0 0.0
      %2628 = vmatpush1.msra.mxu0 0.0
      %2629 = vmatprep.subr.mxu0 0.0
      %2630 = vmatpush1.msra.mxu0 0.0
      %2631 = vmatprep.subr.mxu0 0.0
      %2632 = vmatpush1.msra.mxu0 0.0
      %2633 = vmatprep.subr.mxu0 0.0
      %2634 = vmatpush1.msra.mxu0 0.0
      %2635 = vmatprep.subr.mxu0 0.0
      %2636 = vmatpush1.msra.mxu0 0.0
      %2637 = vmatprep.subr.mxu0 0.0
      %2638 = vmatpush1.msra.mxu0 0.0
      %2639 = vmatprep.subr.mxu0 0.0
      %2640 = vmatpush1.msra.mxu0 0.0
      %2641 = vmatprep.subr.mxu0 0.0
      %2642 = vmatpush1.msra.mxu0 0.0
      %2643 = vmatprep.mubr.f32.mxu0 0.0
      %2644 = vmatmul.mubr.f32.gmra.mrb[0].mxu0 %v2574
      %v2645 = vpop.f32.mrb[0].mxu0
      %v2646 = vadd.f32 0.0, %v2645
      %v2647 = vpop.f32.mrb[0].mxu0
      %2648 = vmatprep.mubr.f32.mxu0 0.0
      %2649 = vmatmul.mubr.f32.gmra.mrb[0].mxu0 %v2577
      %v2650 = vpop.f32.mrb[0].mxu0
      %v2651 = vadd.f32 0.0, %v2650
      %v2652 = vpop.f32.mrb[0].mxu0
      %2653 = vdwg.mxu0
      %v2655 = vsel %vm2403, %v2488, 0
      %v2658 = vsel %vm2403, %v2489, 0
      %2660 = vmatprep.subr.mxu0 0.0
      %2661 = vmatpush1.msra.mxu0 %v1637
      %2662 = vmatprep.subr.mxu0 0.0
      %2663 = vmatpush1.msra.mxu0 %v1642
      %2664 = vmatprep.subr.mxu0 0.0
      %2665 = vmatpush1.msra.mxu0 0.0
      %2666 = vmatprep.subr.mxu0 0.0
      %2667 = vmatpush1.msra.mxu0 0.0
      %2668 = vmatprep.subr.mxu0 0.0
      %2669 = vmatpush1.msra.mxu0 0.0
      %2670 = vmatprep.subr.mxu0 0.0
      %2671 = vmatpush1.msra.mxu0 0.0
      %2672 = vmatprep.subr.mxu0 0.0
      %2673 = vmatpush1.msra.mxu0 0.0
      %2674 = vmatprep.subr.mxu0 0.0
      %2675 = vmatpush1.msra.mxu0 0.0
      %2676 = vmatprep.subr.mxu0 0.0
      %2677 = vmatpush1.msra.mxu0 0.0
      %2678 = vmatprep.subr.mxu0 0.0
      %2679 = vmatpush1.msra.mxu0 0.0
      %2680 = vmatprep.subr.mxu0 0.0
      %2681 = vmatpush1.msra.mxu0 0.0
      %2682 = vmatprep.subr.mxu0 0.0
      %2683 = vmatpush1.msra.mxu0 0.0
      %2684 = vmatprep.subr.mxu0 0.0
      %2685 = vmatpush1.msra.mxu0 0.0
      %2686 = vmatprep.subr.mxu0 0.0
      %2687 = vmatpush1.msra.mxu0 0.0
      %2688 = vmatprep.subr.mxu0 0.0
      %2689 = vmatpush1.msra.mxu0 0.0
      %2690 = vmatprep.subr.mxu0 0.0
      %2691 = vmatpush1.msra.mxu0 0.0
      %2692 = vmatprep.subr.mxu0 0.0
      %2693 = vmatpush1.msra.mxu0 0.0
      %2694 = vmatprep.subr.mxu0 0.0
      %2695 = vmatpush1.msra.mxu0 0.0
      %2696 = vmatprep.subr.mxu0 0.0
      %2697 = vmatpush1.msra.mxu0 0.0
      %2698 = vmatprep.subr.mxu0 0.0
      %2699 = vmatpush1.msra.mxu0 0.0
      %2700 = vmatprep.subr.mxu0 0.0
      %2701 = vmatpush1.msra.mxu0 0.0
      %2702 = vmatprep.subr.mxu0 0.0
      %2703 = vmatpush1.msra.mxu0 0.0
      %2704 = vmatprep.subr.mxu0 0.0
      %2705 = vmatpush1.msra.mxu0 0.0
      %2706 = vmatprep.subr.mxu0 0.0
      %2707 = vmatpush1.msra.mxu0 0.0
      %2708 = vmatprep.subr.mxu0 0.0
      %2709 = vmatpush1.msra.mxu0 0.0
      %2710 = vmatprep.subr.mxu0 0.0
      %2711 = vmatpush1.msra.mxu0 0.0
      %2712 = vmatprep.subr.mxu0 0.0
      %2713 = vmatpush1.msra.mxu0 0.0
      %2714 = vmatprep.subr.mxu0 0.0
      %2715 = vmatpush1.msra.mxu0 0.0
      %2716 = vmatprep.subr.mxu0 0.0
      %2717 = vmatpush1.msra.mxu0 0.0
      %2718 = vmatprep.subr.mxu0 0.0
      %2719 = vmatpush1.msra.mxu0 0.0
      %2720 = vmatprep.subr.mxu0 0.0
      %2721 = vmatpush1.msra.mxu0 0.0
      %2722 = vmatprep.subr.mxu0 0.0
      %2723 = vmatpush1.msra.mxu0 0.0
      %2724 = vmatprep.mubr.f32.mxu0 0.0
      %2725 = vmatmul.mubr.f32.gmra.mrb[0].mxu0 %v2655
      %v2726 = vpop.f32.mrb[0].mxu0
      %v2727 = vadd.f32 0.0, %v2726
      %v2728 = vpop.f32.mrb[0].mxu0
      %2729 = vmatprep.mubr.f32.mxu0 0.0
      %2730 = vmatmul.mubr.f32.gmra.mrb[0].mxu0 %v2658
      %v2731 = vpop.f32.mrb[0].mxu0
      %v2732 = vadd.f32 0.0, %v2731
      %v2733 = vpop.f32.mrb[0].mxu0
      %2734 = vdwg.mxu0
      %v2736 = vsel %vm2403, %v2490, 0
      %v2739 = vsel %vm2403, %v2491, 0
      %2741 = vmatprep.subr.mxu0 0.0
      %2742 = vmatpush1.msra.mxu0 %v1712
      %2743 = vmatprep.subr.mxu0 0.0
      %2744 = vmatpush1.msra.mxu0 %v1717
      %2745 = vmatprep.subr.mxu0 0.0
      %2746 = vmatpush1.msra.mxu0 0.0
      %2747 = vmatprep.subr.mxu0 0.0
      %2748 = vmatpush1.msra.mxu0 0.0
      %2749 = vmatprep.subr.mxu0 0.0
      %2750 = vmatpush1.msra.mxu0 0.0
      %2751 = vmatprep.subr.mxu0 0.0
      %2752 = vmatpush1.msra.mxu0 0.0
      %2753 = vmatprep.subr.mxu0 0.0
      %2754 = vmatpush1.msra.mxu0 0.0
      %2755 = vmatprep.subr.mxu0 0.0
      %2756 = vmatpush1.msra.mxu0 0.0
      %2757 = vmatprep.subr.mxu0 0.0
      %2758 = vmatpush1.msra.mxu0 0.0
      %2759 = vmatprep.subr.mxu0 0.0
      %2760 = vmatpush1.msra.mxu0 0.0
      %2761 = vmatprep.subr.mxu0 0.0
      %2762 = vmatpush1.msra.mxu0 0.0
      %2763 = vmatprep.subr.mxu0 0.0
      %2764 = vmatpush1.msra.mxu0 0.0
      %2765 = vmatprep.subr.mxu0 0.0
      %2766 = vmatpush1.msra.mxu0 0.0
      %2767 = vmatprep.subr.mxu0 0.0
      %2768 = vmatpush1.msra.mxu0 0.0
      %2769 = vmatprep.subr.mxu0 0.0
      %2770 = vmatpush1.msra.mxu0 0.0
      %2771 = vmatprep.subr.mxu0 0.0
      %2772 = vmatpush1.msra.mxu0 0.0
      %2773 = vmatprep.subr.mxu0 0.0
      %2774 = vmatpush1.msra.mxu0 0.0
      %2775 = vmatprep.subr.mxu0 0.0
      %2776 = vmatpush1.msra.mxu0 0.0
      %2777 = vmatprep.subr.mxu0 0.0
      %2778 = vmatpush1.msra.mxu0 0.0
      %2779 = vmatprep.subr.mxu0 0.0
      %2780 = vmatpush1.msra.mxu0 0.0
      %2781 = vmatprep.subr.mxu0 0.0
      %2782 = vmatpush1.msra.mxu0 0.0
      %2783 = vmatprep.subr.mxu0 0.0
      %2784 = vmatpush1.msra.mxu0 0.0
      %2785 = vmatprep.subr.mxu0 0.0
      %2786 = vmatpush1.msra.mxu0 0.0
      %2787 = vmatprep.subr.mxu0 0.0
      %2788 = vmatpush1.msra.mxu0 0.0
      %2789 = vmatprep.subr.mxu0 0.0
      %2790 = vmatpush1.msra.mxu0 0.0
      %2791 = vmatprep.subr.mxu0 0.0
      %2792 = vmatpush1.msra.mxu0 0.0
      %2793 = vmatprep.subr.mxu0 0.0
      %2794 = vmatpush1.msra.mxu0 0.0
      %2795 = vmatprep.subr.mxu0 0.0
      %2796 = vmatpush1.msra.mxu0 0.0
      %2797 = vmatprep.subr.mxu0 0.0
      %2798 = vmatpush1.msra.mxu0 0.0
      %2799 = vmatprep.subr.mxu0 0.0
      %2800 = vmatpush1.msra.mxu0 0.0
      %2801 = vmatprep.subr.mxu0 0.0
      %2802 = vmatpush1.msra.mxu0 0.0
      %2803 = vmatprep.subr.mxu0 0.0
      %2804 = vmatpush1.msra.mxu0 0.0
      %2805 = vmatprep.mubr.f32.mxu0 0.0
      %2806 = vmatmul.mubr.f32.gmra.mrb[0].mxu0 %v2736
      %v2807 = vpop.f32.mrb[0].mxu0
      %v2808 = vadd.f32 0.0, %v2807
      %v2809 = vpop.f32.mrb[0].mxu0
      %2810 = vmatprep.mubr.f32.mxu0 0.0
      %2811 = vmatmul.mubr.f32.gmra.mrb[0].mxu0 %v2739
      %v2812 = vpop.f32.mrb[0].mxu0
      %v2813 = vadd.f32 0.0, %v2812
      %v2814 = vpop.f32.mrb[0].mxu0
      %2815 = vdwg.mxu0
      %v2816 = vld [vmem:[%s10] sm:$0xff]
      %s2817 = scalar_lea.vmem %s10, 8
      %v2818 = vld [vmem:[%s2817] sm:$0xff]
      %v2820 = vsel %vm2046, %v2646, 0
      %v2823 = vsel %vm2046, %v2651, 0
      %2825 = vmatprep.subr.mxu0 0.0
      %2826 = vmatpush1.msra.mxu0 %v2818
      %2827 = vmatprep.subr.mxu0 0.0
      %2828 = vmatpush1.msra.mxu0 0.0
      %2829 = vmatprep.subr.mxu0 0.0
      %2830 = vmatpush1.msra.mxu0 0.0
      %2831 = vmatprep.subr.mxu0 0.0
      %2832 = vmatpush1.msra.mxu0 0.0
      %2833 = vmatprep.subr.mxu0 0.0
      %2834 = vmatpush1.msra.mxu0 0.0
      %2835 = vmatprep.subr.mxu0 0.0
      %2836 = vmatpush1.msra.mxu0 0.0
      %2837 = vmatprep.subr.mxu0 0.0
      %2838 = vmatpush1.msra.mxu0 0.0
      %2839 = vmatprep.subr.mxu0 0.0
      %2840 = vmatpush1.msra.mxu0 0.0
      %2841 = vmatprep.subr.mxu0 0.0
      %2842 = vmatpush1.msra.mxu0 0.0
      %2843 = vmatprep.subr.mxu0 0.0
      %2844 = vmatpush1.msra.mxu0 0.0
      %2845 = vmatprep.subr.mxu0 0.0
      %2846 = vmatpush1.msra.mxu0 0.0
      %2847 = vmatprep.subr.mxu0 0.0
      %2848 = vmatpush1.msra.mxu0 0.0
      %2849 = vmatprep.subr.mxu0 0.0
      %2850 = vmatpush1.msra.mxu0 0.0
      %2851 = vmatprep.subr.mxu0 0.0
      %2852 = vmatpush1.msra.mxu0 0.0
      %2853 = vmatprep.subr.mxu0 0.0
      %2854 = vmatpush1.msra.mxu0 0.0
      %2855 = vmatprep.subr.mxu0 0.0
      %2856 = vmatpush1.msra.mxu0 0.0
      %2857 = vmatprep.subr.mxu0 0.0
      %2858 = vmatpush1.msra.mxu0 0.0
      %2859 = vmatprep.subr.mxu0 0.0
      %2860 = vmatpush1.msra.mxu0 0.0
      %2861 = vmatprep.subr.mxu0 0.0
      %2862 = vmatpush1.msra.mxu0 0.0
      %2863 = vmatprep.subr.mxu0 0.0
      %2864 = vmatpush1.msra.mxu0 0.0
      %2865 = vmatprep.subr.mxu0 0.0
      %2866 = vmatpush1.msra.mxu0 0.0
      %2867 = vmatprep.subr.mxu0 0.0
      %2868 = vmatpush1.msra.mxu0 0.0
      %2869 = vmatprep.subr.mxu0 0.0
      %2870 = vmatpush1.msra.mxu0 0.0
      %2871 = vmatprep.subr.mxu0 0.0
      %2872 = vmatpush1.msra.mxu0 0.0
      %2873 = vmatprep.subr.mxu0 0.0
      %2874 = vmatpush1.msra.mxu0 0.0
      %2875 = vmatprep.subr.mxu0 0.0
      %2876 = vmatpush1.msra.mxu0 0.0
      %2877 = vmatprep.subr.mxu0 0.0
      %2878 = vmatpush1.msra.mxu0 0.0
      %2879 = vmatprep.subr.mxu0 0.0
      %2880 = vmatpush1.msra.mxu0 0.0
      %2881 = vmatprep.subr.mxu0 0.0
      %2882 = vmatpush1.msra.mxu0 0.0
      %2883 = vmatprep.subr.mxu0 0.0
      %2884 = vmatpush1.msra.mxu0 0.0
      %2885 = vmatprep.subr.mxu0 0.0
      %2886 = vmatpush1.msra.mxu0 0.0
      %2887 = vmatprep.subr.mxu0 0.0
      %2888 = vmatpush1.msra.mxu0 0.0
      %2889 = vmatprep.mubr.f32.mxu0 0.0
      %2890 = vmatmul.mubr.f32.gmra.mrb[0].mxu0 %v2820
      %v2891 = vpop.f32.mrb[0].mxu0
      %v2892 = vadd.f32 0.0, %v2891
      %v2893 = vpop.f32.mrb[0].mxu0
      %2894 = vmatprep.mubr.f32.mxu0 0.0
      %2895 = vmatmul.mubr.f32.gmra.mrb[0].mxu0 %v2823
      %v2896 = vpop.f32.mrb[0].mxu0
      %v2897 = vadd.f32 0.0, %v2896
      %v2898 = vpop.f32.mrb[0].mxu0
      %2899 = vdwg.mxu0
      %v2901 = vsel %vm2046, %v2565, 0
      %v2904 = vsel %vm2046, %v2570, 0
      %2906 = vmatprep.subr.mxu0 0.0
      %2907 = vmatpush1.msra.mxu0 %v2816
      %2908 = vmatprep.subr.mxu0 0.0
      %2909 = vmatpush1.msra.mxu0 0.0
      %2910 = vmatprep.subr.mxu0 0.0
      %2911 = vmatpush1.msra.mxu0 0.0
      %2912 = vmatprep.subr.mxu0 0.0
      %2913 = vmatpush1.msra.mxu0 0.0
      %2914 = vmatprep.subr.mxu0 0.0
      %2915 = vmatpush1.msra.mxu0 0.0
      %2916 = vmatprep.subr.mxu0 0.0
      %2917 = vmatpush1.msra.mxu0 0.0
      %2918 = vmatprep.subr.mxu0 0.0
      %2919 = vmatpush1.msra.mxu0 0.0
      %2920 = vmatprep.subr.mxu0 0.0
      %2921 = vmatpush1.msra.mxu0 0.0
      %2922 = vmatprep.subr.mxu0 0.0
      %2923 = vmatpush1.msra.mxu0 0.0
      %2924 = vmatprep.subr.mxu0 0.0
      %2925 = vmatpush1.msra.mxu0 0.0
      %2926 = vmatprep.subr.mxu0 0.0
      %2927 = vmatpush1.msra.mxu0 0.0
      %2928 = vmatprep.subr.mxu0 0.0
      %2929 = vmatpush1.msra.mxu0 0.0
      %2930 = vmatprep.subr.mxu0 0.0
      %2931 = vmatpush1.msra.mxu0 0.0
      %2932 = vmatprep.subr.mxu0 0.0
      %2933 = vmatpush1.msra.mxu0 0.0
      %2934 = vmatprep.subr.mxu0 0.0
      %2935 = vmatpush1.msra.mxu0 0.0
      %2936 = vmatprep.subr.mxu0 0.0
      %2937 = vmatpush1.msra.mxu0 0.0
      %2938 = vmatprep.subr.mxu0 0.0
      %2939 = vmatpush1.msra.mxu0 0.0
      %2940 = vmatprep.subr.mxu0 0.0
      %2941 = vmatpush1.msra.mxu0 0.0
      %2942 = vmatprep.subr.mxu0 0.0
      %2943 = vmatpush1.msra.mxu0 0.0
      %2944 = vmatprep.subr.mxu0 0.0
      %2945 = vmatpush1.msra.mxu0 0.0
      %2946 = vmatprep.subr.mxu0 0.0
      %2947 = vmatpush1.msra.mxu0 0.0
      %2948 = vmatprep.subr.mxu0 0.0
      %2949 = vmatpush1.msra.mxu0 0.0
      %2950 = vmatprep.subr.mxu0 0.0
      %2951 = vmatpush1.msra.mxu0 0.0
      %2952 = vmatprep.subr.mxu0 0.0
      %2953 = vmatpush1.msra.mxu0 0.0
      %2954 = vmatprep.subr.mxu0 0.0
      %2955 = vmatpush1.msra.mxu0 0.0
      %2956 = vmatprep.subr.mxu0 0.0
      %2957 = vmatpush1.msra.mxu0 0.0
      %2958 = vmatprep.subr.mxu0 0.0
      %2959 = vmatpush1.msra.mxu0 0.0
      %2960 = vmatprep.subr.mxu0 0.0
      %2961 = vmatpush1.msra.mxu0 0.0
      %2962 = vmatprep.subr.mxu0 0.0
      %2963 = vmatpush1.msra.mxu0 0.0
      %2964 = vmatprep.subr.mxu0 0.0
      %2965 = vmatpush1.msra.mxu0 0.0
      %2966 = vmatprep.subr.mxu0 0.0
      %2967 = vmatpush1.msra.mxu0 0.0
      %2968 = vmatprep.subr.mxu0 0.0
      %2969 = vmatpush1.msra.mxu0 0.0
      %2970 = vmatprep.mubr.f32.mxu0 0.0
      %2971 = vmatmul.mubr.f32.gmra.mrb[0].mxu0 %v2901
      %v2972 = vpop.f32.mrb[0].mxu0
      %v2973 = vadd.f32 %v2892, %v2972
      %v2974 = vpop.f32.mrb[0].mxu0
      %2975 = vmatprep.mubr.f32.mxu0 0.0
      %2976 = vmatmul.mubr.f32.gmra.mrb[0].mxu0 %v2904
      %v2977 = vpop.f32.mrb[0].mxu0
      %v2978 = vadd.f32 %v2897, %v2977
      %v2979 = vpop.f32.mrb[0].mxu0
      %2980 = vdwg.mxu0
      %s2981 = scalar_lea.vmem %s10, 16
      %v2982 = vld [vmem:[%s2981] sm:$0xff]
      %v2984 = vsel %vm2046, %v2727, 0
      %v2987 = vsel %vm2046, %v2732, 0
      %2989 = vmatprep.subr.mxu0 0.0
      %2990 = vmatpush1.msra.mxu0 %v2982
      %2991 = vmatprep.subr.mxu0 0.0
      %2992 = vmatpush1.msra.mxu0 0.0
      %2993 = vmatprep.subr.mxu0 0.0
      %2994 = vmatpush1.msra.mxu0 0.0
      %2995 = vmatprep.subr.mxu0 0.0
      %2996 = vmatpush1.msra.mxu0 0.0
      %2997 = vmatprep.subr.mxu0 0.0
      %2998 = vmatpush1.msra.mxu0 0.0
      %2999 = vmatprep.subr.mxu0 0.0
      %3000 = vmatpush1.msra.mxu0 0.0
      %3001 = vmatprep.subr.mxu0 0.0
      %3002 = vmatpush1.msra.mxu0 0.0
      %3003 = vmatprep.subr.mxu0 0.0
      %3004 = vmatpush1.msra.mxu0 0.0
      %3005 = vmatprep.subr.mxu0 0.0
      %3006 = vmatpush1.msra.mxu0 0.0
      %3007 = vmatprep.subr.mxu0 0.0
      %3008 = vmatpush1.msra.mxu0 0.0
      %3009 = vmatprep.subr.mxu0 0.0
      %3010 = vmatpush1.msra.mxu0 0.0
      %3011 = vmatprep.subr.mxu0 0.0
      %3012 = vmatpush1.msra.mxu0 0.0
      %3013 = vmatprep.subr.mxu0 0.0
      %3014 = vmatpush1.msra.mxu0 0.0
      %3015 = vmatprep.subr.mxu0 0.0
      %3016 = vmatpush1.msra.mxu0 0.0
      %3017 = vmatprep.subr.mxu0 0.0
      %3018 = vmatpush1.msra.mxu0 0.0
      %3019 = vmatprep.subr.mxu0 0.0
      %3020 = vmatpush1.msra.mxu0 0.0
      %3021 = vmatprep.subr.mxu0 0.0
      %3022 = vmatpush1.msra.mxu0 0.0
      %3023 = vmatprep.subr.mxu0 0.0
      %3024 = vmatpush1.msra.mxu0 0.0
      %3025 = vmatprep.subr.mxu0 0.0
      %3026 = vmatpush1.msra.mxu0 0.0
      %3027 = vmatprep.subr.mxu0 0.0
      %3028 = vmatpush1.msra.mxu0 0.0
      %3029 = vmatprep.subr.mxu0 0.0
      %3030 = vmatpush1.msra.mxu0 0.0
      %3031 = vmatprep.subr.mxu0 0.0
      %3032 = vmatpush1.msra.mxu0 0.0
      %3033 = vmatprep.subr.mxu0 0.0
      %3034 = vmatpush1.msra.mxu0 0.0
      %3035 = vmatprep.subr.mxu0 0.0
      %3036 = vmatpush1.msra.mxu0 0.0
      %3037 = vmatprep.subr.mxu0 0.0
      %3038 = vmatpush1.msra.mxu0 0.0
      %3039 = vmatprep.subr.mxu0 0.0
      %3040 = vmatpush1.msra.mxu0 0.0
      %3041 = vmatprep.subr.mxu0 0.0
      %3042 = vmatpush1.msra.mxu0 0.0
      %3043 = vmatprep.subr.mxu0 0.0
      %3044 = vmatpush1.msra.mxu0 0.0
      %3045 = vmatprep.subr.mxu0 0.0
      %3046 = vmatpush1.msra.mxu0 0.0
      %3047 = vmatprep.subr.mxu0 0.0
      %3048 = vmatpush1.msra.mxu0 0.0
      %3049 = vmatprep.subr.mxu0 0.0
      %3050 = vmatpush1.msra.mxu0 0.0
      %3051 = vmatprep.subr.mxu0 0.0
      %3052 = vmatpush1.msra.mxu0 0.0
      %3053 = vmatprep.mubr.f32.mxu0 0.0
      %3054 = vmatmul.mubr.f32.gmra.mrb[0].mxu0 %v2984
      %v3055 = vpop.f32.mrb[0].mxu0
      %v3056 = vadd.f32 0.0, %v3055
      %v3057 = vpop.f32.mrb[0].mxu0
      %3058 = vmatprep.mubr.f32.mxu0 0.0
      %3059 = vmatmul.mubr.f32.gmra.mrb[0].mxu0 %v2987
      %v3060 = vpop.f32.mrb[0].mxu0
      %v3061 = vadd.f32 0.0, %v3060
      %v3062 = vpop.f32.mrb[0].mxu0
      %3063 = vdwg.mxu0
      %v3064 = vadd.f32 %v2973, %v3056
      %v3065 = vadd.f32 %v2978, %v3061
      %s3066 = scalar_lea.vmem %s10, 24
      %v3067 = vld [vmem:[%s3066] sm:$0xff]
      %v3069 = vsel %vm2046, %v2808, 0
      %v3072 = vsel %vm2046, %v2813, 0
      %3074 = vmatprep.subr.mxu0 0.0
      %3075 = vmatpush1.msra.mxu0 %v3067
      %3076 = vmatprep.subr.mxu0 0.0
      %3077 = vmatpush1.msra.mxu0 0.0
      %3078 = vmatprep.subr.mxu0 0.0
      %3079 = vmatpush1.msra.mxu0 0.0
      %3080 = vmatprep.subr.mxu0 0.0
      %3081 = vmatpush1.msra.mxu0 0.0
      %3082 = vmatprep.subr.mxu0 0.0
      %3083 = vmatpush1.msra.mxu0 0.0
      %3084 = vmatprep.subr.mxu0 0.0
      %3085 = vmatpush1.msra.mxu0 0.0
      %3086 = vmatprep.subr.mxu0 0.0
      %3087 = vmatpush1.msra.mxu0 0.0
      %3088 = vmatprep.subr.mxu0 0.0
      %3089 = vmatpush1.msra.mxu0 0.0
      %3090 = vmatprep.subr.mxu0 0.0
      %3091 = vmatpush1.msra.mxu0 0.0
      %3092 = vmatprep.subr.mxu0 0.0
      %3093 = vmatpush1.msra.mxu0 0.0
      %3094 = vmatprep.subr.mxu0 0.0
      %3095 = vmatpush1.msra.mxu0 0.0
      %3096 = vmatprep.subr.mxu0 0.0
      %3097 = vmatpush1.msra.mxu0 0.0
      %3098 = vmatprep.subr.mxu0 0.0
      %3099 = vmatpush1.msra.mxu0 0.0
      %3100 = vmatprep.subr.mxu0 0.0
      %3101 = vmatpush1.msra.mxu0 0.0
      %3102 = vmatprep.subr.mxu0 0.0
      %3103 = vmatpush1.msra.mxu0 0.0
      %3104 = vmatprep.subr.mxu0 0.0
      %3105 = vmatpush1.msra.mxu0 0.0
      %3106 = vmatprep.subr.mxu0 0.0
      %3107 = vmatpush1.msra.mxu0 0.0
      %3108 = vmatprep.subr.mxu0 0.0
      %3109 = vmatpush1.msra.mxu0 0.0
      %3110 = vmatprep.subr.mxu0 0.0
      %3111 = vmatpush1.msra.mxu0 0.0
      %3112 = vmatprep.subr.mxu0 0.0
      %3113 = vmatpush1.msra.mxu0 0.0
      %3114 = vmatprep.subr.mxu0 0.0
      %3115 = vmatpush1.msra.mxu0 0.0
      %3116 = vmatprep.subr.mxu0 0.0
      %3117 = vmatpush1.msra.mxu0 0.0
      %3118 = vmatprep.subr.mxu0 0.0
      %3119 = vmatpush1.msra.mxu0 0.0
      %3120 = vmatprep.subr.mxu0 0.0
      %3121 = vmatpush1.msra.mxu0 0.0
      %3122 = vmatprep.subr.mxu0 0.0
      %3123 = vmatpush1.msra.mxu0 0.0
      %3124 = vmatprep.subr.mxu0 0.0
      %3125 = vmatpush1.msra.mxu0 0.0
      %3126 = vmatprep.subr.mxu0 0.0
      %3127 = vmatpush1.msra.mxu0 0.0
      %3128 = vmatprep.subr.mxu0 0.0
      %3129 = vmatpush1.msra.mxu0 0.0
      %3130 = vmatprep.subr.mxu0 0.0
      %3131 = vmatpush1.msra.mxu0 0.0
      %3132 = vmatprep.subr.mxu0 0.0
      %3133 = vmatpush1.msra.mxu0 0.0
      %3134 = vmatprep.subr.mxu0 0.0
      %3135 = vmatpush1.msra.mxu0 0.0
      %3136 = vmatprep.subr.mxu0 0.0
      %3137 = vmatpush1.msra.mxu0 0.0
      %3138 = vmatprep.mubr.f32.mxu0 0.0
      %3139 = vmatmul.mubr.f32.gmra.mrb[0].mxu0 %v3069
      %v3140 = vpop.f32.mrb[0].mxu0
      %v3141 = vadd.f32 0.0, %v3140
      %v3142 = vpop.f32.mrb[0].mxu0
      %3143 = vmatprep.mubr.f32.mxu0 0.0
      %3144 = vmatmul.mubr.f32.gmra.mrb[0].mxu0 %v3072
      %v3145 = vpop.f32.mrb[0].mxu0
      %v3146 = vadd.f32 0.0, %v3145
      %v3147 = vpop.f32.mrb[0].mxu0
      %3148 = vdwg.mxu0
      %v3149 = vadd.f32 %v3064, %v3141
      %v3150 = vadd.f32 %v3065, %v3146
      %v3151 = vld [vmem:[%s11] sm:$0xff]
      %vm3152 = vcmask 31744
      %v3154 = vsel %vm3152, %v3151, 0
      %vm3156 = vcmask 1043456
      %v3158 = vsel %vm3156, %v3149, 0
      %3160 = vmatprep.subr.mxu0 0.0
      %3161 = vmatpush1.msra.mxu0 %v3158
      %3162 = vmatprep.subr.mxu0 0.0
      %3163 = vmatpush1.msra.mxu0 0.0
      %3164 = vmatprep.subr.mxu0 0.0
      %3165 = vmatpush1.msra.mxu0 0.0
      %3166 = vmatprep.subr.mxu0 0.0
      %3167 = vmatpush1.msra.mxu0 0.0
      %3168 = vmatprep.subr.mxu0 0.0
      %3169 = vmatpush1.msra.mxu0 0.0
      %3170 = vmatprep.subr.mxu0 0.0
      %3171 = vmatpush1.msra.mxu0 0.0
      %3172 = vmatprep.subr.mxu0 0.0
      %3173 = vmatpush1.msra.mxu0 0.0
      %3174 = vmatprep.subr.mxu0 0.0
      %3175 = vmatpush1.msra.mxu0 0.0
      %3176 = vmatprep.subr.mxu0 0.0
      %3177 = vmatpush1.msra.mxu0 0.0
      %3178 = vmatprep.subr.mxu0 0.0
      %3179 = vmatpush1.msra.mxu0 0.0
      %3180 = vmatprep.subr.mxu0 0.0
      %3181 = vmatpush1.msra.mxu0 0.0
      %3182 = vmatprep.subr.mxu0 0.0
      %3183 = vmatpush1.msra.mxu0 0.0
      %3184 = vmatprep.subr.mxu0 0.0
      %3185 = vmatpush1.msra.mxu0 0.0
      %3186 = vmatprep.subr.mxu0 0.0
      %3187 = vmatpush1.msra.mxu0 0.0
      %3188 = vmatprep.subr.mxu0 0.0
      %3189 = vmatpush1.msra.mxu0 0.0
      %3190 = vmatprep.subr.mxu0 0.0
      %3191 = vmatpush1.msra.mxu0 0.0
      %3192 = vmatprep.subr.mxu0 0.0
      %3193 = vmatpush1.msra.mxu0 0.0
      %3194 = vmatprep.subr.mxu0 0.0
      %3195 = vmatpush1.msra.mxu0 0.0
      %3196 = vmatprep.subr.mxu0 0.0
      %3197 = vmatpush1.msra.mxu0 0.0
      %3198 = vmatprep.subr.mxu0 0.0
      %3199 = vmatpush1.msra.mxu0 0.0
      %3200 = vmatprep.subr.mxu0 0.0
      %3201 = vmatpush1.msra.mxu0 0.0
      %3202 = vmatprep.subr.mxu0 0.0
      %3203 = vmatpush1.msra.mxu0 0.0
      %3204 = vmatprep.subr.mxu0 0.0
      %3205 = vmatpush1.msra.mxu0 0.0
      %3206 = vmatprep.subr.mxu0 0.0
      %3207 = vmatpush1.msra.mxu0 0.0
      %3208 = vmatprep.subr.mxu0 0.0
      %3209 = vmatpush1.msra.mxu0 0.0
      %3210 = vmatprep.subr.mxu0 0.0
      %3211 = vmatpush1.msra.mxu0 0.0
      %3212 = vmatprep.subr.mxu0 0.0
      %3213 = vmatpush1.msra.mxu0 0.0
      %3214 = vmatprep.subr.mxu0 0.0
      %3215 = vmatpush1.msra.mxu0 0.0
      %3216 = vmatprep.subr.mxu0 0.0
      %3217 = vmatpush1.msra.mxu0 0.0
      %3218 = vmatprep.subr.mxu0 0.0
      %3219 = vmatpush1.msra.mxu0 0.0
      %3220 = vmatprep.subr.mxu0 0.0
      %3221 = vmatpush1.msra.mxu0 0.0
      %3222 = vmatprep.subr.mxu0 0.0
      %3223 = vmatpush1.msra.mxu0 0.0
      %3224 = vmatprep.mubr.f32.mxu0 0.0
      %3225 = vmatmul.mubr.f32.gmra.mrb[0].mxu0 %v3154
      %v3226 = vpop.f32.mrb[0].mxu0
      %v3227 = vadd.f32 0.0, %v3226
      %v3228 = vpop.f32.mrb[0].mxu0
      %3229 = vdwg.mxu0
      %v3230 = vrot.slane %v3149, 4
      %v3231 = vsel %vm3156, %v3230, 0
      %3233 = vmatprep.subr.mxu0 0.0
      %3234 = vmatpush1.msra.mxu0 %v3231
      %3235 = vmatprep.subr.mxu0 0.0
      %3236 = vmatpush1.msra.mxu0 0.0
      %3237 = vmatprep.subr.mxu0 0.0
      %3238 = vmatpush1.msra.mxu0 0.0
      %3239 = vmatprep.subr.mxu0 0.0
      %3240 = vmatpush1.msra.mxu0 0.0
      %3241 = vmatprep.subr.mxu0 0.0
      %3242 = vmatpush1.msra.mxu0 0.0
      %3243 = vmatprep.subr.mxu0 0.0
      %3244 = vmatpush1.msra.mxu0 0.0
      %3245 = vmatprep.subr.mxu0 0.0
      %3246 = vmatpush1.msra.mxu0 0.0
      %3247 = vmatprep.subr.mxu0 0.0
      %3248 = vmatpush1.msra.mxu0 0.0
      %3249 = vmatprep.subr.mxu0 0.0
      %3250 = vmatpush1.msra.mxu0 0.0
      %3251 = vmatprep.subr.mxu0 0.0
      %3252 = vmatpush1.msra.mxu0 0.0
      %3253 = vmatprep.subr.mxu0 0.0
      %3254 = vmatpush1.msra.mxu0 0.0
      %3255 = vmatprep.subr.mxu0 0.0
      %3256 = vmatpush1.msra.mxu0 0.0
      %3257 = vmatprep.subr.mxu0 0.0
      %3258 = vmatpush1.msra.mxu0 0.0
      %3259 = vmatprep.subr.mxu0 0.0
      %3260 = vmatpush1.msra.mxu0 0.0
      %3261 = vmatprep.subr.mxu0 0.0
      %3262 = vmatpush1.msra.mxu0 0.0
      %3263 = vmatprep.subr.mxu0 0.0
      %3264 = vmatpush1.msra.mxu0 0.0
      %3265 = vmatprep.subr.mxu0 0.0
      %3266 = vmatpush1.msra.mxu0 0.0
      %3267 = vmatprep.subr.mxu0 0.0
      %3268 = vmatpush1.msra.mxu0 0.0
      %3269 = vmatprep.subr.mxu0 0.0
      %3270 = vmatpush1.msra.mxu0 0.0
      %3271 = vmatprep.subr.mxu0 0.0
      %3272 = vmatpush1.msra.mxu0 0.0
      %3273 = vmatprep.subr.mxu0 0.0
      %3274 = vmatpush1.msra.mxu0 0.0
      %3275 = vmatprep.subr.mxu0 0.0
      %3276 = vmatpush1.msra.mxu0 0.0
      %3277 = vmatprep.subr.mxu0 0.0
      %3278 = vmatpush1.msra.mxu0 0.0
      %3279 = vmatprep.subr.mxu0 0.0
      %3280 = vmatpush1.msra.mxu0 0.0
      %3281 = vmatprep.subr.mxu0 0.0
      %3282 = vmatpush1.msra.mxu0 0.0
      %3283 = vmatprep.subr.mxu0 0.0
      %3284 = vmatpush1.msra.mxu0 0.0
      %3285 = vmatprep.subr.mxu0 0.0
      %3286 = vmatpush1.msra.mxu0 0.0
      %3287 = vmatprep.subr.mxu0 0.0
      %3288 = vmatpush1.msra.mxu0 0.0
      %3289 = vmatprep.subr.mxu0 0.0
      %3290 = vmatpush1.msra.mxu0 0.0
      %3291 = vmatprep.subr.mxu0 0.0
      %3292 = vmatpush1.msra.mxu0 0.0
      %3293 = vmatprep.subr.mxu0 0.0
      %3294 = vmatpush1.msra.mxu0 0.0
      %3295 = vmatprep.subr.mxu0 0.0
      %3296 = vmatpush1.msra.mxu0 0.0
      %3297 = vmatprep.mubr.f32.mxu0 0.0
      %3298 = vmatmul.mubr.f32.gmra.mrb[0].mxu0 %v3154
      %v3299 = vpop.f32.mrb[0].mxu0
      %v3300 = vadd.f32 0.0, %v3299
      %v3301 = vpop.f32.mrb[0].mxu0
      %3302 = vdwg.mxu0
      %v3304 = vsel %vm3156, %v3150, 0
      %3306 = vmatprep.subr.mxu0 0.0
      %3307 = vmatpush1.msra.mxu0 %v3304
      %3308 = vmatprep.subr.mxu0 0.0
      %3309 = vmatpush1.msra.mxu0 0.0
      %3310 = vmatprep.subr.mxu0 0.0
      %3311 = vmatpush1.msra.mxu0 0.0
      %3312 = vmatprep.subr.mxu0 0.0
      %3313 = vmatpush1.msra.mxu0 0.0
      %3314 = vmatprep.subr.mxu0 0.0
      %3315 = vmatpush1.msra.mxu0 0.0
      %3316 = vmatprep.subr.mxu0 0.0
      %3317 = vmatpush1.msra.mxu0 0.0
      %3318 = vmatprep.subr.mxu0 0.0
      %3319 = vmatpush1.msra.mxu0 0.0
      %3320 = vmatprep.subr.mxu0 0.0
      %3321 = vmatpush1.msra.mxu0 0.0
      %3322 = vmatprep.subr.mxu0 0.0
      %3323 = vmatpush1.msra.mxu0 0.0
      %3324 = vmatprep.subr.mxu0 0.0
      %3325 = vmatpush1.msra.mxu0 0.0
      %3326 = vmatprep.subr.mxu0 0.0
      %3327 = vmatpush1.msra.mxu0 0.0
      %3328 = vmatprep.subr.mxu0 0.0
      %3329 = vmatpush1.msra.mxu0 0.0
      %3330 = vmatprep.subr.mxu0 0.0
      %3331 = vmatpush1.msra.mxu0 0.0
      %3332 = vmatprep.subr.mxu0 0.0
      %3333 = vmatpush1.msra.mxu0 0.0
      %3334 = vmatprep.subr.mxu0 0.0
      %3335 = vmatpush1.msra.mxu0 0.0
      %3336 = vmatprep.subr.mxu0 0.0
      %3337 = vmatpush1.msra.mxu0 0.0
      %3338 = vmatprep.subr.mxu0 0.0
      %3339 = vmatpush1.msra.mxu0 0.0
      %3340 = vmatprep.subr.mxu0 0.0
      %3341 = vmatpush1.msra.mxu0 0.0
      %3342 = vmatprep.subr.mxu0 0.0
      %3343 = vmatpush1.msra.mxu0 0.0
      %3344 = vmatprep.subr.mxu0 0.0
      %3345 = vmatpush1.msra.mxu0 0.0
      %3346 = vmatprep.subr.mxu0 0.0
      %3347 = vmatpush1.msra.mxu0 0.0
      %3348 = vmatprep.subr.mxu0 0.0
      %3349 = vmatpush1.msra.mxu0 0.0
      %3350 = vmatprep.subr.mxu0 0.0
      %3351 = vmatpush1.msra.mxu0 0.0
      %3352 = vmatprep.subr.mxu0 0.0
      %3353 = vmatpush1.msra.mxu0 0.0
      %3354 = vmatprep.subr.mxu0 0.0
      %3355 = vmatpush1.msra.mxu0 0.0
      %3356 = vmatprep.subr.mxu0 0.0
      %3357 = vmatpush1.msra.mxu0 0.0
      %3358 = vmatprep.subr.mxu0 0.0
      %3359 = vmatpush1.msra.mxu0 0.0
      %3360 = vmatprep.subr.mxu0 0.0
      %3361 = vmatpush1.msra.mxu0 0.0
      %3362 = vmatprep.subr.mxu0 0.0
      %3363 = vmatpush1.msra.mxu0 0.0
      %3364 = vmatprep.subr.mxu0 0.0
      %3365 = vmatpush1.msra.mxu0 0.0
      %3366 = vmatprep.subr.mxu0 0.0
      %3367 = vmatpush1.msra.mxu0 0.0
      %3368 = vmatprep.subr.mxu0 0.0
      %3369 = vmatpush1.msra.mxu0 0.0
      %3370 = vmatprep.mubr.f32.mxu0 0.0
      %3371 = vmatmul.mubr.f32.gmra.mrb[0].mxu0 %v3154
      %v3372 = vpop.f32.mrb[0].mxu0
      %v3373 = vadd.f32 0.0, %v3372
      %v3374 = vpop.f32.mrb[0].mxu0
      %3375 = vdwg.mxu0
      %v3376 = vrot.slane %v3150, 4
      %v3377 = vsel %vm3156, %v3376, 0
      %3379 = vmatprep.subr.mxu0 0.0
      %3380 = vmatpush1.msra.mxu0 %v3377
      %3381 = vmatprep.subr.mxu0 0.0
      %3382 = vmatpush1.msra.mxu0 0.0
      %3383 = vmatprep.subr.mxu0 0.0
      %3384 = vmatpush1.msra.mxu0 0.0
      %3385 = vmatprep.subr.mxu0 0.0
      %3386 = vmatpush1.msra.mxu0 0.0
      %3387 = vmatprep.subr.mxu0 0.0
      %3388 = vmatpush1.msra.mxu0 0.0
      %3389 = vmatprep.subr.mxu0 0.0
      %3390 = vmatpush1.msra.mxu0 0.0
      %3391 = vmatprep.subr.mxu0 0.0
      %3392 = vmatpush1.msra.mxu0 0.0
      %3393 = vmatprep.subr.mxu0 0.0
      %3394 = vmatpush1.msra.mxu0 0.0
      %3395 = vmatprep.subr.mxu0 0.0
      %3396 = vmatpush1.msra.mxu0 0.0
      %3397 = vmatprep.subr.mxu0 0.0
      %3398 = vmatpush1.msra.mxu0 0.0
      %3399 = vmatprep.subr.mxu0 0.0
      %3400 = vmatpush1.msra.mxu0 0.0
      %3401 = vmatprep.subr.mxu0 0.0
      %3402 = vmatpush1.msra.mxu0 0.0
      %3403 = vmatprep.subr.mxu0 0.0
      %3404 = vmatpush1.msra.mxu0 0.0
      %3405 = vmatprep.subr.mxu0 0.0
      %3406 = vmatpush1.msra.mxu0 0.0
      %3407 = vmatprep.subr.mxu0 0.0
      %3408 = vmatpush1.msra.mxu0 0.0
      %3409 = vmatprep.subr.mxu0 0.0
      %3410 = vmatpush1.msra.mxu0 0.0
      %3411 = vmatprep.subr.mxu0 0.0
      %3412 = vmatpush1.msra.mxu0 0.0
      %3413 = vmatprep.subr.mxu0 0.0
      %3414 = vmatpush1.msra.mxu0 0.0
      %3415 = vmatprep.subr.mxu0 0.0
      %3416 = vmatpush1.msra.mxu0 0.0
      %3417 = vmatprep.subr.mxu0 0.0
      %3418 = vmatpush1.msra.mxu0 0.0
      %3419 = vmatprep.subr.mxu0 0.0
      %3420 = vmatpush1.msra.mxu0 0.0
      %3421 = vmatprep.subr.mxu0 0.0
      %3422 = vmatpush1.msra.mxu0 0.0
      %3423 = vmatprep.subr.mxu0 0.0
      %3424 = vmatpush1.msra.mxu0 0.0
      %3425 = vmatprep.subr.mxu0 0.0
      %3426 = vmatpush1.msra.mxu0 0.0
      %3427 = vmatprep.subr.mxu0 0.0
      %3428 = vmatpush1.msra.mxu0 0.0
      %3429 = vmatprep.subr.mxu0 0.0
      %3430 = vmatpush1.msra.mxu0 0.0
      %3431 = vmatprep.subr.mxu0 0.0
      %3432 = vmatpush1.msra.mxu0 0.0
      %3433 = vmatprep.subr.mxu0 0.0
      %3434 = vmatpush1.msra.mxu0 0.0
      %3435 = vmatprep.subr.mxu0 0.0
      %3436 = vmatpush1.msra.mxu0 0.0
      %3437 = vmatprep.subr.mxu0 0.0
      %3438 = vmatpush1.msra.mxu0 0.0
      %3439 = vmatprep.subr.mxu0 0.0
      %3440 = vmatpush1.msra.mxu0 0.0
      %3441 = vmatprep.subr.mxu0 0.0
      %3442 = vmatpush1.msra.mxu0 0.0
      %3443 = vmatprep.mubr.f32.mxu0 0.0
      %3444 = vmatmul.mubr.f32.gmra.mrb[0].mxu0 %v3154
      %v3445 = vpop.f32.mrb[0].mxu0
      %v3446 = vadd.f32 0.0, %v3445
      %v3447 = vpop.f32.mrb[0].mxu0
      %3448 = vdwg.mxu0
      %v3449 = vmul.f32 %v3227, 0.75
      %v3450 = vmul.f32 %v3300, 0.25
      %v3451 = vadd.f32 %v3449, %v3450
      %v3452 = vmul.f32 %v3227, 0.25
      %v3453 = vmul.f32 %v3300, 0.75
      %v3454 = vadd.f32 %v3452, %v3453
      %v3455 = vmul.f32 %v3373, 0.25
      %v3456 = vadd.f32 %v3453, %v3455
      %v3457 = vmul.f32 %v3373, 0.75
      %v3458 = vadd.f32 %v3450, %v3457
      %v3459 = vmul.f32 %v3446, 0.25
      %v3460 = vadd.f32 %v3457, %v3459
      %v3461 = vmul.f32 %v3446, 0.75
      %v3462 = vadd.f32 %v3455, %v3461
      %v3463 = vld [vmem:[%s593] sm:$0xff]
      %v3464 = vld [vmem:[%s593 + $0x8] sm:$0xff]
      %v3465 = vld [vmem:[%s593 + $0x10] sm:$0xff]
      %v3466 = vld [vmem:[%s593 + $0x18] sm:$0xff]
      %v3467 = vld [vmem:[%s593 + $0x20] sm:$0xff]
      %v3468 = vld [vmem:[%s593 + $0x28] sm:$0xff]
      %v3469 = vld [vmem:[%s593 + $0x30] sm:$0xff]
      %v3470 = vld [vmem:[%s593 + $0x38] sm:$0xff]
      %v3471 = vld [vmem:[%s12] sm:$0xff]
      %v3472 = vld [vmem:[%s12 + $0x8] sm:$0xff]
      %v3473 = vld [vmem:[%s12 + $0x10] sm:$0xff]
      %v3474 = vld [vmem:[%s12 + $0x18] sm:$0xff]
      %v3475 = vld [vmem:[%s13] sm:$0xff]
      %v3476 = vld [vmem:[%s13 + $0x8] sm:$0xff]
      %v3477 = vld [vmem:[%s13 + $0x10] sm:$0xff]
      %v3478 = vld [vmem:[%s13 + $0x18] sm:$0xff]
      %v3480 = vsel %vm670, %v3227, 0
      %v3483 = vsel %vm670, %v3451, 0
      %v3486 = vsel %vm670, %v3454, 0
      %v3489 = vsel %vm670, %v3456, 0
      %v3492 = vsel %vm670, %v3458, 0
      %v3495 = vsel %vm670, %v3460, 0
      %v3498 = vsel %vm670, %v3462, 0
      %v3501 = vsel %vm670, %v3446, 0
      %3503 = vmatprep.subr.mxu0 0.0
      %3504 = vmatpush1.msra.mxu0 %v3475
      %3505 = vmatprep.subr.mxu0 0.0
      %3506 = vmatpush1.msra.mxu0 %v3476
      %3507 = vmatprep.subr.mxu0 0.0
      %3508 = vmatpush1.msra.mxu0 %v3477
      %3509 = vmatprep.subr.mxu0 0.0
      %3510 = vmatpush1.msra.mxu0 %v3478
      %3511 = vmatprep.subr.mxu0 0.0
      %3512 = vmatpush1.msra.mxu0 0.0
      %3513 = vmatprep.subr.mxu0 0.0
      %3514 = vmatpush1.msra.mxu0 0.0
      %3515 = vmatprep.subr.mxu0 0.0
      %3516 = vmatpush1.msra.mxu0 0.0
      %3517 = vmatprep.subr.mxu0 0.0
      %3518 = vmatpush1.msra.mxu0 0.0
      %3519 = vmatprep.subr.mxu0 0.0
      %3520 = vmatpush1.msra.mxu0 0.0
      %3521 = vmatprep.subr.mxu0 0.0
      %3522 = vmatpush1.msra.mxu0 0.0
      %3523 = vmatprep.subr.mxu0 0.0
      %3524 = vmatpush1.msra.mxu0 0.0
      %3525 = vmatprep.subr.mxu0 0.0
      %3526 = vmatpush1.msra.mxu0 0.0
      %3527 = vmatprep.subr.mxu0 0.0
      %3528 = vmatpush1.msra.mxu0 0.0
      %3529 = vmatprep.subr.mxu0 0.0
      %3530 = vmatpush1.msra.mxu0 0.0
      %3531 = vmatprep.subr.mxu0 0.0
      %3532 = vmatpush1.msra.mxu0 0.0
      %3533 = vmatprep.subr.mxu0 0.0
      %3534 = vmatpush1.msra.mxu0 0.0
      %3535 = vmatprep.subr.mxu0 0.0
      %3536 = vmatpush1.msra.mxu0 0.0
      %3537 = vmatprep.subr.mxu0 0.0
      %3538 = vmatpush1.msra.mxu0 0.0
      %3539 = vmatprep.subr.mxu0 0.0
      %3540 = vmatpush1.msra.mxu0 0.0
      %3541 = vmatprep.subr.mxu0 0.0
      %3542 = vmatpush1.msra.mxu0 0.0
      %3543 = vmatprep.subr.mxu0 0.0
      %3544 = vmatpush1.msra.mxu0 0.0
      %3545 = vmatprep.subr.mxu0 0.0
      %3546 = vmatpush1.msra.mxu0 0.0
      %3547 = vmatprep.subr.mxu0 0.0
      %3548 = vmatpush1.msra.mxu0 0.0
      %3549 = vmatprep.subr.mxu0 0.0
      %3550 = vmatpush1.msra.mxu0 0.0
      %3551 = vmatprep.subr.mxu0 0.0
      %3552 = vmatpush1.msra.mxu0 0.0
      %3553 = vmatprep.subr.mxu0 0.0
      %3554 = vmatpush1.msra.mxu0 0.0
      %3555 = vmatprep.subr.mxu0 0.0
      %3556 = vmatpush1.msra.mxu0 0.0
      %3557 = vmatprep.subr.mxu0 0.0
      %3558 = vmatpush1.msra.mxu0 0.0
      %3559 = vmatprep.subr.mxu0 0.0
      %3560 = vmatpush1.msra.mxu0 0.0
      %3561 = vmatprep.subr.mxu0 0.0
      %3562 = vmatpush1.msra.mxu0 0.0
      %3563 = vmatprep.subr.mxu0 0.0
      %3564 = vmatpush1.msra.mxu0 0.0
      %3565 = vmatprep.subr.mxu0 0.0
      %3566 = vmatpush1.msra.mxu0 0.0
      %3567 = vmatprep.mubr.f32.mxu0 0.0
      %3568 = vmatmul.mubr.f32.gmra.mrb[0].mxu0 %v3480
      %v3569 = vpop.f32.mrb[0].mxu0
      %v3570 = vadd.f32 0.0, %v3569
      %v3571 = vpop.f32.mrb[0].mxu0
      %3572 = vmatprep.mubr.f32.mxu0 0.0
      %3573 = vmatmul.mubr.f32.gmra.mrb[0].mxu0 %v3483
      %v3574 = vpop.f32.mrb[0].mxu0
      %v3575 = vadd.f32 0.0, %v3574
      %v3576 = vpop.f32.mrb[0].mxu0
      %3577 = vmatprep.mubr.f32.mxu0 0.0
      %3578 = vmatmul.mubr.f32.gmra.mrb[0].mxu0 %v3486
      %v3579 = vpop.f32.mrb[0].mxu0
      %v3580 = vadd.f32 0.0, %v3579
      %v3581 = vpop.f32.mrb[0].mxu0
      %3582 = vmatprep.mubr.f32.mxu0 0.0
      %3583 = vmatmul.mubr.f32.gmra.mrb[0].mxu0 %v3489
      %v3584 = vpop.f32.mrb[0].mxu0
      %v3585 = vadd.f32 0.0, %v3584
      %v3586 = vpop.f32.mrb[0].mxu0
      %3587 = vmatprep.mubr.f32.mxu0 0.0
      %3588 = vmatmul.mubr.f32.gmra.mrb[0].mxu0 %v3492
      %v3589 = vpop.f32.mrb[0].mxu0
      %v3590 = vadd.f32 0.0, %v3589
      %v3591 = vpop.f32.mrb[0].mxu0
      %3592 = vmatprep.mubr.f32.mxu0 0.0
      %3593 = vmatmul.mubr.f32.gmra.mrb[0].mxu0 %v3495
      %v3594 = vpop.f32.mrb[0].mxu0
      %v3595 = vadd.f32 0.0, %v3594
      %v3596 = vpop.f32.mrb[0].mxu0
      %3597 = vmatprep.mubr.f32.mxu0 0.0
      %3598 = vmatmul.mubr.f32.gmra.mrb[0].mxu0 %v3498
      %v3599 = vpop.f32.mrb[0].mxu0
      %v3600 = vadd.f32 0.0, %v3599
      %v3601 = vpop.f32.mrb[0].mxu0
      %3602 = vmatprep.mubr.f32.mxu0 0.0
      %3603 = vmatmul.mubr.f32.gmra.mrb[0].mxu0 %v3501
      %v3604 = vpop.f32.mrb[0].mxu0
      %v3605 = vadd.f32 0.0, %v3604
      %v3606 = vpop.f32.mrb[0].mxu0
      %3607 = vdwg.mxu0
      %v3609 = vsel %vm670, %v3463, 0
      %v3612 = vsel %vm670, %v3464, 0
      %v3615 = vsel %vm670, %v3465, 0
      %v3618 = vsel %vm670, %v3466, 0
      %v3621 = vsel %vm670, %v3467, 0
      %v3624 = vsel %vm670, %v3468, 0
      %v3627 = vsel %vm670, %v3469, 0
      %v3630 = vsel %vm670, %v3470, 0
      %3632 = vmatprep.subr.mxu0 0.0
      %3633 = vmatpush1.msra.mxu0 %v3471
      %3634 = vmatprep.subr.mxu0 0.0
      %3635 = vmatpush1.msra.mxu0 %v3472
      %3636 = vmatprep.subr.mxu0 0.0
      %3637 = vmatpush1.msra.mxu0 %v3473
      %3638 = vmatprep.subr.mxu0 0.0
      %3639 = vmatpush1.msra.mxu0 %v3474
      %3640 = vmatprep.subr.mxu0 0.0
      %3641 = vmatpush1.msra.mxu0 0.0
      %3642 = vmatprep.subr.mxu0 0.0
      %3643 = vmatpush1.msra.mxu0 0.0
      %3644 = vmatprep.subr.mxu0 0.0
      %3645 = vmatpush1.msra.mxu0 0.0
      %3646 = vmatprep.subr.mxu0 0.0
      %3647 = vmatpush1.msra.mxu0 0.0
      %3648 = vmatprep.subr.mxu0 0.0
      %3649 = vmatpush1.msra.mxu0 0.0
      %3650 = vmatprep.subr.mxu0 0.0
      %3651 = vmatpush1.msra.mxu0 0.0
      %3652 = vmatprep.subr.mxu0 0.0
      %3653 = vmatpush1.msra.mxu0 0.0
      %3654 = vmatprep.subr.mxu0 0.0
      %3655 = vmatpush1.msra.mxu0 0.0
      %3656 = vmatprep.subr.mxu0 0.0
      %3657 = vmatpush1.msra.mxu0 0.0
      %3658 = vmatprep.subr.mxu0 0.0
      %3659 = vmatpush1.msra.mxu0 0.0
      %3660 = vmatprep.subr.mxu0 0.0
      %3661 = vmatpush1.msra.mxu0 0.0
      %3662 = vmatprep.subr.mxu0 0.0
      %3663 = vmatpush1.msra.mxu0 0.0
      %3664 = vmatprep.subr.mxu0 0.0
      %3665 = vmatpush1.msra.mxu0 0.0
      %3666 = vmatprep.subr.mxu0 0.0
      %3667 = vmatpush1.msra.mxu0 0.0
      %3668 = vmatprep.subr.mxu0 0.0
      %3669 = vmatpush1.msra.mxu0 0.0
      %3670 = vmatprep.subr.mxu0 0.0
      %3671 = vmatpush1.msra.mxu0 0.0
      %3672 = vmatprep.subr.mxu0 0.0
      %3673 = vmatpush1.msra.mxu0 0.0
      %3674 = vmatprep.subr.mxu0 0.0
      %3675 = vmatpush1.msra.mxu0 0.0
      %3676 = vmatprep.subr.mxu0 0.0
      %3677 = vmatpush1.msra.mxu0 0.0
      %3678 = vmatprep.subr.mxu0 0.0
      %3679 = vmatpush1.msra.mxu0 0.0
      %3680 = vmatprep.subr.mxu0 0.0
      %3681 = vmatpush1.msra.mxu0 0.0
      %3682 = vmatprep.subr.mxu0 0.0
      %3683 = vmatpush1.msra.mxu0 0.0
      %3684 = vmatprep.subr.mxu0 0.0
      %3685 = vmatpush1.msra.mxu0 0.0
      %3686 = vmatprep.subr.mxu0 0.0
      %3687 = vmatpush1.msra.mxu0 0.0
      %3688 = vmatprep.subr.mxu0 0.0
      %3689 = vmatpush1.msra.mxu0 0.0
      %3690 = vmatprep.subr.mxu0 0.0
      %3691 = vmatpush1.msra.mxu0 0.0
      %3692 = vmatprep.subr.mxu0 0.0
      %3693 = vmatpush1.msra.mxu0 0.0
      %3694 = vmatprep.subr.mxu0 0.0
      %3695 = vmatpush1.msra.mxu0 0.0
      %3696 = vmatprep.mubr.f32.mxu0 0.0
      %3697 = vmatmul.mubr.f32.gmra.mrb[0].mxu0 %v3609
      %v3698 = vpop.f32.mrb[0].mxu0
      %v3699 = vadd.f32 %v3570, %v3698
      %v3700 = vpop.f32.mrb[0].mxu0
      %3701 = vmatprep.mubr.f32.mxu0 0.0
      %3702 = vmatmul.mubr.f32.gmra.mrb[0].mxu0 %v3612
      %v3703 = vpop.f32.mrb[0].mxu0
      %v3704 = vadd.f32 %v3575, %v3703
      %v3705 = vpop.f32.mrb[0].mxu0
      %3706 = vmatprep.mubr.f32.mxu0 0.0
      %3707 = vmatmul.mubr.f32.gmra.mrb[0].mxu0 %v3615
      %v3708 = vpop.f32.mrb[0].mxu0
      %v3709 = vadd.f32 %v3580, %v3708
      %v3710 = vpop.f32.mrb[0].mxu0
      %3711 = vmatprep.mubr.f32.mxu0 0.0
      %3712 = vmatmul.mubr.f32.gmra.mrb[0].mxu0 %v3618
      %v3713 = vpop.f32.mrb[0].mxu0
      %v3714 = vadd.f32 %v3585, %v3713
      %v3715 = vpop.f32.mrb[0].mxu0
      %3716 = vmatprep.mubr.f32.mxu0 0.0
      %3717 = vmatmul.mubr.f32.gmra.mrb[0].mxu0 %v3621
      %v3718 = vpop.f32.mrb[0].mxu0
      %v3719 = vadd.f32 %v3590, %v3718
      %v3720 = vpop.f32.mrb[0].mxu0
      %3721 = vmatprep.mubr.f32.mxu0 0.0
      %3722 = vmatmul.mubr.f32.gmra.mrb[0].mxu0 %v3624
      %v3723 = vpop.f32.mrb[0].mxu0
      %v3724 = vadd.f32 %v3595, %v3723
      %v3725 = vpop.f32.mrb[0].mxu0
      %3726 = vmatprep.mubr.f32.mxu0 0.0
      %3727 = vmatmul.mubr.f32.gmra.mrb[0].mxu0 %v3627
      %v3728 = vpop.f32.mrb[0].mxu0
      %v3729 = vadd.f32 %v3600, %v3728
      %v3730 = vpop.f32.mrb[0].mxu0
      %3731 = vmatprep.mubr.f32.mxu0 0.0
      %3732 = vmatmul.mubr.f32.gmra.mrb[0].mxu0 %v3630
      %v3733 = vpop.f32.mrb[0].mxu0
      %v3734 = vadd.f32 %v3605, %v3733
      %v3735 = vpop.f32.mrb[0].mxu0
      %3736 = vdwg.mxu0
      %vm3737 = vcmp.ge.f32.partialorder %v3699, 0.0
      %vm3738 = vcmp.ge.f32.partialorder %v3704, 0.0
      %vm3739 = vcmp.ge.f32.partialorder %v3709, 0.0
      %vm3740 = vcmp.ge.f32.partialorder %v3714, 0.0
      %vm3741 = vcmp.ge.f32.partialorder %v3719, 0.0
      %vm3742 = vcmp.ge.f32.partialorder %v3724, 0.0
      %vm3743 = vcmp.ge.f32.partialorder %v3729, 0.0
      %vm3744 = vcmp.ge.f32.partialorder %v3734, 0.0
      %v3745 = vmul.f32 %v3699, 0.01
      %v3746 = vmul.f32 %v3704, 0.01
      %v3747 = vmul.f32 %v3709, 0.01
      %v3748 = vmul.f32 %v3714, 0.01
      %v3749 = vmul.f32 %v3719, 0.01
      %v3750 = vmul.f32 %v3724, 0.01
      %v3751 = vmul.f32 %v3729, 0.01
      %v3752 = vmul.f32 %v3734, 0.01
      %v3753 = vsel %vm3737, %v3699, %v3745
      %v3754 = vsel %vm3738, %v3704, %v3746
      %v3755 = vsel %vm3739, %v3709, %v3747
      %v3756 = vsel %vm3740, %v3714, %v3748
      %v3757 = vsel %vm3741, %v3719, %v3749
      %v3758 = vsel %vm3742, %v3724, %v3750
      %v3759 = vsel %vm3743, %v3729, %v3751
      %v3760 = vsel %vm3744, %v3734, %v3752
      %v3761 = vld [vmem:[%s14] sm:$0xff]
      %v3762 = vld [vmem:[%s14 + $0x8] sm:$0xff]
      %v3763 = vld [vmem:[%s14 + $0x10] sm:$0xff]
      %v3764 = vld [vmem:[%s14 + $0x18] sm:$0xff]
      %v3765 = vld [vmem:[%s14 + $0x20] sm:$0xff]
      %v3766 = vld [vmem:[%s14 + $0x28] sm:$0xff]
      %v3767 = vld [vmem:[%s14 + $0x30] sm:$0xff]
      %v3768 = vld [vmem:[%s14 + $0x38] sm:$0xff]
      %vm3769 = vcmask 523264
      %v3771 = vsel %vm3769, %v3753, 0
      %v3774 = vsel %vm3769, %v3754, 0
      %v3777 = vsel %vm3769, %v3755, 0
      %v3780 = vsel %vm3769, %v3756, 0
      %v3783 = vsel %vm3769, %v3757, 0
      %v3786 = vsel %vm3769, %v3758, 0
      %v3789 = vsel %vm3769, %v3759, 0
      %v3792 = vsel %vm3769, %v3760, 0
      %3794 = vmatprep.subr.mxu0 0.0
      %3795 = vmatpush1.msra.mxu0 %v3761
      %3796 = vmatprep.subr.mxu0 0.0
      %3797 = vmatpush1.msra.mxu0 %v3762
      %3798 = vmatprep.subr.mxu0 0.0
      %3799 = vmatpush1.msra.mxu0 %v3763
      %3800 = vmatprep.subr.mxu0 0.0
      %3801 = vmatpush1.msra.mxu0 %v3764
      %3802 = vmatprep.subr.mxu0 0.0
      %3803 = vmatpush1.msra.mxu0 %v3765
      %3804 = vmatprep.subr.mxu0 0.0
      %3805 = vmatpush1.msra.mxu0 %v3766
      %3806 = vmatprep.subr.mxu0 0.0
      %3807 = vmatpush1.msra.mxu0 %v3767
      %3808 = vmatprep.subr.mxu0 0.0
      %3809 = vmatpush1.msra.mxu0 %v3768
      %3810 = vmatprep.subr.mxu0 0.0
      %3811 = vmatpush1.msra.mxu0 0.0
      %3812 = vmatprep.subr.mxu0 0.0
      %3813 = vmatpush1.msra.mxu0 0.0
      %3814 = vmatprep.subr.mxu0 0.0
      %3815 = vmatpush1.msra.mxu0 0.0
      %3816 = vmatprep.subr.mxu0 0.0
      %3817 = vmatpush1.msra.mxu0 0.0
      %3818 = vmatprep.subr.mxu0 0.0
      %3819 = vmatpush1.msra.mxu0 0.0
      %3820 = vmatprep.subr.mxu0 0.0
      %3821 = vmatpush1.msra.mxu0 0.0
      %3822 = vmatprep.subr.mxu0 0.0
      %3823 = vmatpush1.msra.mxu0 0.0
      %3824 = vmatprep.subr.mxu0 0.0
      %3825 = vmatpush1.msra.mxu0 0.0
      %3826 = vmatprep.subr.mxu0 0.0
      %3827 = vmatpush1.msra.mxu0 0.0
      %3828 = vmatprep.subr.mxu0 0.0
      %3829 = vmatpush1.msra.mxu0 0.0
      %3830 = vmatprep.subr.mxu0 0.0
      %3831 = vmatpush1.msra.mxu0 0.0
      %3832 = vmatprep.subr.mxu0 0.0
      %3833 = vmatpush1.msra.mxu0 0.0
      %3834 = vmatprep.subr.mxu0 0.0
      %3835 = vmatpush1.msra.mxu0 0.0
      %3836 = vmatprep.subr.mxu0 0.0
      %3837 = vmatpush1.msra.mxu0 0.0
      %3838 = vmatprep.subr.mxu0 0.0
      %3839 = vmatpush1.msra.mxu0 0.0
      %3840 = vmatprep.subr.mxu0 0.0
      %3841 = vmatpush1.msra.mxu0 0.0
      %3842 = vmatprep.subr.mxu0 0.0
      %3843 = vmatpush1.msra.mxu0 0.0
      %3844 = vmatprep.subr.mxu0 0.0
      %3845 = vmatpush1.msra.mxu0 0.0
      %3846 = vmatprep.subr.mxu0 0.0
      %3847 = vmatpush1.msra.mxu0 0.0
      %3848 = vmatprep.subr.mxu0 0.0
      %3849 = vmatpush1.msra.mxu0 0.0
      %3850 = vmatprep.subr.mxu0 0.0
      %3851 = vmatpush1.msra.mxu0 0.0
      %3852 = vmatprep.subr.mxu0 0.0
      %3853 = vmatpush1.msra.mxu0 0.0
      %3854 = vmatprep.subr.mxu0 0.0
      %3855 = vmatpush1.msra.mxu0 0.0
      %3856 = vmatprep.subr.mxu0 0.0
      %3857 = vmatpush1.msra.mxu0 0.0
      %3858 = vmatprep.mubr.f32.mxu0 0.0
      %3859 = vmatmul.mubr.f32.gmra.mrb[0].mxu0 %v3771
      %v3860 = vpop.f32.mrb[0].mxu0
      %v3861 = vadd.f32 0.0, %v3860
      %v3862 = vpop.f32.mrb[0].mxu0
      %3863 = vmatprep.mubr.f32.mxu0 0.0
      %3864 = vmatmul.mubr.f32.gmra.mrb[0].mxu0 %v3774
      %v3865 = vpop.f32.mrb[0].mxu0
      %v3866 = vadd.f32 0.0, %v3865
      %v3867 = vpop.f32.mrb[0].mxu0
      %3868 = vmatprep.mubr.f32.mxu0 0.0
      %3869 = vmatmul.mubr.f32.gmra.mrb[0].mxu0 %v3777
      %v3870 = vpop.f32.mrb[0].mxu0
      %v3871 = vadd.f32 0.0, %v3870
      %v3872 = vpop.f32.mrb[0].mxu0
      %3873 = vmatprep.mubr.f32.mxu0 0.0
      %3874 = vmatmul.mubr.f32.gmra.mrb[0].mxu0 %v3780
      %v3875 = vpop.f32.mrb[0].mxu0
      %v3876 = vadd.f32 0.0, %v3875
      %v3877 = vpop.f32.mrb[0].mxu0
      %3878 = vmatprep.mubr.f32.mxu0 0.0
      %3879 = vmatmul.mubr.f32.gmra.mrb[0].mxu0 %v3783
      %v3880 = vpop.f32.mrb[0].mxu0
      %v3881 = vadd.f32 0.0, %v3880
      %v3882 = vpop.f32.mrb[0].mxu0
      %3883 = vmatprep.mubr.f32.mxu0 0.0
      %3884 = vmatmul.mubr.f32.gmra.mrb[0].mxu0 %v3786
      %v3885 = vpop.f32.mrb[0].mxu0
      %v3886 = vadd.f32 0.0, %v3885
      %v3887 = vpop.f32.mrb[0].mxu0
      %3888 = vmatprep.mubr.f32.mxu0 0.0
      %3889 = vmatmul.mubr.f32.gmra.mrb[0].mxu0 %v3789
      %v3890 = vpop.f32.mrb[0].mxu0
      %v3891 = vadd.f32 0.0, %v3890
      %v3892 = vpop.f32.mrb[0].mxu0
      %3893 = vmatprep.mubr.f32.mxu0 0.0
      %3894 = vmatmul.mubr.f32.gmra.mrb[0].mxu0 %v3792
      %v3895 = vpop.f32.mrb[0].mxu0
      %v3896 = vadd.f32 0.0, %v3895
      %v3897 = vpop.f32.mrb[0].mxu0
      %3898 = vdwg.mxu0
      %v3899 = vld [vmem:[%s15] sm:$0x1]
      %v3900 = vld [vmem:[%s16] sm:$0x1]
      %v3901 = vsel %vm670, %v3861, 0.0
      %3902 = vadd.xlane.f32.xlu0 %v3901
      %v3903 = vpop.xlane.xlu0 %3902
      %v3904 = vsel %vm670, %v3866, 0.0
      %3905 = vadd.xlane.f32.xlu0 %v3904
      %v3906 = vpop.xlane.xlu0 %3905
      %v3907 = vsel %vm670, %v3871, 0.0
      %3908 = vadd.xlane.f32.xlu0 %v3907
      %v3909 = vpop.xlane.xlu0 %3908
      %v3910 = vsel %vm670, %v3876, 0.0
      %3911 = vadd.xlane.f32.xlu0 %v3910
      %v3912 = vpop.xlane.xlu0 %3911
      %v3913 = vsel %vm670, %v3881, 0.0
      %3914 = vadd.xlane.f32.xlu0 %v3913
      %v3915 = vpop.xlane.xlu0 %3914
      %v3916 = vsel %vm670, %v3886, 0.0
      %3917 = vadd.xlane.f32.xlu0 %v3916
      %v3918 = vpop.xlane.xlu0 %3917
      %v3919 = vsel %vm670, %v3891, 0.0
      %3920 = vadd.xlane.f32.xlu0 %v3919
      %v3921 = vpop.xlane.xlu0 %3920
      %v3922 = vsel %vm670, %v3896, 0.0
      %3923 = vadd.xlane.f32.xlu0 %v3922
      %v3924 = vpop.xlane.xlu0 %3923
      %v3925 = vmul.f32 %v3903, %v677
      %v3926 = vmul.f32 %v3906, %v677
      %v3927 = vmul.f32 %v3909, %v677
      %v3928 = vmul.f32 %v3912, %v677
      %v3929 = vmul.f32 %v3915, %v677
      %v3930 = vmul.f32 %v3918, %v677
      %v3931 = vmul.f32 %v3921, %v677
      %v3932 = vmul.f32 %v3924, %v677
      %v3933 = vsub.f32 %v3861, %v3925
      %v3934 = vsub.f32 %v3866, %v3926
      %v3935 = vsub.f32 %v3871, %v3927
      %v3936 = vsub.f32 %v3876, %v3928
      %v3937 = vsub.f32 %v3881, %v3929
      %v3938 = vsub.f32 %v3886, %v3930
      %v3939 = vsub.f32 %v3891, %v3931
      %v3940 = vsub.f32 %v3896, %v3932
      %v3941 = vmul.f32 %v3933, %v3933
      %v3942 = vmul.f32 %v3934, %v3934
      %v3943 = vmul.f32 %v3935, %v3935
      %v3944 = vmul.f32 %v3936, %v3936
      %v3945 = vmul.f32 %v3937, %v3937
      %v3946 = vmul.f32 %v3938, %v3938
      %v3947 = vmul.f32 %v3939, %v3939
      %v3948 = vmul.f32 %v3940, %v3940
      %v3949 = vsel %vm670, %v3941, 0.0
      %3950 = vadd.xlane.f32.xlu0 %v3949
      %v3951 = vpop.xlane.xlu0 %3950
      %v3952 = vsel %vm670, %v3942, 0.0
      %3953 = vadd.xlane.f32.xlu0 %v3952
      %v3954 = vpop.xlane.xlu0 %3953
      %v3955 = vsel %vm670, %v3943, 0.0
      %3956 = vadd.xlane.f32.xlu0 %v3955
      %v3957 = vpop.xlane.xlu0 %3956
      %v3958 = vsel %vm670, %v3944, 0.0
      %3959 = vadd.xlane.f32.xlu0 %v3958
      %v3960 = vpop.xlane.xlu0 %3959
      %v3961 = vsel %vm670, %v3945, 0.0
      %3962 = vadd.xlane.f32.xlu0 %v3961
      %v3963 = vpop.xlane.xlu0 %3962
      %v3964 = vsel %vm670, %v3946, 0.0
      %3965 = vadd.xlane.f32.xlu0 %v3964
      %v3966 = vpop.xlane.xlu0 %3965
      %v3967 = vsel %vm670, %v3947, 0.0
      %3968 = vadd.xlane.f32.xlu0 %v3967
      %v3969 = vpop.xlane.xlu0 %3968
      %v3970 = vsel %vm670, %v3948, 0.0
      %3971 = vadd.xlane.f32.xlu0 %v3970
      %v3972 = vpop.xlane.xlu0 %3971
      %v3973 = vmul.f32 %v3951, %v677
      %v3974 = vmul.f32 %v3954, %v677
      %v3975 = vmul.f32 %v3957, %v677
      %v3976 = vmul.f32 %v3960, %v677
      %v3977 = vmul.f32 %v3963, %v677
      %v3978 = vmul.f32 %v3966, %v677
      %v3979 = vmul.f32 %v3969, %v677
      %v3980 = vmul.f32 %v3972, %v677
      %v3981 = vadd.f32 %v3973, 1e-05
      %v3982 = vadd.f32 %v3974, 1e-05
      %v3983 = vadd.f32 %v3975, 1e-05
      %v3984 = vadd.f32 %v3976, 1e-05
      %v3985 = vadd.f32 %v3977, 1e-05
      %v3986 = vadd.f32 %v3978, 1e-05
      %v3987 = vadd.f32 %v3979, 1e-05
      %v3988 = vadd.f32 %v3980, 1e-05
      %v3989 = vrsqrt.pop %v3981
      %v3990 = vrsqrt.pop %v3982
      %v3991 = vrsqrt.pop %v3983
      %v3992 = vrsqrt.pop %v3984
      %v3993 = vrsqrt.pop %v3985
      %v3994 = vrsqrt.pop %v3986
      %v3995 = vrsqrt.pop %v3987
      %v3996 = vrsqrt.pop %v3988
      %v3997 = vmul.f32 %v3933, %v3989
      %v3998 = vmul.f32 %v3934, %v3990
      %v3999 = vmul.f32 %v3935, %v3991
      %v4000 = vmul.f32 %v3936, %v3992
      %v4001 = vmul.f32 %v3937, %v3993
      %v4002 = vmul.f32 %v3938, %v3994
      %v4003 = vmul.f32 %v3939, %v3995
      %v4004 = vmul.f32 %v3940, %v3996
      %v4006 = vlaneseq
      %v4007 = vshrl.u32 %v4006, 7
      %v4008 = vsub.s32 0, %v4007
      %v4009 = vrot.slane %v3899, %v4008
      %v4011 = vmul.f32 %v3997, %v4009
      %v4012 = vmul.f32 %v3998, %v4009
      %v4013 = vmul.f32 %v3999, %v4009
      %v4014 = vmul.f32 %v4000, %v4009
      %v4015 = vmul.f32 %v4001, %v4009
      %v4016 = vmul.f32 %v4002, %v4009
      %v4017 = vmul.f32 %v4003, %v4009
      %v4018 = vmul.f32 %v4004, %v4009
      %v4020 = vlaneseq
      %v4021 = vshrl.u32 %v4020, 7
      %v4022 = vsub.s32 0, %v4021
      %v4023 = vrot.slane %v3900, %v4022
      %v4025 = vadd.f32 %v4011, %v4023
      %v4026 = vadd.f32 %v4012, %v4023
      %v4027 = vadd.f32 %v4013, %v4023
      %v4028 = vadd.f32 %v4014, %v4023
      %v4029 = vadd.f32 %v4015, %v4023
      %v4030 = vadd.f32 %v4016, %v4023
      %v4031 = vadd.f32 %v4017, %v4023
      %v4032 = vadd.f32 %v4018, %v4023
      %v4033 = vadd.f32 %v3463, %v4025
      %v4034 = vadd.f32 %v3464, %v4026
      %v4035 = vadd.f32 %v3465, %v4027
      %v4036 = vadd.f32 %v3466, %v4028
      %v4037 = vadd.f32 %v3467, %v4029
      %v4038 = vadd.f32 %v3468, %v4030
      %v4039 = vadd.f32 %v3469, %v4031
      %v4040 = vadd.f32 %v3470, %v4032
      %4041 = vst.msk [vmem:[%s608] sm:$0xff] %vm670, %v4033
      %4042 = vst.msk [vmem:[%s608 + $0x8] sm:$0xff] %vm670, %v4034
      %4043 = vst.msk [vmem:[%s608 + $0x10] sm:$0xff] %vm670, %v4035
      %4044 = vst.msk [vmem:[%s608 + $0x18] sm:$0xff] %vm670, %v4036
      %4045 = vst.msk [vmem:[%s608 + $0x20] sm:$0xff] %vm670, %v4037
      %4046 = vst.msk [vmem:[%s608 + $0x28] sm:$0xff] %vm670, %v4038
      %4047 = vst.msk [vmem:[%s608 + $0x30] sm:$0xff] %vm670, %v4039
      %4048 = vst.msk [vmem:[%s608 + $0x38] sm:$0xff] %vm670, %v4040
      %p4049 = scmp.lt.s32.totalorder %s28, 1
      %s4050 = scalar_select %p4049, %s28, 1
      %s4051 = smul.addr %s4050, 8
      %s4052 = smul.addr %s4051, 8
      %s4053 = scalar_lea.vmem %s17, %s4052
      // Predicated region
      $region89: #{tpu_custom_call.1} parent=87 // pred_check
        %p4054 = pneg %p423
      $region90: #{tpu_custom_call.1} parent=87 // pred_check_branch
        %4056 = sbr.rel (%p4054) target = $region92
      $region91: #{tpu_custom_call.1} parent=87 // pred_region
        _
      $region92: #{tpu_custom_call.1} parent=87 // pred_fallthru
        _
    $region88: #{tpu_custom_call.1} parent=5 // pred_fallthru
      _
    %p4057 = scmp.le.s32.totalorder 2, %s23
    // Predicated region
    $region93: #{tpu_custom_call.1} parent=5 // pred_check
      %p4058 = pneg %p4057
    $region94: #{tpu_custom_call.1} parent=5 // pred_check_branch
      %4060 = sbr.rel (%p4058) target = $region96
    $region95: #{tpu_custom_call.1} parent=5 // pred_region
      %s4061 = ssub.s32 %s23, 2
      // Predicated region
      $region97: #{tpu_custom_call.1} parent=95 // pred_check
        %p4062 = pneg %p429
      $region98: #{tpu_custom_call.1} parent=95 // pred_check_branch
        %4064 = sbr.rel (%p4062) target = $region100
      $region99: #{tpu_custom_call.1} parent=95 // pred_region
        %p4065 = scmp.lt.s32.totalorder %s29, 1
        %s4066 = scalar_select %p4065, %s29, 1
        %s4067 = smul.addr %s4066, 8
        %s4068 = smul.addr %s4067, 8
        %s4069 = scalar_lea.vmem %s17, %s4068
      $region100: #{tpu_custom_call.1} parent=95 // pred_fallthru
        _
    $region96: #{tpu_custom_call.1} parent=5 // pred_fallthru
      _
  $region6: #{tpu_custom_call.1} parent=0 // loop_footer
    %s27 = sadd.s32 1, %s23
  $region7: #{tpu_custom_call.1} parent=0 // loop_footer_branch
    %22 = sbr.rel target = $region3
  $region8: #{tpu_custom_call.1} parent=0 // loop_exit
    _

</llo_original>
